<compile_context>
chip_gen: v6e
topology: v6e:2x2x1
jax: 0.10.0
libtpu: 0.0.40
codegen_flags: <defaults>
</compile_context>

<pallas_src>
import functools

import jax
import jax.numpy as jnp
from jax import lax
from jax.experimental import pallas as pl
from jax.experimental.pallas import tpu as pltpu


def _pick_tile(dim, candidates):
    """Largest candidate that evenly divides `dim`, else the full dim."""
    for c in candidates:
        if dim % c == 0:
            return c
    return dim


# ----------------------------------------------------------------------------
# Kernel 1: hoisted input projection  (S*B, I) @ (I, 4H) + bias  -> (S*B, 4H)
# ----------------------------------------------------------------------------
def _input_proj_kernel(x_ref, w_ref, b_ref, o_ref, acc_ref):
    @pl.when(pl.program_id(2) == 0)
    def _():
        acc_ref[...] = jnp.zeros_like(acc_ref)

    acc_ref[...] += jnp.dot(x_ref[...], w_ref[...],
                            preferred_element_type=jnp.float32)

    @pl.when(pl.program_id(2) == pl.num_programs(2) - 1)
    def _():
        o_ref[...] = (acc_ref[...] + b_ref[...]).astype(o_ref.dtype)


def _input_projection(x2d, wih_t, bias, *, compute_dtype):
    M, K = x2d.shape
    N = wih_t.shape[1]
    tm = _pick_tile(M, (256, 128, 64, 32, 16, 8))
    tn = _pick_tile(N, (512, 256, 128))
    tk = _pick_tile(K, (1024, 512, 256, 128))

    return pl.pallas_call(
        _input_proj_kernel,
        out_shape=jax.ShapeDtypeStruct((M, N), jnp.float32),
        grid_spec=pltpu.PrefetchScalarGridSpec(
            num_scalar_prefetch=0,
            grid=(M // tm, N // tn, K // tk),
            in_specs=[
                pl.BlockSpec((tm, tk), lambda i, j, k: (i, k)),   # x tile
                pl.BlockSpec((tk, tn), lambda i, j, k: (k, j)),   # W_ih^T tile
                pl.BlockSpec((1, tn), lambda i, j, k: (0, j)),    # fused bias
            ],
            out_specs=pl.BlockSpec((tm, tn), lambda i, j, k: (i, j)),
            scratch_shapes=[pltpu.VMEM((tm, tn), jnp.float32)],
        ),
        # parallel M/N lets v7x shard the big GEMM across both TensorCores;
        # the K axis is the reduction and stays 'arbitrary'.
        compiler_params=pltpu.CompilerParams(
            dimension_semantics=("parallel", "parallel", "arbitrary")),
    )(x2d.astype(compute_dtype), wih_t.astype(compute_dtype), bias)


# ----------------------------------------------------------------------------
# Kernel 2: sequential LSTM recurrence over precomputed gate pre-activations.
# Emits the lane-dense ReLU(h) slab (S, B, H).
# ----------------------------------------------------------------------------
def _lstm_recurrence_kernel(xg_ref, whh_ref, out_ref, h_scr, c_scr):
    g = pl.program_id(0)

    @pl.when(g == 0)
    def _():
        h_scr[...] = jnp.zeros_like(h_scr)
        c_scr[...] = jnp.zeros_like(c_scr)

    H = h_scr.shape[1]
    TT = xg_ref.shape[0]

    def step(t, carry):
        h, c = carry
        # Only the truly sequential part stays in the loop: h @ W_hh^T.
        gates = xg_ref[t] + jnp.dot(h.astype(whh_ref.dtype), whh_ref[...],
                                    preferred_element_type=jnp.float32)
        # PyTorch gate ordering: i, f, g, o (lane-aligned slices when H % 128 == 0)
        i_g = jax.nn.sigmoid(gates[:, 0:H])
        f_g = jax.nn.sigmoid(gates[:, H:2 * H])
        g_g = jnp.tanh(gates[:, 2 * H:3 * H])
        o_g = jax.nn.sigmoid(gates[:, 3 * H:4 * H])
        c_new = f_g * c + i_g * g_g
        h_new = o_g * jnp.tanh(c_new)
        out_ref[t] = jnp.maximum(h_new, 0.0).astype(out_ref.dtype)
        return h_new, c_new

    h, c = lax.fori_loop(0, TT, step, (h_scr[...], c_scr[...]), unroll=True)
    h_scr[...] = h
    c_scr[...] = c


# ----------------------------------------------------------------------------
# Wrapper: full forward pass
# ----------------------------------------------------------------------------
@functools.partial(jax.jit, static_argnames=("compute_dtype",))
def net_forward(x, w_ih, w_hh, b_ih, b_hh, w2, b2, *,
                compute_dtype=jnp.float32):
    """x: (S, B, I).  Returns (S, B, num_classes)."""
    S, B, I = x.shape
    H = w_hh.shape[1]
    C = w2.shape[0]
    # NOTE: at the real model size (H=500) pad H to a multiple of 128 (512) in
    # the wrapper so gate slices stay lane-aligned; H=128 here already is.

    # --- (1) hoisted input projection over all timesteps at once ------------
    bias = (b_ih + b_hh).reshape(1, 4 * H).astype(jnp.float32)
    xg = _input_projection(x.reshape(S * B, I), w_ih.T, bias,
                           compute_dtype=compute_dtype)
    xg = xg.reshape(S, B, 4 * H)

    # --- (2) sequential recurrence, TT timesteps per grid step --------------
    TT = _pick_tile(S, (32, 16, 8, 4, 2))
    whh_t = w_hh.T.astype(compute_dtype)

    wbytes = jnp.dtype(compute_dtype).itemsize
    vmem_needed = (H * 4 * H * wbytes            # resident W_hh^T
                   + 2 * TT * B * 4 * H * 4      # double-buffered xg blocks
                   + 2 * TT * B * H * 4          # double-buffered out blocks
                   + 2 * B * H * 4)              # h/c scratch
    vmem_limit = int(min(max(2 * vmem_needed + (4 << 20), 32 << 20), 100 << 20))

    relu_h = pl.pallas_call(
        _lstm_recurrence_kernel,
        out_shape=jax.ShapeDtypeStruct((S, B, H), jnp.float32),
        grid_spec=pltpu.PrefetchScalarGridSpec(
            num_scalar_prefetch=0,
            grid=(S // TT,),
            in_specs=[
                pl.BlockSpec((TT, B, 4 * H), lambda g: (g, 0, 0)),  # gate preacts
                pl.BlockSpec((H, 4 * H), lambda g: (0, 0)),         # W_hh^T resident
            ],
            out_specs=pl.BlockSpec((TT, B, H), lambda g: (g, 0, 0)),
            scratch_shapes=[
                pltpu.VMEM((B, H), jnp.float32),   # h state
                pltpu.VMEM((B, H), jnp.float32),   # c state
            ],
        ),
        compiler_params=pltpu.CompilerParams(
            dimension_semantics=("arbitrary",),    # time is sequential
            vmem_limit_bytes=vmem_limit),
    )(xg, whh_t)

    # --- (3) tiny lane-sparse (H -> 8) projection kept outside the kernel ---
    y = relu_h.reshape(S * B, H) @ w2.T.astype(jnp.float32) + b2.reshape(1, C)
    return y.reshape(S, B, C)


# ----------------------------------------------------------------------------
# Pure-JAX reference of the intended PyTorch forward
# ----------------------------------------------------------------------------
def ref_forward(x, w_ih, w_hh, b_ih, b_hh, w2, b2):
    S, B, _ = x.shape
    H = w_hh.shape[1]
    h = jnp.zeros((B, H), jnp.float32)
    c = jnp.zeros((B, H), jnp.float32)
    outs = []
    for t in range(S):
        gates = x[t] @ w_ih.T + b_ih + h @ w_hh.T + b_hh
        i = jax.nn.sigmoid(gates[:, :H])
        f = jax.nn.sigmoid(gates[:, H:2 * H])
        g = jnp.tanh(gates[:, 2 * H:3 * H])
        o = jax.nn.sigmoid(gates[:, 3 * H:])
        c = f * c + i * g
        h = o * jnp.tanh(c)
        outs.append(jnp.maximum(h, 0.0) @ w2.T + b2)
    return jnp.stack(outs)


if __name__ == "__main__":
    # Small shapes consistent with the module (original: input=131072,
    # hidden=500, classes=8 — scaled down for a synthetic kernel run).
    SEQ, BATCH = 8, 8
    INPUT_SIZE, HIDDEN_SIZE, NUM_CLASSES = 256, 128, 8

    key = jax.random.PRNGKey(0)
    ks = jax.random.split(key, 8)
    bound = 1.0 / jnp.sqrt(HIDDEN_SIZE)

    x = jax.random.normal(ks[0], (SEQ, BATCH, INPUT_SIZE), jnp.float32)
    w_ih = jax.random.uniform(ks[1], (4 * HIDDEN_SIZE, INPUT_SIZE), jnp.float32,
                              -bound, bound)
    w_hh = jax.random.uniform(ks[2], (4 * HIDDEN_SIZE, HIDDEN_SIZE), jnp.float32,
                              -bound, bound)
    b_ih = jax.random.uniform(ks[3], (4 * HIDDEN_SIZE,), jnp.float32, -bound, bound)
    b_hh = jax.random.uniform(ks[4], (4 * HIDDEN_SIZE,), jnp.float32, -bound, bound)
    w2 = jax.random.uniform(ks[5], (NUM_CLASSES, HIDDEN_SIZE), jnp.float32,
                            -bound, bound)
    b2 = jax.random.uniform(ks[6], (NUM_CLASSES,), jnp.float32, -bound, bound)

    out = net_forward(x, w_ih, w_hh, b_ih, b_hh, w2, b2)
    out = jax.block_until_ready(out)

    ref = ref_forward(x, w_ih, w_hh, b_ih, b_hh, w2, b2)
    assert out.shape == (SEQ, BATCH, NUM_CLASSES)
    assert jnp.allclose(out, ref, rtol=1e-3, atol=1e-3), "mismatch vs reference"

    print("KERNEL_OK")
</pallas_src>

<mosaic_0001>
module attributes {stable_mosaic.version = 11 : i64} {
  func.func @_input_proj_kernel(%arg0: i32, %arg1: i32, %arg2: i32, %arg3: memref<64x256xf32, #tpu.memory_space<vmem>>, %arg4: memref<256x512xf32, #tpu.memory_space<vmem>>, %arg5: memref<1x512xf32, #tpu.memory_space<vmem>>, %arg6: memref<64x512xf32, #tpu.memory_space<vmem>>, %arg7: memref<64x512xf32, #tpu.memory_space<vmem>>) attributes {dimension_semantics = [#tpu.dimension_semantics<parallel>, #tpu.dimension_semantics<parallel>, #tpu.dimension_semantics<arbitrary>], iteration_bounds = array<i64: 1, 1, 1>, scalar_prefetch = 0 : i64, scratch_operands = 1 : i64, tpu.core_type = #tpu.core_type<tc>, window_params = [{transform_indices = @transform_0, window_bounds = array<i64: 64, 256>}, {transform_indices = @transform_1, window_bounds = array<i64: 256, 512>}, {transform_indices = @transform_2, window_bounds = array<i64: 1, 512>}, {transform_indices = @transform_3, window_bounds = array<i64: 64, 512>}]} {
    %c0_i32 = arith.constant 0 : i32
    %0 = arith.cmpi eq, %arg2, %c0_i32 : i32
    %1 = arith.extui %0 : i1 to i32
    %c0_i32_0 = arith.constant 0 : i32
    %2 = arith.cmpi ne, %1, %c0_i32_0 : i32
    scf.if %2 {
      %cst_10 = arith.constant 0.000000e+00 : f32
      %12 = vector.broadcast %cst_10 : f32 to vector<64x512xf32>
      %c0_11 = arith.constant 0 : index
      %c0_12 = arith.constant 0 : index
      %13 = vector.load %arg7[%c0_11, %c0_12] : memref<64x512xf32, #tpu.memory_space<vmem>>, vector<64x512xf32>
      tpu.vector_store %arg7[%c0_11, %c0_12], %12 {strides = array<i32>} : memref<64x512xf32, #tpu.memory_space<vmem>>, vector<64x512xf32>,
    } else {
    }
    %c0 = arith.constant 0 : index
    %c0_1 = arith.constant 0 : index
    %3 = vector.load %arg7[%c0, %c0_1] : memref<64x512xf32, #tpu.memory_space<vmem>>, vector<64x512xf32>
    %c0_2 = arith.constant 0 : index
    %c0_3 = arith.constant 0 : index
    %4 = vector.load %arg3[%c0_2, %c0_3] : memref<64x256xf32, #tpu.memory_space<vmem>>, vector<64x256xf32>
    %c0_4 = arith.constant 0 : index
    %c0_5 = arith.constant 0 : index
    %5 = vector.load %arg4[%c0_4, %c0_5] : memref<256x512xf32, #tpu.memory_space<vmem>>, vector<256x512xf32>
    %cst = arith.constant dense<0.000000e+00> : vector<64x512xf32>
    %6 = tpu.matmul %4, %5, %cst {dimension_numbers = #tpu.dot_dimension_numbers<[1], [0], [0], [1], [0, 0, 1, 1], [], []>} : vector<64x256xf32>, vector<256x512xf32>, vector<64x512xf32> -> vector<64x512xf32>
    %7 = arith.addf %3, %6 : vector<64x512xf32>
    %c0_6 = arith.constant 0 : index
    %c0_7 = arith.constant 0 : index
    %8 = vector.load %arg7[%c0_6, %c0_7] : memref<64x512xf32, #tpu.memory_space<vmem>>, vector<64x512xf32>
    tpu.vector_store %arg7[%c0_6, %c0_7], %7 {strides = array<i32>} : memref<64x512xf32, #tpu.memory_space<vmem>>, vector<64x512xf32>,
    %c0_i32_8 = arith.constant 0 : i32
    %9 = arith.cmpi eq, %arg2, %c0_i32_8 : i32
    %10 = arith.extui %9 : i1 to i32
    %c0_i32_9 = arith.constant 0 : i32
    %11 = arith.cmpi ne, %10, %c0_i32_9 : i32
    scf.if %11 {
      %c0_10 = arith.constant 0 : index
      %c0_11 = arith.constant 0 : index
      %12 = vector.load %arg7[%c0_10, %c0_11] : memref<64x512xf32, #tpu.memory_space<vmem>>, vector<64x512xf32>
      %c0_12 = arith.constant 0 : index
      %c0_13 = arith.constant 0 : index
      %13 = vector.load %arg5[%c0_12, %c0_13] : memref<1x512xf32, #tpu.memory_space<vmem>>, vector<1x512xf32>
      %14 = vector.broadcast %13 : vector<1x512xf32> to vector<64x512xf32>
      %15 = arith.addf %12, %14 : vector<64x512xf32>
      %c0_14 = arith.constant 0 : index
      %c0_15 = arith.constant 0 : index
      %16 = vector.load %arg6[%c0_14, %c0_15] : memref<64x512xf32, #tpu.memory_space<vmem>>, vector<64x512xf32>
      tpu.vector_store %arg6[%c0_14, %c0_15], %15 {strides = array<i32>} : memref<64x512xf32, #tpu.memory_space<vmem>>, vector<64x512xf32>,
    } else {
    }
    return
  }
  func.func @transform_0(%arg0: i32, %arg1: i32, %arg2: i32) -> (i32, i32) {
    %c0_i32 = arith.constant 0 : i32
    return %arg0, %arg2 : i32, i32
  }
  func.func @transform_1(%arg0: i32, %arg1: i32, %arg2: i32) -> (i32, i32) {
    %c0_i32 = arith.constant 0 : i32
    return %arg2, %arg1 : i32, i32
  }
  func.func @transform_2(%arg0: i32, %arg1: i32, %arg2: i32) -> (i32, i32) {
    %c0_i32 = arith.constant 0 : i32
    %c0_i32_0 = arith.constant 0 : i32
    return %c0_i32, %arg1 : i32, i32
  }
  func.func @transform_3(%arg0: i32, %arg1: i32, %arg2: i32) -> (i32, i32) {
    %c0_i32 = arith.constant 0 : i32
    return %arg0, %arg1 : i32, i32
  }
}

module attributes {stable_mosaic.version = 11 : i64} {
  func.func @_lstm_recurrence_kernel(%arg0: i32, %arg1: memref<8x8x512xf32, #tpu.memory_space<vmem>>, %arg2: memref<128x512xf32, #tpu.memory_space<vmem>>, %arg3: memref<8x8x128xf32, #tpu.memory_space<vmem>>, %arg4: memref<8x128xf32, #tpu.memory_space<vmem>>, %arg5: memref<8x128xf32, #tpu.memory_space<vmem>>) attributes {dimension_semantics = [#tpu.dimension_semantics<arbitrary>], iteration_bounds = array<i64: 1>, scalar_prefetch = 0 : i64, scratch_operands = 2 : i64, tpu.core_type = #tpu.core_type<tc>, window_params = [{transform_indices = @transform_0, window_bounds = array<i64: 8, 8, 512>}, {pipeline_mode = #tpu.pipeline_mode<synchronous>, transform_indices = @transform_1, window_bounds = array<i64: 128, 512>}, {transform_indices = @transform_2, window_bounds = array<i64: 8, 8, 128>}]} {
    %c0_i32 = arith.constant 0 : i32
    %0 = arith.cmpi eq, %arg0, %c0_i32 : i32
    %1 = arith.extui %0 : i1 to i32
    %c0_i32_0 = arith.constant 0 : i32
    %2 = arith.cmpi ne, %1, %c0_i32_0 : i32
    scf.if %2 {
      %cst_96 = arith.constant 0.000000e+00 : f32
      %303 = vector.broadcast %cst_96 : f32 to vector<8x128xf32>
      %c0_97 = arith.constant 0 : index
      %c0_98 = arith.constant 0 : index
      %304 = vector.load %arg4[%c0_97, %c0_98] : memref<8x128xf32, #tpu.memory_space<vmem>>, vector<8x128xf32>
      tpu.vector_store %arg4[%c0_97, %c0_98], %303 {strides = array<i32>} : memref<8x128xf32, #tpu.memory_space<vmem>>, vector<8x128xf32>,
      %cst_99 = arith.constant 0.000000e+00 : f32
      %305 = vector.broadcast %cst_99 : f32 to vector<8x128xf32>
      %c0_100 = arith.constant 0 : index
      %c0_101 = arith.constant 0 : index
      %306 = vector.load %arg5[%c0_100, %c0_101] : memref<8x128xf32, #tpu.memory_space<vmem>>, vector<8x128xf32>
      tpu.vector_store %arg5[%c0_100, %c0_101], %305 {strides = array<i32>} : memref<8x128xf32, #tpu.memory_space<vmem>>, vector<8x128xf32>,
    } else {
    }
    %c0 = arith.constant 0 : index
    %c0_1 = arith.constant 0 : index
    %3 = vector.load %arg4[%c0, %c0_1] : memref<8x128xf32, #tpu.memory_space<vmem>>, vector<8x128xf32>
    %c0_2 = arith.constant 0 : index
    %c0_3 = arith.constant 0 : index
    %4 = vector.load %arg5[%c0_2, %c0_3] : memref<8x128xf32, #tpu.memory_space<vmem>>, vector<8x128xf32>
    %c0_i32_4 = arith.constant 0 : i32
    %5 = arith.index_cast %c0_i32_4 : i32 to index
    %c0_5 = arith.constant 0 : index
    %c0_6 = arith.constant 0 : index
    %6 = vector.load %arg1[%5, %c0_5, %c0_6] : memref<8x8x512xf32, #tpu.memory_space<vmem>>, vector<1x8x512xf32>
    %7 = vector.shape_cast %6 : vector<1x8x512xf32> to vector<8x512xf32>
    %c0_7 = arith.constant 0 : index
    %c0_8 = arith.constant 0 : index
    %8 = vector.load %arg2[%c0_7, %c0_8] : memref<128x512xf32, #tpu.memory_space<vmem>>, vector<128x512xf32>
    %cst = arith.constant dense<0.000000e+00> : vector<8x512xf32>
    %9 = tpu.matmul %3, %8, %cst {dimension_numbers = #tpu.dot_dimension_numbers<[1], [0], [0], [1], [0, 0, 1, 1], [], []>} : vector<8x128xf32>, vector<128x512xf32>, vector<8x512xf32> -> vector<8x512xf32>
    %10 = arith.addf %7, %9 : vector<8x512xf32>
    %11 = vector.extract_strided_slice %10 {offsets = [0, 0], sizes = [8, 128], strides = [1, 1]} : vector<8x512xf32> to vector<8x128xf32>
    %12 = arith.negf %11 : vector<8x128xf32>
    %13 = math.exp %12 : vector<8x128xf32>
    %cst_9 = arith.constant 1.000000e+00 : f32
    %14 = vector.broadcast %cst_9 : f32 to vector<8x128xf32>
    %15 = arith.addf %14, %13 : vector<8x128xf32>
    %16 = arith.divf %14, %15 : vector<8x128xf32>
    %17 = vector.extract_strided_slice %10 {offsets = [0, 128], sizes = [8, 128], strides = [1, 1]} : vector<8x512xf32> to vector<8x128xf32>
    %18 = arith.negf %17 : vector<8x128xf32>
    %19 = math.exp %18 : vector<8x128xf32>
    %cst_10 = arith.constant 1.000000e+00 : f32
    %20 = vector.broadcast %cst_10 : f32 to vector<8x128xf32>
    %21 = arith.addf %20, %19 : vector<8x128xf32>
    %22 = arith.divf %20, %21 : vector<8x128xf32>
    %23 = vector.extract_strided_slice %10 {offsets = [0, 256], sizes = [8, 128], strides = [1, 1]} : vector<8x512xf32> to vector<8x128xf32>
    %24 = math.tanh %23 : vector<8x128xf32>
    %25 = vector.extract_strided_slice %10 {offsets = [0, 384], sizes = [8, 128], strides = [1, 1]} : vector<8x512xf32> to vector<8x128xf32>
    %26 = arith.negf %25 : vector<8x128xf32>
    %27 = math.exp %26 : vector<8x128xf32>
    %cst_11 = arith.constant 1.000000e+00 : f32
    %28 = vector.broadcast %cst_11 : f32 to vector<8x128xf32>
    %29 = arith.addf %28, %27 : vector<8x128xf32>
    %30 = arith.divf %28, %29 : vector<8x128xf32>
    %31 = arith.mulf %22, %4 : vector<8x128xf32>
    %32 = arith.mulf %16, %24 : vector<8x128xf32>
    %33 = arith.addf %31, %32 : vector<8x128xf32>
    %34 = math.tanh %33 : vector<8x128xf32>
    %35 = arith.mulf %30, %34 : vector<8x128xf32>
    %cst_12 = arith.constant 0.000000e+00 : f32
    %36 = vector.broadcast %cst_12 : f32 to vector<8x128xf32>
    %37 = arith.maximumf %35, %36 : vector<8x128xf32>
    %38 = arith.index_cast %c0_i32_4 : i32 to index
    %c0_13 = arith.constant 0 : index
    %c0_14 = arith.constant 0 : index
    %39 = vector.load %arg3[%38, %c0_13, %c0_14] : memref<8x8x128xf32, #tpu.memory_space<vmem>>, vector<1x8x128xf32>
    %40 = vector.shape_cast %39 : vector<1x8x128xf32> to vector<8x128xf32>
    %41 = vector.shape_cast %37 : vector<8x128xf32> to vector<1x8x128xf32>
    tpu.vector_store %arg3[%38, %c0_13, %c0_14], %41 {strides = array<i32>} : memref<8x8x128xf32, #tpu.memory_space<vmem>>, vector<1x8x128xf32>,
    %c1_i32 = arith.constant 1 : i32
    %42 = arith.index_cast %c1_i32 : i32 to index
    %c0_15 = arith.constant 0 : index
    %c0_16 = arith.constant 0 : index
    %43 = vector.load %arg1[%42, %c0_15, %c0_16] : memref<8x8x512xf32, #tpu.memory_space<vmem>>, vector<1x8x512xf32>
    %44 = vector.shape_cast %43 : vector<1x8x512xf32> to vector<8x512xf32>
    %c0_17 = arith.constant 0 : index
    %c0_18 = arith.constant 0 : index
    %45 = vector.load %arg2[%c0_17, %c0_18] : memref<128x512xf32, #tpu.memory_space<vmem>>, vector<128x512xf32>
    %cst_19 = arith.constant dense<0.000000e+00> : vector<8x512xf32>
    %46 = tpu.matmul %35, %45, %cst_19 {dimension_numbers = #tpu.dot_dimension_numbers<[1], [0], [0], [1], [0, 0, 1, 1], [], []>} : vector<8x128xf32>, vector<128x512xf32>, vector<8x512xf32> -> vector<8x512xf32>
    %47 = arith.addf %44, %46 : vector<8x512xf32>
    %48 = vector.extract_strided_slice %47 {offsets = [0, 0], sizes = [8, 128], strides = [1, 1]} : vector<8x512xf32> to vector<8x128xf32>
    %49 = arith.negf %48 : vector<8x128xf32>
    %50 = math.exp %49 : vector<8x128xf32>
    %cst_20 = arith.constant 1.000000e+00 : f32
    %51 = vector.broadcast %cst_20 : f32 to vector<8x128xf32>
    %52 = arith.addf %51, %50 : vector<8x128xf32>
    %53 = arith.divf %51, %52 : vector<8x128xf32>
    %54 = vector.extract_strided_slice %47 {offsets = [0, 128], sizes = [8, 128], strides = [1, 1]} : vector<8x512xf32> to vector<8x128xf32>
    %55 = arith.negf %54 : vector<8x128xf32>
    %56 = math.exp %55 : vector<8x128xf32>
    %cst_21 = arith.constant 1.000000e+00 : f32
    %57 = vector.broadcast %cst_21 : f32 to vector<8x128xf32>
    %58 = arith.addf %57, %56 : vector<8x128xf32>
    %59 = arith.divf %57, %58 : vector<8x128xf32>
    %60 = vector.extract_strided_slice %47 {offsets = [0, 256], sizes = [8, 128], strides = [1, 1]} : vector<8x512xf32> to vector<8x128xf32>
    %61 = math.tanh %60 : vector<8x128xf32>
    %62 = vector.extract_strided_slice %47 {offsets = [0, 384], sizes = [8, 128], strides = [1, 1]} : vector<8x512xf32> to vector<8x128xf32>
    %63 = arith.negf %62 : vector<8x128xf32>
    %64 = math.exp %63 : vector<8x128xf32>
    %cst_22 = arith.constant 1.000000e+00 : f32
    %65 = vector.broadcast %cst_22 : f32 to vector<8x128xf32>
    %66 = arith.addf %65, %64 : vector<8x128xf32>
    %67 = arith.divf %65, %66 : vector<8x128xf32>
    %68 = arith.mulf %59, %33 : vector<8x128xf32>
    %69 = arith.mulf %53, %61 : vector<8x128xf32>
    %70 = arith.addf %68, %69 : vector<8x128xf32>
    %71 = math.tanh %70 : vector<8x128xf32>
    %72 = arith.mulf %67, %71 : vector<8x128xf32>
    %cst_23 = arith.constant 0.000000e+00 : f32
    %73 = vector.broadcast %cst_23 : f32 to vector<8x128xf32>
    %74 = arith.maximumf %72, %73 : vector<8x128xf32>
    %75 = arith.index_cast %c1_i32 : i32 to index
    %c0_24 = arith.constant 0 : index
    %c0_25 = arith.constant 0 : index
    %76 = vector.load %arg3[%75, %c0_24, %c0_25] : memref<8x8x128xf32, #tpu.memory_space<vmem>>, vector<1x8x128xf32>
    %77 = vector.shape_cast %76 : vector<1x8x128xf32> to vector<8x128xf32>
    %78 = vector.shape_cast %74 : vector<8x128xf32> to vector<1x8x128xf32>
    tpu.vector_store %arg3[%75, %c0_24, %c0_25], %78 {strides = array<i32>} : memref<8x8x128xf32, #tpu.memory_space<vmem>>, vector<1x8x128xf32>,
    %c2_i32 = arith.constant 2 : i32
    %79 = arith.index_cast %c2_i32 : i32 to index
    %c0_26 = arith.constant 0 : index
    %c0_27 = arith.constant 0 : index
    %80 = vector.load %arg1[%79, %c0_26, %c0_27] : memref<8x8x512xf32, #tpu.memory_space<vmem>>, vector<1x8x512xf32>
    %81 = vector.shape_cast %80 : vector<1x8x512xf32> to vector<8x512xf32>
    %c0_28 = arith.constant 0 : index
    %c0_29 = arith.constant 0 : index
    %82 = vector.load %arg2[%c0_28, %c0_29] : memref<128x512xf32, #tpu.memory_space<vmem>>, vector<128x512xf32>
    %cst_30 = arith.constant dense<0.000000e+00> : vector<8x512xf32>
    %83 = tpu.matmul %72, %82, %cst_30 {dimension_numbers = #tpu.dot_dimension_numbers<[1], [0], [0], [1], [0, 0, 1, 1], [], []>} : vector<8x128xf32>, vector<128x512xf32>, vector<8x512xf32> -> vector<8x512xf32>
    %84 = arith.addf %81, %83 : vector<8x512xf32>
    %85 = vector.extract_strided_slice %84 {offsets = [0, 0], sizes = [8, 128], strides = [1, 1]} : vector<8x512xf32> to vector<8x128xf32>
    %86 = arith.negf %85 : vector<8x128xf32>
    %87 = math.exp %86 : vector<8x128xf32>
    %cst_31 = arith.constant 1.000000e+00 : f32
    %88 = vector.broadcast %cst_31 : f32 to vector<8x128xf32>
    %89 = arith.addf %88, %87 : vector<8x128xf32>
    %90 = arith.divf %88, %89 : vector<8x128xf32>
    %91 = vector.extract_strided_slice %84 {offsets = [0, 128], sizes = [8, 128], strides = [1, 1]} : vector<8x512xf32> to vector<8x128xf32>
    %92 = arith.negf %91 : vector<8x128xf32>
    %93 = math.exp %92 : vector<8x128xf32>
    %cst_32 = arith.constant 1.000000e+00 : f32
    %94 = vector.broadcast %cst_32 : f32 to vector<8x128xf32>
    %95 = arith.addf %94, %93 : vector<8x128xf32>
    %96 = arith.divf %94, %95 : vector<8x128xf32>
    %97 = vector.extract_strided_slice %84 {offsets = [0, 256], sizes = [8, 128], strides = [1, 1]} : vector<8x512xf32> to vector<8x128xf32>
    %98 = math.tanh %97 : vector<8x128xf32>
    %99 = vector.extract_strided_slice %84 {offsets = [0, 384], sizes = [8, 128], strides = [1, 1]} : vector<8x512xf32> to vector<8x128xf32>
    %100 = arith.negf %99 : vector<8x128xf32>
    %101 = math.exp %100 : vector<8x128xf32>
    %cst_33 = arith.constant 1.000000e+00 : f32
    %102 = vector.broadcast %cst_33 : f32 to vector<8x128xf32>
    %103 = arith.addf %102, %101 : vector<8x128xf32>
    %104 = arith.divf %102, %103 : vector<8x128xf32>
    %105 = arith.mulf %96, %70 : vector<8x128xf32>
    %106 = arith.mulf %90, %98 : vector<8x128xf32>
    %107 = arith.addf %105, %106 : vector<8x128xf32>
    %108 = math.tanh %107 : vector<8x128xf32>
    %109 = arith.mulf %104, %108 : vector<8x128xf32>
    %cst_34 = arith.constant 0.000000e+00 : f32
    %110 = vector.broadcast %cst_34 : f32 to vector<8x128xf32>
    %111 = arith.maximumf %109, %110 : vector<8x128xf32>
    %112 = arith.index_cast %c2_i32 : i32 to index
    %c0_35 = arith.constant 0 : index
    %c0_36 = arith.constant 0 : index
    %113 = vector.load %arg3[%112, %c0_35, %c0_36] : memref<8x8x128xf32, #tpu.memory_space<vmem>>, vector<1x8x128xf32>
    %114 = vector.shape_cast %113 : vector<1x8x128xf32> to vector<8x128xf32>
    %115 = vector.shape_cast %111 : vector<8x128xf32> to vector<1x8x128xf32>
    tpu.vector_store %arg3[%112, %c0_35, %c0_36], %115 {strides = array<i32>} : memref<8x8x128xf32, #tpu.memory_space<vmem>>, vector<1x8x128xf32>,
    %c3_i32 = arith.constant 3 : i32
    %116 = arith.index_cast %c3_i32 : i32 to index
    %c0_37 = arith.constant 0 : index
    %c0_38 = arith.constant 0 : index
    %117 = vector.load %arg1[%116, %c0_37, %c0_38] : memref<8x8x512xf32, #tpu.memory_space<vmem>>, vector<1x8x512xf32>
    %118 = vector.shape_cast %117 : vector<1x8x512xf32> to vector<8x512xf32>
    %c0_39 = arith.constant 0 : index
    %c0_40 = arith.constant 0 : index
    %119 = vector.load %arg2[%c0_39, %c0_40] : memref<128x512xf32, #tpu.memory_space<vmem>>, vector<128x512xf32>
    %cst_41 = arith.constant dense<0.000000e+00> : vector<8x512xf32>
    %120 = tpu.matmul %109, %119, %cst_41 {dimension_numbers = #tpu.dot_dimension_numbers<[1], [0], [0], [1], [0, 0, 1, 1], [], []>} : vector<8x128xf32>, vector<128x512xf32>, vector<8x512xf32> -> vector<8x512xf32>
    %121 = arith.addf %118, %120 : vector<8x512xf32>
    %122 = vector.extract_strided_slice %121 {offsets = [0, 0], sizes = [8, 128], strides = [1, 1]} : vector<8x512xf32> to vector<8x128xf32>
    %123 = arith.negf %122 : vector<8x128xf32>
    %124 = math.exp %123 : vector<8x128xf32>
    %cst_42 = arith.constant 1.000000e+00 : f32
    %125 = vector.broadcast %cst_42 : f32 to vector<8x128xf32>
    %126 = arith.addf %125, %124 : vector<8x128xf32>
    %127 = arith.divf %125, %126 : vector<8x128xf32>
    %128 = vector.extract_strided_slice %121 {offsets = [0, 128], sizes = [8, 128], strides = [1, 1]} : vector<8x512xf32> to vector<8x128xf32>
    %129 = arith.negf %128 : vector<8x128xf32>
    %130 = math.exp %129 : vector<8x128xf32>
    %cst_43 = arith.constant 1.000000e+00 : f32
    %131 = vector.broadcast %cst_43 : f32 to vector<8x128xf32>
    %132 = arith.addf %131, %130 : vector<8x128xf32>
    %133 = arith.divf %131, %132 : vector<8x128xf32>
    %134 = vector.extract_strided_slice %121 {offsets = [0, 256], sizes = [8, 128], strides = [1, 1]} : vector<8x512xf32> to vector<8x128xf32>
    %135 = math.tanh %134 : vector<8x128xf32>
    %136 = vector.extract_strided_slice %121 {offsets = [0, 384], sizes = [8, 128], strides = [1, 1]} : vector<8x512xf32> to vector<8x128xf32>
    %137 = arith.negf %136 : vector<8x128xf32>
    %138 = math.exp %137 : vector<8x128xf32>
    %cst_44 = arith.constant 1.000000e+00 : f32
    %139 = vector.broadcast %cst_44 : f32 to vector<8x128xf32>
    %140 = arith.addf %139, %138 : vector<8x128xf32>
    %141 = arith.divf %139, %140 : vector<8x128xf32>
    %142 = arith.mulf %133, %107 : vector<8x128xf32>
    %143 = arith.mulf %127, %135 : vector<8x128xf32>
    %144 = arith.addf %142, %143 : vector<8x128xf32>
    %145 = math.tanh %144 : vector<8x128xf32>
    %146 = arith.mulf %141, %145 : vector<8x128xf32>
    %cst_45 = arith.constant 0.000000e+00 : f32
    %147 = vector.broadcast %cst_45 : f32 to vector<8x128xf32>
    %148 = arith.maximumf %146, %147 : vector<8x128xf32>
    %149 = arith.index_cast %c3_i32 : i32 to index
    %c0_46 = arith.constant 0 : index
    %c0_47 = arith.constant 0 : index
    %150 = vector.load %arg3[%149, %c0_46, %c0_47] : memref<8x8x128xf32, #tpu.memory_space<vmem>>, vector<1x8x128xf32>
    %151 = vector.shape_cast %150 : vector<1x8x128xf32> to vector<8x128xf32>
    %152 = vector.shape_cast %148 : vector<8x128xf32> to vector<1x8x128xf32>
    tpu.vector_store %arg3[%149, %c0_46, %c0_47], %152 {strides = array<i32>} : memref<8x8x128xf32, #tpu.memory_space<vmem>>, vector<1x8x128xf32>,
    %c4_i32 = arith.constant 4 : i32
    %153 = arith.index_cast %c4_i32 : i32 to index
    %c0_48 = arith.constant 0 : index
    %c0_49 = arith.constant 0 : index
    %154 = vector.load %arg1[%153, %c0_48, %c0_49] : memref<8x8x512xf32, #tpu.memory_space<vmem>>, vector<1x8x512xf32>
    %155 = vector.shape_cast %154 : vector<1x8x512xf32> to vector<8x512xf32>
    %c0_50 = arith.constant 0 : index
    %c0_51 = arith.constant 0 : index
    %156 = vector.load %arg2[%c0_50, %c0_51] : memref<128x512xf32, #tpu.memory_space<vmem>>, vector<128x512xf32>
    %cst_52 = arith.constant dense<0.000000e+00> : vector<8x512xf32>
    %157 = tpu.matmul %146, %156, %cst_52 {dimension_numbers = #tpu.dot_dimension_numbers<[1], [0], [0], [1], [0, 0, 1, 1], [], []>} : vector<8x128xf32>, vector<128x512xf32>, vector<8x512xf32> -> vector<8x512xf32>
    %158 = arith.addf %155, %157 : vector<8x512xf32>
    %159 = vector.extract_strided_slice %158 {offsets = [0, 0], sizes = [8, 128], strides = [1, 1]} : vector<8x512xf32> to vector<8x128xf32>
    %160 = arith.negf %159 : vector<8x128xf32>
    %161 = math.exp %160 : vector<8x128xf32>
    %cst_53 = arith.constant 1.000000e+00 : f32
    %162 = vector.broadcast %cst_53 : f32 to vector<8x128xf32>
    %163 = arith.addf %162, %161 : vector<8x128xf32>
    %164 = arith.divf %162, %163 : vector<8x128xf32>
    %165 = vector.extract_strided_slice %158 {offsets = [0, 128], sizes = [8, 128], strides = [1, 1]} : vector<8x512xf32> to vector<8x128xf32>
    %166 = arith.negf %165 : vector<8x128xf32>
    %167 = math.exp %166 : vector<8x128xf32>
    %cst_54 = arith.constant 1.000000e+00 : f32
    %168 = vector.broadcast %cst_54 : f32 to vector<8x128xf32>
    %169 = arith.addf %168, %167 : vector<8x128xf32>
    %170 = arith.divf %168, %169 : vector<8x128xf32>
    %171 = vector.extract_strided_slice %158 {offsets = [0, 256], sizes = [8, 128], strides = [1, 1]} : vector<8x512xf32> to vector<8x128xf32>
    %172 = math.tanh %171 : vector<8x128xf32>
    %173 = vector.extract_strided_slice %158 {offsets = [0, 384], sizes = [8, 128], strides = [1, 1]} : vector<8x512xf32> to vector<8x128xf32>
    %174 = arith.negf %173 : vector<8x128xf32>
    %175 = math.exp %174 : vector<8x128xf32>
    %cst_55 = arith.constant 1.000000e+00 : f32
    %176 = vector.broadcast %cst_55 : f32 to vector<8x128xf32>
    %177 = arith.addf %176, %175 : vector<8x128xf32>
    %178 = arith.divf %176, %177 : vector<8x128xf32>
    %179 = arith.mulf %170, %144 : vector<8x128xf32>
    %180 = arith.mulf %164, %172 : vector<8x128xf32>
    %181 = arith.addf %179, %180 : vector<8x128xf32>
    %182 = math.tanh %181 : vector<8x128xf32>
    %183 = arith.mulf %178, %182 : vector<8x128xf32>
    %cst_56 = arith.constant 0.000000e+00 : f32
    %184 = vector.broadcast %cst_56 : f32 to vector<8x128xf32>
    %185 = arith.maximumf %183, %184 : vector<8x128xf32>
    %186 = arith.index_cast %c4_i32 : i32 to index
    %c0_57 = arith.constant 0 : index
    %c0_58 = arith.constant 0 : index
    %187 = vector.load %arg3[%186, %c0_57, %c0_58] : memref<8x8x128xf32, #tpu.memory_space<vmem>>, vector<1x8x128xf32>
    %188 = vector.shape_cast %187 : vector<1x8x128xf32> to vector<8x128xf32>
    %189 = vector.shape_cast %185 : vector<8x128xf32> to vector<1x8x128xf32>
    tpu.vector_store %arg3[%186, %c0_57, %c0_58], %189 {strides = array<i32>} : memref<8x8x128xf32, #tpu.memory_space<vmem>>, vector<1x8x128xf32>,
    %c5_i32 = arith.constant 5 : i32
    %190 = arith.index_cast %c5_i32 : i32 to index
    %c0_59 = arith.constant 0 : index
    %c0_60 = arith.constant 0 : index
    %191 = vector.load %arg1[%190, %c0_59, %c0_60] : memref<8x8x512xf32, #tpu.memory_space<vmem>>, vector<1x8x512xf32>
    %192 = vector.shape_cast %191 : vector<1x8x512xf32> to vector<8x512xf32>
    %c0_61 = arith.constant 0 : index
    %c0_62 = arith.constant 0 : index
    %193 = vector.load %arg2[%c0_61, %c0_62] : memref<128x512xf32, #tpu.memory_space<vmem>>, vector<128x512xf32>
    %cst_63 = arith.constant dense<0.000000e+00> : vector<8x512xf32>
    %194 = tpu.matmul %183, %193, %cst_63 {dimension_numbers = #tpu.dot_dimension_numbers<[1], [0], [0], [1], [0, 0, 1, 1], [], []>} : vector<8x128xf32>, vector<128x512xf32>, vector<8x512xf32> -> vector<8x512xf32>
    %195 = arith.addf %192, %194 : vector<8x512xf32>
    %196 = vector.extract_strided_slice %195 {offsets = [0, 0], sizes = [8, 128], strides = [1, 1]} : vector<8x512xf32> to vector<8x128xf32>
    %197 = arith.negf %196 : vector<8x128xf32>
    %198 = math.exp %197 : vector<8x128xf32>
    %cst_64 = arith.constant 1.000000e+00 : f32
    %199 = vector.broadcast %cst_64 : f32 to vector<8x128xf32>
    %200 = arith.addf %199, %198 : vector<8x128xf32>
    %201 = arith.divf %199, %200 : vector<8x128xf32>
    %202 = vector.extract_strided_slice %195 {offsets = [0, 128], sizes = [8, 128], strides = [1, 1]} : vector<8x512xf32> to vector<8x128xf32>
    %203 = arith.negf %202 : vector<8x128xf32>
    %204 = math.exp %203 : vector<8x128xf32>
    %cst_65 = arith.constant 1.000000e+00 : f32
    %205 = vector.broadcast %cst_65 : f32 to vector<8x128xf32>
    %206 = arith.addf %205, %204 : vector<8x128xf32>
    %207 = arith.divf %205, %206 : vector<8x128xf32>
    %208 = vector.extract_strided_slice %195 {offsets = [0, 256], sizes = [8, 128], strides = [1, 1]} : vector<8x512xf32> to vector<8x128xf32>
    %209 = math.tanh %208 : vector<8x128xf32>
    %210 = vector.extract_strided_slice %195 {offsets = [0, 384], sizes = [8, 128], strides = [1, 1]} : vector<8x512xf32> to vector<8x128xf32>
    %211 = arith.negf %210 : vector<8x128xf32>
    %212 = math.exp %211 : vector<8x128xf32>
    %cst_66 = arith.constant 1.000000e+00 : f32
    %213 = vector.broadcast %cst_66 : f32 to vector<8x128xf32>
    %214 = arith.addf %213, %212 : vector<8x128xf32>
    %215 = arith.divf %213, %214 : vector<8x128xf32>
    %216 = arith.mulf %207, %181 : vector<8x128xf32>
    %217 = arith.mulf %201, %209 : vector<8x128xf32>
    %218 = arith.addf %216, %217 : vector<8x128xf32>
    %219 = math.tanh %218 : vector<8x128xf32>
    %220 = arith.mulf %215, %219 : vector<8x128xf32>
    %cst_67 = arith.constant 0.000000e+00 : f32
    %221 = vector.broadcast %cst_67 : f32 to vector<8x128xf32>
    %222 = arith.maximumf %220, %221 : vector<8x128xf32>
    %223 = arith.index_cast %c5_i32 : i32 to index
    %c0_68 = arith.constant 0 : index
    %c0_69 = arith.constant 0 : index
    %224 = vector.load %arg3[%223, %c0_68, %c0_69] : memref<8x8x128xf32, #tpu.memory_space<vmem>>, vector<1x8x128xf32>
    %225 = vector.shape_cast %224 : vector<1x8x128xf32> to vector<8x128xf32>
    %226 = vector.shape_cast %222 : vector<8x128xf32> to vector<1x8x128xf32>
    tpu.vector_store %arg3[%223, %c0_68, %c0_69], %226 {strides = array<i32>} : memref<8x8x128xf32, #tpu.memory_space<vmem>>, vector<1x8x128xf32>,
    %c6_i32 = arith.constant 6 : i32
    %227 = arith.index_cast %c6_i32 : i32 to index
    %c0_70 = arith.constant 0 : index
    %c0_71 = arith.constant 0 : index
    %228 = vector.load %arg1[%227, %c0_70, %c0_71] : memref<8x8x512xf32, #tpu.memory_space<vmem>>, vector<1x8x512xf32>
    %229 = vector.shape_cast %228 : vector<1x8x512xf32> to vector<8x512xf32>
    %c0_72 = arith.constant 0 : index
    %c0_73 = arith.constant 0 : index
    %230 = vector.load %arg2[%c0_72, %c0_73] : memref<128x512xf32, #tpu.memory_space<vmem>>, vector<128x512xf32>
    %cst_74 = arith.constant dense<0.000000e+00> : vector<8x512xf32>
    %231 = tpu.matmul %220, %230, %cst_74 {dimension_numbers = #tpu.dot_dimension_numbers<[1], [0], [0], [1], [0, 0, 1, 1], [], []>} : vector<8x128xf32>, vector<128x512xf32>, vector<8x512xf32> -> vector<8x512xf32>
    %232 = arith.addf %229, %231 : vector<8x512xf32>
    %233 = vector.extract_strided_slice %232 {offsets = [0, 0], sizes = [8, 128], strides = [1, 1]} : vector<8x512xf32> to vector<8x128xf32>
    %234 = arith.negf %233 : vector<8x128xf32>
    %235 = math.exp %234 : vector<8x128xf32>
    %cst_75 = arith.constant 1.000000e+00 : f32
    %236 = vector.broadcast %cst_75 : f32 to vector<8x128xf32>
    %237 = arith.addf %236, %235 : vector<8x128xf32>
    %238 = arith.divf %236, %237 : vector<8x128xf32>
    %239 = vector.extract_strided_slice %232 {offsets = [0, 128], sizes = [8, 128], strides = [1, 1]} : vector<8x512xf32> to vector<8x128xf32>
    %240 = arith.negf %239 : vector<8x128xf32>
    %241 = math.exp %240 : vector<8x128xf32>
    %cst_76 = arith.constant 1.000000e+00 : f32
    %242 = vector.broadcast %cst_76 : f32 to vector<8x128xf32>
    %243 = arith.addf %242, %241 : vector<8x128xf32>
    %244 = arith.divf %242, %243 : vector<8x128xf32>
    %245 = vector.extract_strided_slice %232 {offsets = [0, 256], sizes = [8, 128], strides = [1, 1]} : vector<8x512xf32> to vector<8x128xf32>
    %246 = math.tanh %245 : vector<8x128xf32>
    %247 = vector.extract_strided_slice %232 {offsets = [0, 384], sizes = [8, 128], strides = [1, 1]} : vector<8x512xf32> to vector<8x128xf32>
    %248 = arith.negf %247 : vector<8x128xf32>
    %249 = math.exp %248 : vector<8x128xf32>
    %cst_77 = arith.constant 1.000000e+00 : f32
    %250 = vector.broadcast %cst_77 : f32 to vector<8x128xf32>
    %251 = arith.addf %250, %249 : vector<8x128xf32>
    %252 = arith.divf %250, %251 : vector<8x128xf32>
    %253 = arith.mulf %244, %218 : vector<8x128xf32>
    %254 = arith.mulf %238, %246 : vector<8x128xf32>
    %255 = arith.addf %253, %254 : vector<8x128xf32>
    %256 = math.tanh %255 : vector<8x128xf32>
    %257 = arith.mulf %252, %256 : vector<8x128xf32>
    %cst_78 = arith.constant 0.000000e+00 : f32
    %258 = vector.broadcast %cst_78 : f32 to vector<8x128xf32>
    %259 = arith.maximumf %257, %258 : vector<8x128xf32>
    %260 = arith.index_cast %c6_i32 : i32 to index
    %c0_79 = arith.constant 0 : index
    %c0_80 = arith.constant 0 : index
    %261 = vector.load %arg3[%260, %c0_79, %c0_80] : memref<8x8x128xf32, #tpu.memory_space<vmem>>, vector<1x8x128xf32>
    %262 = vector.shape_cast %261 : vector<1x8x128xf32> to vector<8x128xf32>
    %263 = vector.shape_cast %259 : vector<8x128xf32> to vector<1x8x128xf32>
    tpu.vector_store %arg3[%260, %c0_79, %c0_80], %263 {strides = array<i32>} : memref<8x8x128xf32, #tpu.memory_space<vmem>>, vector<1x8x128xf32>,
    %c7_i32 = arith.constant 7 : i32
    %264 = arith.index_cast %c7_i32 : i32 to index
    %c0_81 = arith.constant 0 : index
    %c0_82 = arith.constant 0 : index
    %265 = vector.load %arg1[%264, %c0_81, %c0_82] : memref<8x8x512xf32, #tpu.memory_space<vmem>>, vector<1x8x512xf32>
    %266 = vector.shape_cast %265 : vector<1x8x512xf32> to vector<8x512xf32>
    %c0_83 = arith.constant 0 : index
    %c0_84 = arith.constant 0 : index
    %267 = vector.load %arg2[%c0_83, %c0_84] : memref<128x512xf32, #tpu.memory_space<vmem>>, vector<128x512xf32>
    %cst_85 = arith.constant dense<0.000000e+00> : vector<8x512xf32>
    %268 = tpu.matmul %257, %267, %cst_85 {dimension_numbers = #tpu.dot_dimension_numbers<[1], [0], [0], [1], [0, 0, 1, 1], [], []>} : vector<8x128xf32>, vector<128x512xf32>, vector<8x512xf32> -> vector<8x512xf32>
    %269 = arith.addf %266, %268 : vector<8x512xf32>
    %270 = vector.extract_strided_slice %269 {offsets = [0, 0], sizes = [8, 128], strides = [1, 1]} : vector<8x512xf32> to vector<8x128xf32>
    %271 = arith.negf %270 : vector<8x128xf32>
    %272 = math.exp %271 : vector<8x128xf32>
    %cst_86 = arith.constant 1.000000e+00 : f32
    %273 = vector.broadcast %cst_86 : f32 to vector<8x128xf32>
    %274 = arith.addf %273, %272 : vector<8x128xf32>
    %275 = arith.divf %273, %274 : vector<8x128xf32>
    %276 = vector.extract_strided_slice %269 {offsets = [0, 128], sizes = [8, 128], strides = [1, 1]} : vector<8x512xf32> to vector<8x128xf32>
    %277 = arith.negf %276 : vector<8x128xf32>
    %278 = math.exp %277 : vector<8x128xf32>
    %cst_87 = arith.constant 1.000000e+00 : f32
    %279 = vector.broadcast %cst_87 : f32 to vector<8x128xf32>
    %280 = arith.addf %279, %278 : vector<8x128xf32>
    %281 = arith.divf %279, %280 : vector<8x128xf32>
    %282 = vector.extract_strided_slice %269 {offsets = [0, 256], sizes = [8, 128], strides = [1, 1]} : vector<8x512xf32> to vector<8x128xf32>
    %283 = math.tanh %282 : vector<8x128xf32>
    %284 = vector.extract_strided_slice %269 {offsets = [0, 384], sizes = [8, 128], strides = [1, 1]} : vector<8x512xf32> to vector<8x128xf32>
    %285 = arith.negf %284 : vector<8x128xf32>
    %286 = math.exp %285 : vector<8x128xf32>
    %cst_88 = arith.constant 1.000000e+00 : f32
    %287 = vector.broadcast %cst_88 : f32 to vector<8x128xf32>
    %288 = arith.addf %287, %286 : vector<8x128xf32>
    %289 = arith.divf %287, %288 : vector<8x128xf32>
    %290 = arith.mulf %281, %255 : vector<8x128xf32>
    %291 = arith.mulf %275, %283 : vector<8x128xf32>
    %292 = arith.addf %290, %291 : vector<8x128xf32>
    %293 = math.tanh %292 : vector<8x128xf32>
    %294 = arith.mulf %289, %293 : vector<8x128xf32>
    %cst_89 = arith.constant 0.000000e+00 : f32
    %295 = vector.broadcast %cst_89 : f32 to vector<8x128xf32>
    %296 = arith.maximumf %294, %295 : vector<8x128xf32>
    %297 = arith.index_cast %c7_i32 : i32 to index
    %c0_90 = arith.constant 0 : index
    %c0_91 = arith.constant 0 : index
    %298 = vector.load %arg3[%297, %c0_90, %c0_91] : memref<8x8x128xf32, #tpu.memory_space<vmem>>, vector<1x8x128xf32>
    %299 = vector.shape_cast %298 : vector<1x8x128xf32> to vector<8x128xf32>
    %300 = vector.shape_cast %296 : vector<8x128xf32> to vector<1x8x128xf32>
    tpu.vector_store %arg3[%297, %c0_90, %c0_91], %300 {strides = array<i32>} : memref<8x8x128xf32, #tpu.memory_space<vmem>>, vector<1x8x128xf32>,
    %c8_i32 = arith.constant 8 : i32
    %c0_92 = arith.constant 0 : index
    %c0_93 = arith.constant 0 : index
    %301 = vector.load %arg4[%c0_92, %c0_93] : memref<8x128xf32, #tpu.memory_space<vmem>>, vector<8x128xf32>
    tpu.vector_store %arg4[%c0_92, %c0_93], %294 {strides = array<i32>} : memref<8x128xf32, #tpu.memory_space<vmem>>, vector<8x128xf32>,
    %c0_94 = arith.constant 0 : index
    %c0_95 = arith.constant 0 : index
    %302 = vector.load %arg5[%c0_94, %c0_95] : memref<8x128xf32, #tpu.memory_space<vmem>>, vector<8x128xf32>
    tpu.vector_store %arg5[%c0_94, %c0_95], %292 {strides = array<i32>} : memref<8x128xf32, #tpu.memory_space<vmem>>, vector<8x128xf32>,
    return
  }
  func.func @transform_0(%arg0: i32) -> (i32, i32, i32) {
    %c0_i32 = arith.constant 0 : i32
    %c0_i32_0 = arith.constant 0 : i32
    %c0_i32_1 = arith.constant 0 : i32
    return %arg0, %c0_i32, %c0_i32_0 : i32, i32, i32
  }
  func.func @transform_1(%arg0: i32) -> (i32, i32) {
    %c0_i32 = arith.constant 0 : i32
    %c0_i32_0 = arith.constant 0 : i32
    %c0_i32_1 = arith.constant 0 : i32
    return %c0_i32, %c0_i32_0 : i32, i32
  }
  func.func @transform_2(%arg0: i32) -> (i32, i32, i32) {
    %c0_i32 = arith.constant 0 : i32
    %c0_i32_0 = arith.constant 0 : i32
    %c0_i32_1 = arith.constant 0 : i32
    return %arg0, %c0_i32, %c0_i32_0 : i32, i32, i32
  }
}

</mosaic_0001>

<llo_original>
// kernel: net_forward.2
$region0: #{net_forward.2}
  #allocation0 [shape = 'u32[]', space=smem, size = 0x4, offset = 0x4, fixed_abs, tag = 'smem constant byte address 0x4 - core index']
  #allocation1 [shape = 'u32[144,128]{1,0:T(1,128)}', space=vmem, size = 0x12000, scoped, tag = 'internal scratch']
  #allocation2 [shape = 'f32[64,512]{1,0:T(8,128)}', space=vmem, size = 0x20000, scoped, tag = 'scratch operand']
  %s0 = inlined_call_operand.vmem [shape: f32[64,256], index: 0, kind: input, shape index: {}]
  %s1 = inlined_call_operand.vmem [shape: f32[256,512], index: 1, kind: input, shape index: {}]
  %s2 = inlined_call_operand.vmem [shape: f32[1,512], index: 2, kind: input, shape index: {}]
  %s3 = inlined_call_operand.vmem [shape: f32[64,512], index: 3, kind: output, shape index: {}]
  %s4 = sld [smem:[#allocation0]]
  $region30: #{net_forward.2} parent=0
    _
  %s6 = ssub.s32 1, %s4
  %s7 = scalar_select 0, %s6, %s4
  // Predicated region
  $region2: #{net_forward.2} parent=0 // pred_check
    _
  $region3: #{net_forward.2} parent=0 // pred_check_branch
    %9 = sbr.rel (0) target = $region5
  $region4: #{net_forward.2} parent=0 // pred_region
    _
  $region5: #{net_forward.2} parent=0 // pred_fallthru
    _
  // Predicated region
  $region6: #{net_forward.2} parent=0 // pred_check
    _
  $region7: #{net_forward.2} parent=0 // pred_check_branch
    %11 = sbr.rel (0) target = $region9
  $region8: #{net_forward.2} parent=0 // pred_region
    _
  $region9: #{net_forward.2} parent=0 // pred_fallthru
    _
  // Predicated region
  $region10: #{net_forward.2} parent=0 // pred_check
    _
  $region11: #{net_forward.2} parent=0 // pred_check_branch
    %13 = sbr.rel (0) target = $region13
  $region12: #{net_forward.2} parent=0 // pred_region
    _
  $region13: #{net_forward.2} parent=0 // pred_fallthru
    _
  %p14 = scmp.eq.s32.totalorder 0, 0
  // Predicated region
  $region14: #{net_forward.2} parent=0 // pred_check
    %p15 = pneg %p14
  $region15: #{net_forward.2} parent=0 // pred_check_branch
    %17 = sbr.rel (%p15) target = $region17
  $region16: #{net_forward.2} parent=0 // pred_region
    %18 = vst [vmem:[#allocation2] sm:$0xff] 0.0
    %19 = vst [vmem:[#allocation2 + $0x8] sm:$0xff] 0.0
    %20 = vst [vmem:[#allocation2 + $0x10] sm:$0xff] 0.0
    %21 = vst [vmem:[#allocation2 + $0x18] sm:$0xff] 0.0
    %22 = vst [vmem:[#allocation2 + $0x20] sm:$0xff] 0.0
    %23 = vst [vmem:[#allocation2 + $0x28] sm:$0xff] 0.0
    %24 = vst [vmem:[#allocation2 + $0x30] sm:$0xff] 0.0
    %25 = vst [vmem:[#allocation2 + $0x38] sm:$0xff] 0.0
    %26 = vst [vmem:[#allocation2 + $0x40] sm:$0xff] 0.0
    %27 = vst [vmem:[#allocation2 + $0x48] sm:$0xff] 0.0
    %28 = vst [vmem:[#allocation2 + $0x50] sm:$0xff] 0.0
    %29 = vst [vmem:[#allocation2 + $0x58] sm:$0xff] 0.0
    %30 = vst [vmem:[#allocation2 + $0x60] sm:$0xff] 0.0
    %31 = vst [vmem:[#allocation2 + $0x68] sm:$0xff] 0.0
    %32 = vst [vmem:[#allocation2 + $0x70] sm:$0xff] 0.0
    %33 = vst [vmem:[#allocation2 + $0x78] sm:$0xff] 0.0
    %34 = vst [vmem:[#allocation2 + $0x80] sm:$0xff] 0.0
    %35 = vst [vmem:[#allocation2 + $0x88] sm:$0xff] 0.0
    %36 = vst [vmem:[#allocation2 + $0x90] sm:$0xff] 0.0
    %37 = vst [vmem:[#allocation2 + $0x98] sm:$0xff] 0.0
    %38 = vst [vmem:[#allocation2 + $0xa0] sm:$0xff] 0.0
    %39 = vst [vmem:[#allocation2 + $0xa8] sm:$0xff] 0.0
    %40 = vst [vmem:[#allocation2 + $0xb0] sm:$0xff] 0.0
    %41 = vst [vmem:[#allocation2 + $0xb8] sm:$0xff] 0.0
    %42 = vst [vmem:[#allocation2 + $0xc0] sm:$0xff] 0.0
    %43 = vst [vmem:[#allocation2 + $0xc8] sm:$0xff] 0.0
    %44 = vst [vmem:[#allocation2 + $0xd0] sm:$0xff] 0.0
    %45 = vst [vmem:[#allocation2 + $0xd8] sm:$0xff] 0.0
    %46 = vst [vmem:[#allocation2 + $0xe0] sm:$0xff] 0.0
    %47 = vst [vmem:[#allocation2 + $0xe8] sm:$0xff] 0.0
    %48 = vst [vmem:[#allocation2 + $0xf0] sm:$0xff] 0.0
    %49 = vst [vmem:[#allocation2 + $0xf8] sm:$0xff] 0.0
  $region17: #{net_forward.2} parent=0 // pred_fallthru
    _
  %v50 = vld [vmem:[#allocation2] sm:$0xff]
  %v51 = vld [vmem:[#allocation2 + $0x8] sm:$0xff]
  %v52 = vld [vmem:[#allocation2 + $0x10] sm:$0xff]
  %v53 = vld [vmem:[#allocation2 + $0x18] sm:$0xff]
  %v54 = vld [vmem:[#allocation2 + $0x20] sm:$0xff]
  %v55 = vld [vmem:[#allocation2 + $0x28] sm:$0xff]
  %v56 = vld [vmem:[#allocation2 + $0x30] sm:$0xff]
  %v57 = vld [vmem:[#allocation2 + $0x38] sm:$0xff]
  %v58 = vld [vmem:[#allocation2 + $0x40] sm:$0xff]
  %v59 = vld [vmem:[#allocation2 + $0x48] sm:$0xff]
  %v60 = vld [vmem:[#allocation2 + $0x50] sm:$0xff]
  %v61 = vld [vmem:[#allocation2 + $0x58] sm:$0xff]
  %v62 = vld [vmem:[#allocation2 + $0x60] sm:$0xff]
  %v63 = vld [vmem:[#allocation2 + $0x68] sm:$0xff]
  %v64 = vld [vmem:[#allocation2 + $0x70] sm:$0xff]
  %v65 = vld [vmem:[#allocation2 + $0x78] sm:$0xff]
  %v66 = vld [vmem:[#allocation2 + $0x80] sm:$0xff]
  %v67 = vld [vmem:[#allocation2 + $0x88] sm:$0xff]
  %v68 = vld [vmem:[#allocation2 + $0x90] sm:$0xff]
  %v69 = vld [vmem:[#allocation2 + $0x98] sm:$0xff]
  %v70 = vld [vmem:[#allocation2 + $0xa0] sm:$0xff]
  %v71 = vld [vmem:[#allocation2 + $0xa8] sm:$0xff]
  %v72 = vld [vmem:[#allocation2 + $0xb0] sm:$0xff]
  %v73 = vld [vmem:[#allocation2 + $0xb8] sm:$0xff]
  %v74 = vld [vmem:[#allocation2 + $0xc0] sm:$0xff]
  %v75 = vld [vmem:[#allocation2 + $0xc8] sm:$0xff]
  %v76 = vld [vmem:[#allocation2 + $0xd0] sm:$0xff]
  %v77 = vld [vmem:[#allocation2 + $0xd8] sm:$0xff]
  %v78 = vld [vmem:[#allocation2 + $0xe0] sm:$0xff]
  %v79 = vld [vmem:[#allocation2 + $0xe8] sm:$0xff]
  %v80 = vld [vmem:[#allocation2 + $0xf0] sm:$0xff]
  %v81 = vld [vmem:[#allocation2 + $0xf8] sm:$0xff]
  %v82 = vld [vmem:[%s0] sm:$0xff]
  %v83 = vld [vmem:[%s0 + $0x8] sm:$0xff]
  %v84 = vld [vmem:[%s0 + $0x10] sm:$0xff]
  %v85 = vld [vmem:[%s0 + $0x18] sm:$0xff]
  %v86 = vld [vmem:[%s0 + $0x20] sm:$0xff]
  %v87 = vld [vmem:[%s0 + $0x28] sm:$0xff]
  %v88 = vld [vmem:[%s0 + $0x30] sm:$0xff]
  %v89 = vld [vmem:[%s0 + $0x38] sm:$0xff]
  %v90 = vld [vmem:[%s0 + $0x40] sm:$0xff]
  %v91 = vld [vmem:[%s0 + $0x48] sm:$0xff]
  %v92 = vld [vmem:[%s0 + $0x50] sm:$0xff]
  %v93 = vld [vmem:[%s0 + $0x58] sm:$0xff]
  %v94 = vld [vmem:[%s0 + $0x60] sm:$0xff]
  %v95 = vld [vmem:[%s0 + $0x68] sm:$0xff]
  %v96 = vld [vmem:[%s0 + $0x70] sm:$0xff]
  %v97 = vld [vmem:[%s0 + $0x78] sm:$0xff]
  %v98 = vld [vmem:[%s1] sm:$0xff]
  %v99 = vld [vmem:[%s1 + $0x8] sm:$0xff]
  %v100 = vld [vmem:[%s1 + $0x10] sm:$0xff]
  %v101 = vld [vmem:[%s1 + $0x18] sm:$0xff]
  %v102 = vld [vmem:[%s1 + $0x20] sm:$0xff]
  %v103 = vld [vmem:[%s1 + $0x28] sm:$0xff]
  %v104 = vld [vmem:[%s1 + $0x30] sm:$0xff]
  %v105 = vld [vmem:[%s1 + $0x38] sm:$0xff]
  %v106 = vld [vmem:[%s1 + $0x40] sm:$0xff]
  %v107 = vld [vmem:[%s1 + $0x48] sm:$0xff]
  %v108 = vld [vmem:[%s1 + $0x50] sm:$0xff]
  %v109 = vld [vmem:[%s1 + $0x58] sm:$0xff]
  %v110 = vld [vmem:[%s1 + $0x60] sm:$0xff]
  %v111 = vld [vmem:[%s1 + $0x68] sm:$0xff]
  %v112 = vld [vmem:[%s1 + $0x70] sm:$0xff]
  %v113 = vld [vmem:[%s1 + $0x78] sm:$0xff]
  %v114 = vld [vmem:[%s1 + $0x80] sm:$0xff]
  %v115 = vld [vmem:[%s1 + $0x88] sm:$0xff]
  %v116 = vld [vmem:[%s1 + $0x90] sm:$0xff]
  %v117 = vld [vmem:[%s1 + $0x98] sm:$0xff]
  %v118 = vld [vmem:[%s1 + $0xa0] sm:$0xff]
  %v119 = vld [vmem:[%s1 + $0xa8] sm:$0xff]
  %v120 = vld [vmem:[%s1 + $0xb0] sm:$0xff]
  %v121 = vld [vmem:[%s1 + $0xb8] sm:$0xff]
  %v122 = vld [vmem:[%s1 + $0xc0] sm:$0xff]
  %v123 = vld [vmem:[%s1 + $0xc8] sm:$0xff]
  %v124 = vld [vmem:[%s1 + $0xd0] sm:$0xff]
  %v125 = vld [vmem:[%s1 + $0xd8] sm:$0xff]
  %v126 = vld [vmem:[%s1 + $0xe0] sm:$0xff]
  %v127 = vld [vmem:[%s1 + $0xe8] sm:$0xff]
  %v128 = vld [vmem:[%s1 + $0xf0] sm:$0xff]
  %v129 = vld [vmem:[%s1 + $0xf8] sm:$0xff]
  %v130 = vld [vmem:[%s1 + $0x100] sm:$0xff]
  %v131 = vld [vmem:[%s1 + $0x108] sm:$0xff]
  %v132 = vld [vmem:[%s1 + $0x110] sm:$0xff]
  %v133 = vld [vmem:[%s1 + $0x118] sm:$0xff]
  %v134 = vld [vmem:[%s1 + $0x120] sm:$0xff]
  %v135 = vld [vmem:[%s1 + $0x128] sm:$0xff]
  %v136 = vld [vmem:[%s1 + $0x130] sm:$0xff]
  %v137 = vld [vmem:[%s1 + $0x138] sm:$0xff]
  %v138 = vld [vmem:[%s1 + $0x140] sm:$0xff]
  %v139 = vld [vmem:[%s1 + $0x148] sm:$0xff]
  %v140 = vld [vmem:[%s1 + $0x150] sm:$0xff]
  %v141 = vld [vmem:[%s1 + $0x158] sm:$0xff]
  %v142 = vld [vmem:[%s1 + $0x160] sm:$0xff]
  %v143 = vld [vmem:[%s1 + $0x168] sm:$0xff]
  %v144 = vld [vmem:[%s1 + $0x170] sm:$0xff]
  %v145 = vld [vmem:[%s1 + $0x178] sm:$0xff]
  %v146 = vld [vmem:[%s1 + $0x180] sm:$0xff]
  %v147 = vld [vmem:[%s1 + $0x188] sm:$0xff]
  %v148 = vld [vmem:[%s1 + $0x190] sm:$0xff]
  %v149 = vld [vmem:[%s1 + $0x198] sm:$0xff]
  %v150 = vld [vmem:[%s1 + $0x1a0] sm:$0xff]
  %v151 = vld [vmem:[%s1 + $0x1a8] sm:$0xff]
  %v152 = vld [vmem:[%s1 + $0x1b0] sm:$0xff]
  %v153 = vld [vmem:[%s1 + $0x1b8] sm:$0xff]
  %v154 = vld [vmem:[%s1 + $0x1c0] sm:$0xff]
  %v155 = vld [vmem:[%s1 + $0x1c8] sm:$0xff]
  %v156 = vld [vmem:[%s1 + $0x1d0] sm:$0xff]
  %v157 = vld [vmem:[%s1 + $0x1d8] sm:$0xff]
  %v158 = vld [vmem:[%s1 + $0x1e0] sm:$0xff]
  %v159 = vld [vmem:[%s1 + $0x1e8] sm:$0xff]
  %v160 = vld [vmem:[%s1 + $0x1f0] sm:$0xff]
  %v161 = vld [vmem:[%s1 + $0x1f8] sm:$0xff]
  %v162 = vld [vmem:[%s1 + $0x200] sm:$0xff]
  %v163 = vld [vmem:[%s1 + $0x208] sm:$0xff]
  %v164 = vld [vmem:[%s1 + $0x210] sm:$0xff]
  %v165 = vld [vmem:[%s1 + $0x218] sm:$0xff]
  %v166 = vld [vmem:[%s1 + $0x220] sm:$0xff]
  %v167 = vld [vmem:[%s1 + $0x228] sm:$0xff]
  %v168 = vld [vmem:[%s1 + $0x230] sm:$0xff]
  %v169 = vld [vmem:[%s1 + $0x238] sm:$0xff]
  %v170 = vld [vmem:[%s1 + $0x240] sm:$0xff]
  %v171 = vld [vmem:[%s1 + $0x248] sm:$0xff]
  %v172 = vld [vmem:[%s1 + $0x250] sm:$0xff]
  %v173 = vld [vmem:[%s1 + $0x258] sm:$0xff]
  %v174 = vld [vmem:[%s1 + $0x260] sm:$0xff]
  %v175 = vld [vmem:[%s1 + $0x268] sm:$0xff]
  %v176 = vld [vmem:[%s1 + $0x270] sm:$0xff]
  %v177 = vld [vmem:[%s1 + $0x278] sm:$0xff]
  %v178 = vld [vmem:[%s1 + $0x280] sm:$0xff]
  %v179 = vld [vmem:[%s1 + $0x288] sm:$0xff]
  %v180 = vld [vmem:[%s1 + $0x290] sm:$0xff]
  %v181 = vld [vmem:[%s1 + $0x298] sm:$0xff]
  %v182 = vld [vmem:[%s1 + $0x2a0] sm:$0xff]
  %v183 = vld [vmem:[%s1 + $0x2a8] sm:$0xff]
  %v184 = vld [vmem:[%s1 + $0x2b0] sm:$0xff]
  %v185 = vld [vmem:[%s1 + $0x2b8] sm:$0xff]
  %v186 = vld [vmem:[%s1 + $0x2c0] sm:$0xff]
  %v187 = vld [vmem:[%s1 + $0x2c8] sm:$0xff]
  %v188 = vld [vmem:[%s1 + $0x2d0] sm:$0xff]
  %v189 = vld [vmem:[%s1 + $0x2d8] sm:$0xff]
  %v190 = vld [vmem:[%s1 + $0x2e0] sm:$0xff]
  %v191 = vld [vmem:[%s1 + $0x2e8] sm:$0xff]
  %v192 = vld [vmem:[%s1 + $0x2f0] sm:$0xff]
  %v193 = vld [vmem:[%s1 + $0x2f8] sm:$0xff]
  %v194 = vld [vmem:[%s1 + $0x300] sm:$0xff]
  %v195 = vld [vmem:[%s1 + $0x308] sm:$0xff]
  %v196 = vld [vmem:[%s1 + $0x310] sm:$0xff]
  %v197 = vld [vmem:[%s1 + $0x318] sm:$0xff]
  %v198 = vld [vmem:[%s1 + $0x320] sm:$0xff]
  %v199 = vld [vmem:[%s1 + $0x328] sm:$0xff]
  %v200 = vld [vmem:[%s1 + $0x330] sm:$0xff]
  %v201 = vld [vmem:[%s1 + $0x338] sm:$0xff]
  %v202 = vld [vmem:[%s1 + $0x340] sm:$0xff]
  %v203 = vld [vmem:[%s1 + $0x348] sm:$0xff]
  %v204 = vld [vmem:[%s1 + $0x350] sm:$0xff]
  %v205 = vld [vmem:[%s1 + $0x358] sm:$0xff]
  %v206 = vld [vmem:[%s1 + $0x360] sm:$0xff]
  %v207 = vld [vmem:[%s1 + $0x368] sm:$0xff]
  %v208 = vld [vmem:[%s1 + $0x370] sm:$0xff]
  %v209 = vld [vmem:[%s1 + $0x378] sm:$0xff]
  %v210 = vld [vmem:[%s1 + $0x380] sm:$0xff]
  %v211 = vld [vmem:[%s1 + $0x388] sm:$0xff]
  %v212 = vld [vmem:[%s1 + $0x390] sm:$0xff]
  %v213 = vld [vmem:[%s1 + $0x398] sm:$0xff]
  %v214 = vld [vmem:[%s1 + $0x3a0] sm:$0xff]
  %v215 = vld [vmem:[%s1 + $0x3a8] sm:$0xff]
  %v216 = vld [vmem:[%s1 + $0x3b0] sm:$0xff]
  %v217 = vld [vmem:[%s1 + $0x3b8] sm:$0xff]
  %v218 = vld [vmem:[%s1 + $0x3c0] sm:$0xff]
  %v219 = vld [vmem:[%s1 + $0x3c8] sm:$0xff]
  %v220 = vld [vmem:[%s1 + $0x3d0] sm:$0xff]
  %v221 = vld [vmem:[%s1 + $0x3d8] sm:$0xff]
  %v222 = vld [vmem:[%s1 + $0x3e0] sm:$0xff]
  %v223 = vld [vmem:[%s1 + $0x3e8] sm:$0xff]
  %v224 = vld [vmem:[%s1 + $0x3f0] sm:$0xff]
  %v225 = vld [vmem:[%s1 + $0x3f8] sm:$0xff]
  %226 = vmatprep.subr.mxu0 %v159
  %227 = vmatpush1.msra.mxu0 %v158
  %228 = vmatprep.subr.mxu0 %v155
  %229 = vmatpush1.msra.mxu0 %v154
  %230 = vmatprep.subr.mxu0 %v151
  %231 = vmatpush1.msra.mxu0 %v150
  %232 = vmatprep.subr.mxu0 %v147
  %233 = vmatpush1.msra.mxu0 %v146
  %234 = vmatprep.subr.mxu0 %v143
  %235 = vmatpush1.msra.mxu0 %v142
  %236 = vmatprep.subr.mxu0 %v139
  %237 = vmatpush1.msra.mxu0 %v138
  %238 = vmatprep.subr.mxu0 %v135
  %239 = vmatpush1.msra.mxu0 %v134
  %240 = vmatprep.subr.mxu0 %v131
  %241 = vmatpush1.msra.mxu0 %v130
  %242 = vmatprep.subr.mxu0 %v127
  %243 = vmatpush1.msra.mxu0 %v126
  %244 = vmatprep.subr.mxu0 %v123
  %245 = vmatpush1.msra.mxu0 %v122
  %246 = vmatprep.subr.mxu0 %v119
  %247 = vmatpush1.msra.mxu0 %v118
  %248 = vmatprep.subr.mxu0 %v115
  %249 = vmatpush1.msra.mxu0 %v114
  %250 = vmatprep.subr.mxu0 %v111
  %251 = vmatpush1.msra.mxu0 %v110
  %252 = vmatprep.subr.mxu0 %v107
  %253 = vmatpush1.msra.mxu0 %v106
  %254 = vmatprep.subr.mxu0 %v103
  %255 = vmatpush1.msra.mxu0 %v102
  %256 = vmatprep.subr.mxu0 %v99
  %257 = vmatpush1.msra.mxu0 %v98
  %258 = vmatprep.subr.mxu0 %v223
  %259 = vmatpush2.msra.mxu0 %v222
  %260 = vmatprep.subr.mxu0 %v219
  %261 = vmatpush2.msra.mxu0 %v218
  %262 = vmatprep.subr.mxu0 %v215
  %263 = vmatpush2.msra.mxu0 %v214
  %264 = vmatprep.subr.mxu0 %v211
  %265 = vmatpush2.msra.mxu0 %v210
  %266 = vmatprep.subr.mxu0 %v207
  %267 = vmatpush2.msra.mxu0 %v206
  %268 = vmatprep.subr.mxu0 %v203
  %269 = vmatpush2.msra.mxu0 %v202
  %270 = vmatprep.subr.mxu0 %v199
  %271 = vmatpush2.msra.mxu0 %v198
  %272 = vmatprep.subr.mxu0 %v195
  %273 = vmatpush2.msra.mxu0 %v194
  %274 = vmatprep.subr.mxu0 %v191
  %275 = vmatpush2.msra.mxu0 %v190
  %276 = vmatprep.subr.mxu0 %v187
  %277 = vmatpush2.msra.mxu0 %v186
  %278 = vmatprep.subr.mxu0 %v183
  %279 = vmatpush2.msra.mxu0 %v182
  %280 = vmatprep.subr.mxu0 %v179
  %281 = vmatpush2.msra.mxu0 %v178
  %282 = vmatprep.subr.mxu0 %v175
  %283 = vmatpush2.msra.mxu0 %v174
  %284 = vmatprep.subr.mxu0 %v171
  %285 = vmatpush2.msra.mxu0 %v170
  %286 = vmatprep.subr.mxu0 %v167
  %287 = vmatpush2.msra.mxu0 %v166
  %288 = vmatprep.subr.mxu0 %v163
  %289 = vmatpush2.msra.mxu0 %v162
  %290 = vmatprep.mubr.f32.mxu0 %v83
  %291 = vmatmul.mubr.f32.gmra.mxu0 %v82
  %v292 = vpop.f32.mrf.mxu0
  %v293 = vadd.f32 0.0, %v292
  %v294 = vpop.f32.mrf.mxu0
  %v295 = vadd.f32 0.0, %v294
  %296 = vmatprep.mubr.f32.mxu0 %v85
  %297 = vmatmul.mubr.f32.gmra.mxu0 %v84
  %v298 = vpop.f32.mrf.mxu0
  %v299 = vadd.f32 0.0, %v298
  %v300 = vpop.f32.mrf.mxu0
  %v301 = vadd.f32 0.0, %v300
  %302 = vmatprep.mubr.f32.mxu0 %v87
  %303 = vmatmul.mubr.f32.gmra.mxu0 %v86
  %v304 = vpop.f32.mrf.mxu0
  %v305 = vadd.f32 0.0, %v304
  %v306 = vpop.f32.mrf.mxu0
  %v307 = vadd.f32 0.0, %v306
  %308 = vmatprep.mubr.f32.mxu0 %v89
  %309 = vmatmul.mubr.f32.gmra.mxu0 %v88
  %v310 = vpop.f32.mrf.mxu0
  %v311 = vadd.f32 0.0, %v310
  %v312 = vpop.f32.mrf.mxu0
  %v313 = vadd.f32 0.0, %v312
  %314 = vmatprep.mubr.f32.mxu0 %v91
  %315 = vmatmul.mubr.f32.gmra.mxu0 %v90
  %v316 = vpop.f32.mrf.mxu0
  %v317 = vadd.f32 0.0, %v316
  %v318 = vpop.f32.mrf.mxu0
  %v319 = vadd.f32 0.0, %v318
  %320 = vmatprep.mubr.f32.mxu0 %v93
  %321 = vmatmul.mubr.f32.gmra.mxu0 %v92
  %v322 = vpop.f32.mrf.mxu0
  %v323 = vadd.f32 0.0, %v322
  %v324 = vpop.f32.mrf.mxu0
  %v325 = vadd.f32 0.0, %v324
  %326 = vmatprep.mubr.f32.mxu0 %v95
  %327 = vmatmul.mubr.f32.gmra.mxu0 %v94
  %v328 = vpop.f32.mrf.mxu0
  %v329 = vadd.f32 0.0, %v328
  %v330 = vpop.f32.mrf.mxu0
  %v331 = vadd.f32 0.0, %v330
  %332 = vmatprep.mubr.f32.mxu0 %v97
  %333 = vmatmul.mubr.f32.gmra.mxu0 %v96
  %v334 = vpop.f32.mrf.mxu0
  %v335 = vadd.f32 0.0, %v334
  %v336 = vpop.f32.mrf.mxu0
  %v337 = vadd.f32 0.0, %v336
  %338 = vdwg.mxu0
  %339 = vmatprep.subr.mxu0 %v161
  %340 = vmatpush1.msra.mxu0 %v160
  %341 = vmatprep.subr.mxu0 %v157
  %342 = vmatpush1.msra.mxu0 %v156
  %343 = vmatprep.subr.mxu0 %v153
  %344 = vmatpush1.msra.mxu0 %v152
  %345 = vmatprep.subr.mxu0 %v149
  %346 = vmatpush1.msra.mxu0 %v148
  %347 = vmatprep.subr.mxu0 %v145
  %348 = vmatpush1.msra.mxu0 %v144
  %349 = vmatprep.subr.mxu0 %v141
  %350 = vmatpush1.msra.mxu0 %v140
  %351 = vmatprep.subr.mxu0 %v137
  %352 = vmatpush1.msra.mxu0 %v136
  %353 = vmatprep.subr.mxu0 %v133
  %354 = vmatpush1.msra.mxu0 %v132
  %355 = vmatprep.subr.mxu0 %v129
  %356 = vmatpush1.msra.mxu0 %v128
  %357 = vmatprep.subr.mxu0 %v125
  %358 = vmatpush1.msra.mxu0 %v124
  %359 = vmatprep.subr.mxu0 %v121
  %360 = vmatpush1.msra.mxu0 %v120
  %361 = vmatprep.subr.mxu0 %v117
  %362 = vmatpush1.msra.mxu0 %v116
  %363 = vmatprep.subr.mxu0 %v113
  %364 = vmatpush1.msra.mxu0 %v112
  %365 = vmatprep.subr.mxu0 %v109
  %366 = vmatpush1.msra.mxu0 %v108
  %367 = vmatprep.subr.mxu0 %v105
  %368 = vmatpush1.msra.mxu0 %v104
  %369 = vmatprep.subr.mxu0 %v101
  %370 = vmatpush1.msra.mxu0 %v100
  %371 = vmatprep.subr.mxu0 %v225
  %372 = vmatpush2.msra.mxu0 %v224
  %373 = vmatprep.subr.mxu0 %v221
  %374 = vmatpush2.msra.mxu0 %v220
  %375 = vmatprep.subr.mxu0 %v217
  %376 = vmatpush2.msra.mxu0 %v216
  %377 = vmatprep.subr.mxu0 %v213
  %378 = vmatpush2.msra.mxu0 %v212
  %379 = vmatprep.subr.mxu0 %v209
  %380 = vmatpush2.msra.mxu0 %v208
  %381 = vmatprep.subr.mxu0 %v205
  %382 = vmatpush2.msra.mxu0 %v204
  %383 = vmatprep.subr.mxu0 %v201
  %384 = vmatpush2.msra.mxu0 %v200
  %385 = vmatprep.subr.mxu0 %v197
  %386 = vmatpush2.msra.mxu0 %v196
  %387 = vmatprep.subr.mxu0 %v193
  %388 = vmatpush2.msra.mxu0 %v192
  %389 = vmatprep.subr.mxu0 %v189
  %390 = vmatpush2.msra.mxu0 %v188
  %391 = vmatprep.subr.mxu0 %v185
  %392 = vmatpush2.msra.mxu0 %v184
  %393 = vmatprep.subr.mxu0 %v181
  %394 = vmatpush2.msra.mxu0 %v180
  %395 = vmatprep.subr.mxu0 %v177
  %396 = vmatpush2.msra.mxu0 %v176
  %397 = vmatprep.subr.mxu0 %v173
  %398 = vmatpush2.msra.mxu0 %v172
  %399 = vmatprep.subr.mxu0 %v169
  %400 = vmatpush2.msra.mxu0 %v168
  %401 = vmatprep.subr.mxu0 %v165
  %402 = vmatpush2.msra.mxu0 %v164
  %403 = vmatprep.mubr.f32.mxu0 %v83
  %404 = vmatmul.mubr.f32.gmra.mxu0 %v82
  %v405 = vpop.f32.mrf.mxu0
  %v406 = vadd.f32 0.0, %v405
  %v407 = vpop.f32.mrf.mxu0
  %v408 = vadd.f32 0.0, %v407
  %409 = vmatprep.mubr.f32.mxu0 %v85
  %410 = vmatmul.mubr.f32.gmra.mxu0 %v84
  %v411 = vpop.f32.mrf.mxu0
  %v412 = vadd.f32 0.0, %v411
  %v413 = vpop.f32.mrf.mxu0
  %v414 = vadd.f32 0.0, %v413
  %415 = vmatprep.mubr.f32.mxu0 %v87
  %416 = vmatmul.mubr.f32.gmra.mxu0 %v86
  %v417 = vpop.f32.mrf.mxu0
  %v418 = vadd.f32 0.0, %v417
  %v419 = vpop.f32.mrf.mxu0
  %v420 = vadd.f32 0.0, %v419
  %421 = vmatprep.mubr.f32.mxu0 %v89
  %422 = vmatmul.mubr.f32.gmra.mxu0 %v88
  %v423 = vpop.f32.mrf.mxu0
  %v424 = vadd.f32 0.0, %v423
  %v425 = vpop.f32.mrf.mxu0
  %v426 = vadd.f32 0.0, %v425
  %427 = vmatprep.mubr.f32.mxu0 %v91
  %428 = vmatmul.mubr.f32.gmra.mxu0 %v90
  %v429 = vpop.f32.mrf.mxu0
  %v430 = vadd.f32 0.0, %v429
  %v431 = vpop.f32.mrf.mxu0
  %v432 = vadd.f32 0.0, %v431
  %433 = vmatprep.mubr.f32.mxu0 %v93
  %434 = vmatmul.mubr.f32.gmra.mxu0 %v92
  %v435 = vpop.f32.mrf.mxu0
  %v436 = vadd.f32 0.0, %v435
  %v437 = vpop.f32.mrf.mxu0
  %v438 = vadd.f32 0.0, %v437
  %439 = vmatprep.mubr.f32.mxu0 %v95
  %440 = vmatmul.mubr.f32.gmra.mxu0 %v94
  %v441 = vpop.f32.mrf.mxu0
  %v442 = vadd.f32 0.0, %v441
  %v443 = vpop.f32.mrf.mxu0
  %v444 = vadd.f32 0.0, %v443
  %445 = vmatprep.mubr.f32.mxu0 %v97
  %446 = vmatmul.mubr.f32.gmra.mxu0 %v96
  %v447 = vpop.f32.mrf.mxu0
  %v448 = vadd.f32 0.0, %v447
  %v449 = vpop.f32.mrf.mxu0
  %v450 = vadd.f32 0.0, %v449
  %451 = vdwg.mxu0
  %v452 = vadd.f32 %v50, %v293
  %v453 = vadd.f32 %v51, %v295
  %v454 = vadd.f32 %v52, %v406
  %v455 = vadd.f32 %v53, %v408
  %v456 = vadd.f32 %v54, %v299
  %v457 = vadd.f32 %v55, %v301
  %v458 = vadd.f32 %v56, %v412
  %v459 = vadd.f32 %v57, %v414
  %v460 = vadd.f32 %v58, %v305
  %v461 = vadd.f32 %v59, %v307
  %v462 = vadd.f32 %v60, %v418
  %v463 = vadd.f32 %v61, %v420
  %v464 = vadd.f32 %v62, %v311
  %v465 = vadd.f32 %v63, %v313
  %v466 = vadd.f32 %v64, %v424
  %v467 = vadd.f32 %v65, %v426
  %v468 = vadd.f32 %v66, %v317
  %v469 = vadd.f32 %v67, %v319
  %v470 = vadd.f32 %v68, %v430
  %v471 = vadd.f32 %v69, %v432
  %v472 = vadd.f32 %v70, %v323
  %v473 = vadd.f32 %v71, %v325
  %v474 = vadd.f32 %v72, %v436
  %v475 = vadd.f32 %v73, %v438
  %v476 = vadd.f32 %v74, %v329
  %v477 = vadd.f32 %v75, %v331
  %v478 = vadd.f32 %v76, %v442
  %v479 = vadd.f32 %v77, %v444
  %v480 = vadd.f32 %v78, %v335
  %v481 = vadd.f32 %v79, %v337
  %v482 = vadd.f32 %v80, %v448
  %v483 = vadd.f32 %v81, %v450
  %484 = vst [vmem:[#allocation2] sm:$0xff] %v452
  %485 = vst [vmem:[#allocation2 + $0x8] sm:$0xff] %v453
  %486 = vst [vmem:[#allocation2 + $0x10] sm:$0xff] %v454
  %487 = vst [vmem:[#allocation2 + $0x18] sm:$0xff] %v455
  %488 = vst [vmem:[#allocation2 + $0x20] sm:$0xff] %v456
  %489 = vst [vmem:[#allocation2 + $0x28] sm:$0xff] %v457
  %490 = vst [vmem:[#allocation2 + $0x30] sm:$0xff] %v458
  %491 = vst [vmem:[#allocation2 + $0x38] sm:$0xff] %v459
  %492 = vst [vmem:[#allocation2 + $0x40] sm:$0xff] %v460
  %493 = vst [vmem:[#allocation2 + $0x48] sm:$0xff] %v461
  %494 = vst [vmem:[#allocation2 + $0x50] sm:$0xff] %v462
  %495 = vst [vmem:[#allocation2 + $0x58] sm:$0xff] %v463
  %496 = vst [vmem:[#allocation2 + $0x60] sm:$0xff] %v464
  %497 = vst [vmem:[#allocation2 + $0x68] sm:$0xff] %v465
  %498 = vst [vmem:[#allocation2 + $0x70] sm:$0xff] %v466
  %499 = vst [vmem:[#allocation2 + $0x78] sm:$0xff] %v467
  %500 = vst [vmem:[#allocation2 + $0x80] sm:$0xff] %v468
  %501 = vst [vmem:[#allocation2 + $0x88] sm:$0xff] %v469
  %502 = vst [vmem:[#allocation2 + $0x90] sm:$0xff] %v470
  %503 = vst [vmem:[#allocation2 + $0x98] sm:$0xff] %v471
  %504 = vst [vmem:[#allocation2 + $0xa0] sm:$0xff] %v472
  %505 = vst [vmem:[#allocation2 + $0xa8] sm:$0xff] %v473
  %506 = vst [vmem:[#allocation2 + $0xb0] sm:$0xff] %v474
  %507 = vst [vmem:[#allocation2 + $0xb8] sm:$0xff] %v475
  %508 = vst [vmem:[#allocation2 + $0xc0] sm:$0xff] %v476
  %509 = vst [vmem:[#allocation2 + $0xc8] sm:$0xff] %v477
  %510 = vst [vmem:[#allocation2 + $0xd0] sm:$0xff] %v478
  %511 = vst [vmem:[#allocation2 + $0xd8] sm:$0xff] %v479
  %512 = vst [vmem:[#allocation2 + $0xe0] sm:$0xff] %v480
  %513 = vst [vmem:[#allocation2 + $0xe8] sm:$0xff] %v481
  %514 = vst [vmem:[#allocation2 + $0xf0] sm:$0xff] %v482
  %515 = vst [vmem:[#allocation2 + $0xf8] sm:$0xff] %v483
  // Predicated region
  $region18: #{net_forward.2} parent=0 // pred_check
    %p516 = pneg %p14
  $region19: #{net_forward.2} parent=0 // pred_check_branch
    %518 = sbr.rel (%p516) target = $region21
  $region20: #{net_forward.2} parent=0 // pred_region
    %v519 = vld [vmem:[#allocation2] sm:$0xff]
    %v520 = vld [vmem:[#allocation2 + $0x8] sm:$0xff]
    %v521 = vld [vmem:[#allocation2 + $0x10] sm:$0xff]
    %v522 = vld [vmem:[#allocation2 + $0x18] sm:$0xff]
    %v523 = vld [vmem:[#allocation2 + $0x20] sm:$0xff]
    %v524 = vld [vmem:[#allocation2 + $0x28] sm:$0xff]
    %v525 = vld [vmem:[#allocation2 + $0x30] sm:$0xff]
    %v526 = vld [vmem:[#allocation2 + $0x38] sm:$0xff]
    %v527 = vld [vmem:[#allocation2 + $0x40] sm:$0xff]
    %v528 = vld [vmem:[#allocation2 + $0x48] sm:$0xff]
    %v529 = vld [vmem:[#allocation2 + $0x50] sm:$0xff]
    %v530 = vld [vmem:[#allocation2 + $0x58] sm:$0xff]
    %v531 = vld [vmem:[#allocation2 + $0x60] sm:$0xff]
    %v532 = vld [vmem:[#allocation2 + $0x68] sm:$0xff]
    %v533 = vld [vmem:[#allocation2 + $0x70] sm:$0xff]
    %v534 = vld [vmem:[#allocation2 + $0x78] sm:$0xff]
    %v535 = vld [vmem:[#allocation2 + $0x80] sm:$0xff]
    %v536 = vld [vmem:[#allocation2 + $0x88] sm:$0xff]
    %v537 = vld [vmem:[#allocation2 + $0x90] sm:$0xff]
    %v538 = vld [vmem:[#allocation2 + $0x98] sm:$0xff]
    %v539 = vld [vmem:[#allocation2 + $0xa0] sm:$0xff]
    %v540 = vld [vmem:[#allocation2 + $0xa8] sm:$0xff]
    %v541 = vld [vmem:[#allocation2 + $0xb0] sm:$0xff]
    %v542 = vld [vmem:[#allocation2 + $0xb8] sm:$0xff]
    %v543 = vld [vmem:[#allocation2 + $0xc0] sm:$0xff]
    %v544 = vld [vmem:[#allocation2 + $0xc8] sm:$0xff]
    %v545 = vld [vmem:[#allocation2 + $0xd0] sm:$0xff]
    %v546 = vld [vmem:[#allocation2 + $0xd8] sm:$0xff]
    %v547 = vld [vmem:[#allocation2 + $0xe0] sm:$0xff]
    %v548 = vld [vmem:[#allocation2 + $0xe8] sm:$0xff]
    %v549 = vld [vmem:[#allocation2 + $0xf0] sm:$0xff]
    %v550 = vld [vmem:[#allocation2 + $0xf8] sm:$0xff]
    %v551 = vld [vmem:[%s2] sm:$0xf]
    %v553 = vlaneseq
    %v554 = vshrl.u32 %v553, 7
    %v555 = vsub.s32 0, %v554
    %v556 = vrot.slane %v551, %v555
    %v557 = vlaneseq
    %v558 = vshrl.u32 %v557, 7
    %v559 = vsub.s32 1, %v558
    %v560 = vrot.slane %v551, %v559
    %v561 = vlaneseq
    %v562 = vshrl.u32 %v561, 7
    %v563 = vsub.s32 2, %v562
    %v564 = vrot.slane %v551, %v563
    %v565 = vlaneseq
    %v566 = vshrl.u32 %v565, 7
    %v567 = vsub.s32 3, %v566
    %v568 = vrot.slane %v551, %v567
    %v573 = vadd.f32 %v519, %v556
    %v574 = vadd.f32 %v520, %v560
    %v575 = vadd.f32 %v521, %v564
    %v576 = vadd.f32 %v522, %v568
    %v577 = vadd.f32 %v523, %v556
    %v578 = vadd.f32 %v524, %v560
    %v579 = vadd.f32 %v525, %v564
    %v580 = vadd.f32 %v526, %v568
    %v581 = vadd.f32 %v527, %v556
    %v582 = vadd.f32 %v528, %v560
    %v583 = vadd.f32 %v529, %v564
    %v584 = vadd.f32 %v530, %v568
    %v585 = vadd.f32 %v531, %v556
    %v586 = vadd.f32 %v532, %v560
    %v587 = vadd.f32 %v533, %v564
    %v588 = vadd.f32 %v534, %v568
    %v589 = vadd.f32 %v535, %v556
    %v590 = vadd.f32 %v536, %v560
    %v591 = vadd.f32 %v537, %v564
    %v592 = vadd.f32 %v538, %v568
    %v593 = vadd.f32 %v539, %v556
    %v594 = vadd.f32 %v540, %v560
    %v595 = vadd.f32 %v541, %v564
    %v596 = vadd.f32 %v542, %v568
    %v597 = vadd.f32 %v543, %v556
    %v598 = vadd.f32 %v544, %v560
    %v599 = vadd.f32 %v545, %v564
    %v600 = vadd.f32 %v546, %v568
    %v601 = vadd.f32 %v547, %v556
    %v602 = vadd.f32 %v548, %v560
    %v603 = vadd.f32 %v549, %v564
    %v604 = vadd.f32 %v550, %v568
    %605 = vst [vmem:[%s3] sm:$0xff] %v573
    %606 = vst [vmem:[%s3 + $0x8] sm:$0xff] %v574
    %607 = vst [vmem:[%s3 + $0x10] sm:$0xff] %v575
    %608 = vst [vmem:[%s3 + $0x18] sm:$0xff] %v576
    %609 = vst [vmem:[%s3 + $0x20] sm:$0xff] %v577
    %610 = vst [vmem:[%s3 + $0x28] sm:$0xff] %v578
    %611 = vst [vmem:[%s3 + $0x30] sm:$0xff] %v579
    %612 = vst [vmem:[%s3 + $0x38] sm:$0xff] %v580
    %613 = vst [vmem:[%s3 + $0x40] sm:$0xff] %v581
    %614 = vst [vmem:[%s3 + $0x48] sm:$0xff] %v582
    %615 = vst [vmem:[%s3 + $0x50] sm:$0xff] %v583
    %616 = vst [vmem:[%s3 + $0x58] sm:$0xff] %v584
    %617 = vst [vmem:[%s3 + $0x60] sm:$0xff] %v585
    %618 = vst [vmem:[%s3 + $0x68] sm:$0xff] %v586
    %619 = vst [vmem:[%s3 + $0x70] sm:$0xff] %v587
    %620 = vst [vmem:[%s3 + $0x78] sm:$0xff] %v588
    %621 = vst [vmem:[%s3 + $0x80] sm:$0xff] %v589
    %622 = vst [vmem:[%s3 + $0x88] sm:$0xff] %v590
    %623 = vst [vmem:[%s3 + $0x90] sm:$0xff] %v591
    %624 = vst [vmem:[%s3 + $0x98] sm:$0xff] %v592
    %625 = vst [vmem:[%s3 + $0xa0] sm:$0xff] %v593
    %626 = vst [vmem:[%s3 + $0xa8] sm:$0xff] %v594
    %627 = vst [vmem:[%s3 + $0xb0] sm:$0xff] %v595
    %628 = vst [vmem:[%s3 + $0xb8] sm:$0xff] %v596
    %629 = vst [vmem:[%s3 + $0xc0] sm:$0xff] %v597
    %630 = vst [vmem:[%s3 + $0xc8] sm:$0xff] %v598
    %631 = vst [vmem:[%s3 + $0xd0] sm:$0xff] %v599
    %632 = vst [vmem:[%s3 + $0xd8] sm:$0xff] %v600
    %633 = vst [vmem:[%s3 + $0xe0] sm:$0xff] %v601
    %634 = vst [vmem:[%s3 + $0xe8] sm:$0xff] %v602
    %635 = vst [vmem:[%s3 + $0xf0] sm:$0xff] %v603
    %636 = vst [vmem:[%s3 + $0xf8] sm:$0xff] %v604
  $region21: #{net_forward.2} parent=0 // pred_fallthru
    _
  // Predicated region
  $region22: #{net_forward.2} parent=0 // pred_check
    _
  $region23: #{net_forward.2} parent=0 // pred_check_branch
    %638 = sbr.rel (0) target = $region25
  $region24: #{net_forward.2} parent=0 // pred_region
    _
  $region25: #{net_forward.2} parent=0 // pred_fallthru
    _
  // Predicated region
  $region26: #{net_forward.2} parent=0 // pred_check
    _
  $region27: #{net_forward.2} parent=0 // pred_check_branch
    %640 = sbr.rel (0) target = $region29
  $region28: #{net_forward.2} parent=0 // pred_region
    _
  $region29: #{net_forward.2} parent=0 // pred_fallthru
    _

// kernel: net_forward.3
$region0: #{net_forward.3}
  #allocation0 [shape = 'u32[]', space=smem, size = 0x4, offset = 0x4, fixed_abs, tag = 'smem constant byte address 0x4 - core index']
  #allocation1 [shape = 'u32[144,128]{1,0:T(1,128)}', space=vmem, size = 0x12000, scoped, tag = 'internal scratch']
  #allocation2 [shape = 'f32[8,128]{1,0:T(8,128)}', space=vmem, size = 0x1000, scoped, tag = 'scratch operand']
  #allocation3 [shape = 'f32[8,128]{1,0:T(8,128)}', space=vmem, size = 0x1000, scoped, tag = 'scratch operand']
  %s0 = inlined_call_operand.vmem [shape: f32[8,8,512], index: 0, kind: input, shape index: {}]
  %s1 = inlined_call_operand.vmem [shape: f32[128,512], index: 1, kind: input, shape index: {}]
  %s2 = inlined_call_operand.vmem [shape: f32[8,8,128], index: 2, kind: output, shape index: {}]
  %s3 = sld [smem:[#allocation0]]
  $region22: #{net_forward.3} parent=0
    _
  %s5 = ssub.s32 1, %s3
  %s6 = scalar_select 0, %s5, %s3
  // Predicated region
  $region2: #{net_forward.3} parent=0 // pred_check
    _
  $region3: #{net_forward.3} parent=0 // pred_check_branch
    %8 = sbr.rel (0) target = $region5
  $region4: #{net_forward.3} parent=0 // pred_region
    _
  $region5: #{net_forward.3} parent=0 // pred_fallthru
    _
  // Predicated region
  $region6: #{net_forward.3} parent=0 // pred_check
    _
  $region7: #{net_forward.3} parent=0 // pred_check_branch
    %10 = sbr.rel (0) target = $region9
  $region8: #{net_forward.3} parent=0 // pred_region
    _
  $region9: #{net_forward.3} parent=0 // pred_fallthru
    _
  %p11 = scmp.eq.s32.totalorder 0, 0
  // Predicated region
  $region10: #{net_forward.3} parent=0 // pred_check
    %p12 = pneg %p11
  $region11: #{net_forward.3} parent=0 // pred_check_branch
    %14 = sbr.rel (%p12) target = $region13
  $region12: #{net_forward.3} parent=0 // pred_region
    %15 = vst [vmem:[#allocation2] sm:$0xff] 0.0
    %16 = vst [vmem:[#allocation3] sm:$0xff] 0.0
  $region13: #{net_forward.3} parent=0 // pred_fallthru
    _
  %v17 = vld [vmem:[#allocation2] sm:$0xff]
  %v18 = vld [vmem:[#allocation3] sm:$0xff]
  %v19 = vld [vmem:[%s0] sm:$0xff]
  %v20 = vld [vmem:[%s0 + $0x8] sm:$0xff]
  %v21 = vld [vmem:[%s0 + $0x10] sm:$0xff]
  %v22 = vld [vmem:[%s0 + $0x18] sm:$0xff]
  %v23 = vld [vmem:[%s1] sm:$0xff]
  %v24 = vld [vmem:[%s1 + $0x8] sm:$0xff]
  %v25 = vld [vmem:[%s1 + $0x10] sm:$0xff]
  %v26 = vld [vmem:[%s1 + $0x18] sm:$0xff]
  %v27 = vld [vmem:[%s1 + $0x20] sm:$0xff]
  %v28 = vld [vmem:[%s1 + $0x28] sm:$0xff]
  %v29 = vld [vmem:[%s1 + $0x30] sm:$0xff]
  %v30 = vld [vmem:[%s1 + $0x38] sm:$0xff]
  %v31 = vld [vmem:[%s1 + $0x40] sm:$0xff]
  %v32 = vld [vmem:[%s1 + $0x48] sm:$0xff]
  %v33 = vld [vmem:[%s1 + $0x50] sm:$0xff]
  %v34 = vld [vmem:[%s1 + $0x58] sm:$0xff]
  %v35 = vld [vmem:[%s1 + $0x60] sm:$0xff]
  %v36 = vld [vmem:[%s1 + $0x68] sm:$0xff]
  %v37 = vld [vmem:[%s1 + $0x70] sm:$0xff]
  %v38 = vld [vmem:[%s1 + $0x78] sm:$0xff]
  %v39 = vld [vmem:[%s1 + $0x80] sm:$0xff]
  %v40 = vld [vmem:[%s1 + $0x88] sm:$0xff]
  %v41 = vld [vmem:[%s1 + $0x90] sm:$0xff]
  %v42 = vld [vmem:[%s1 + $0x98] sm:$0xff]
  %v43 = vld [vmem:[%s1 + $0xa0] sm:$0xff]
  %v44 = vld [vmem:[%s1 + $0xa8] sm:$0xff]
  %v45 = vld [vmem:[%s1 + $0xb0] sm:$0xff]
  %v46 = vld [vmem:[%s1 + $0xb8] sm:$0xff]
  %v47 = vld [vmem:[%s1 + $0xc0] sm:$0xff]
  %v48 = vld [vmem:[%s1 + $0xc8] sm:$0xff]
  %v49 = vld [vmem:[%s1 + $0xd0] sm:$0xff]
  %v50 = vld [vmem:[%s1 + $0xd8] sm:$0xff]
  %v51 = vld [vmem:[%s1 + $0xe0] sm:$0xff]
  %v52 = vld [vmem:[%s1 + $0xe8] sm:$0xff]
  %v53 = vld [vmem:[%s1 + $0xf0] sm:$0xff]
  %v54 = vld [vmem:[%s1 + $0xf8] sm:$0xff]
  %v55 = vld [vmem:[%s1 + $0x100] sm:$0xff]
  %v56 = vld [vmem:[%s1 + $0x108] sm:$0xff]
  %v57 = vld [vmem:[%s1 + $0x110] sm:$0xff]
  %v58 = vld [vmem:[%s1 + $0x118] sm:$0xff]
  %v59 = vld [vmem:[%s1 + $0x120] sm:$0xff]
  %v60 = vld [vmem:[%s1 + $0x128] sm:$0xff]
  %v61 = vld [vmem:[%s1 + $0x130] sm:$0xff]
  %v62 = vld [vmem:[%s1 + $0x138] sm:$0xff]
  %v63 = vld [vmem:[%s1 + $0x140] sm:$0xff]
  %v64 = vld [vmem:[%s1 + $0x148] sm:$0xff]
  %v65 = vld [vmem:[%s1 + $0x150] sm:$0xff]
  %v66 = vld [vmem:[%s1 + $0x158] sm:$0xff]
  %v67 = vld [vmem:[%s1 + $0x160] sm:$0xff]
  %v68 = vld [vmem:[%s1 + $0x168] sm:$0xff]
  %v69 = vld [vmem:[%s1 + $0x170] sm:$0xff]
  %v70 = vld [vmem:[%s1 + $0x178] sm:$0xff]
  %v71 = vld [vmem:[%s1 + $0x180] sm:$0xff]
  %v72 = vld [vmem:[%s1 + $0x188] sm:$0xff]
  %v73 = vld [vmem:[%s1 + $0x190] sm:$0xff]
  %v74 = vld [vmem:[%s1 + $0x198] sm:$0xff]
  %v75 = vld [vmem:[%s1 + $0x1a0] sm:$0xff]
  %v76 = vld [vmem:[%s1 + $0x1a8] sm:$0xff]
  %v77 = vld [vmem:[%s1 + $0x1b0] sm:$0xff]
  %v78 = vld [vmem:[%s1 + $0x1b8] sm:$0xff]
  %v79 = vld [vmem:[%s1 + $0x1c0] sm:$0xff]
  %v80 = vld [vmem:[%s1 + $0x1c8] sm:$0xff]
  %v81 = vld [vmem:[%s1 + $0x1d0] sm:$0xff]
  %v82 = vld [vmem:[%s1 + $0x1d8] sm:$0xff]
  %v83 = vld [vmem:[%s1 + $0x1e0] sm:$0xff]
  %v84 = vld [vmem:[%s1 + $0x1e8] sm:$0xff]
  %v85 = vld [vmem:[%s1 + $0x1f0] sm:$0xff]
  %v86 = vld [vmem:[%s1 + $0x1f8] sm:$0xff]
  %87 = vmatprep.subr.mxu0 %v84
  %88 = vmatpush1.msra.mxu0 %v83
  %89 = vmatprep.subr.mxu0 %v80
  %90 = vmatpush1.msra.mxu0 %v79
  %91 = vmatprep.subr.mxu0 %v76
  %92 = vmatpush1.msra.mxu0 %v75
  %93 = vmatprep.subr.mxu0 %v72
  %94 = vmatpush1.msra.mxu0 %v71
  %95 = vmatprep.subr.mxu0 %v68
  %96 = vmatpush1.msra.mxu0 %v67
  %97 = vmatprep.subr.mxu0 %v64
  %98 = vmatpush1.msra.mxu0 %v63
  %99 = vmatprep.subr.mxu0 %v60
  %100 = vmatpush1.msra.mxu0 %v59
  %101 = vmatprep.subr.mxu0 %v56
  %102 = vmatpush1.msra.mxu0 %v55
  %103 = vmatprep.subr.mxu0 %v52
  %104 = vmatpush1.msra.mxu0 %v51
  %105 = vmatprep.subr.mxu0 %v48
  %106 = vmatpush1.msra.mxu0 %v47
  %107 = vmatprep.subr.mxu0 %v44
  %108 = vmatpush1.msra.mxu0 %v43
  %109 = vmatprep.subr.mxu0 %v40
  %110 = vmatpush1.msra.mxu0 %v39
  %111 = vmatprep.subr.mxu0 %v36
  %112 = vmatpush1.msra.mxu0 %v35
  %113 = vmatprep.subr.mxu0 %v32
  %114 = vmatpush1.msra.mxu0 %v31
  %115 = vmatprep.subr.mxu0 %v28
  %116 = vmatpush1.msra.mxu0 %v27
  %117 = vmatprep.subr.mxu0 %v24
  %118 = vmatpush1.msra.mxu0 %v23
  %119 = vmatprep.subr.mxu0 0.0
  %120 = vmatpush2.msra.mxu0 0.0
  %121 = vmatprep.subr.mxu0 0.0
  %122 = vmatpush2.msra.mxu0 0.0
  %123 = vmatprep.subr.mxu0 0.0
  %124 = vmatpush2.msra.mxu0 0.0
  %125 = vmatprep.subr.mxu0 0.0
  %126 = vmatpush2.msra.mxu0 0.0
  %127 = vmatprep.subr.mxu0 0.0
  %128 = vmatpush2.msra.mxu0 0.0
  %129 = vmatprep.subr.mxu0 0.0
  %130 = vmatpush2.msra.mxu0 0.0
  %131 = vmatprep.subr.mxu0 0.0
  %132 = vmatpush2.msra.mxu0 0.0
  %133 = vmatprep.subr.mxu0 0.0
  %134 = vmatpush2.msra.mxu0 0.0
  %135 = vmatprep.subr.mxu0 0.0
  %136 = vmatpush2.msra.mxu0 0.0
  %137 = vmatprep.subr.mxu0 0.0
  %138 = vmatpush2.msra.mxu0 0.0
  %139 = vmatprep.subr.mxu0 0.0
  %140 = vmatpush2.msra.mxu0 0.0
  %141 = vmatprep.subr.mxu0 0.0
  %142 = vmatpush2.msra.mxu0 0.0
  %143 = vmatprep.subr.mxu0 0.0
  %144 = vmatpush2.msra.mxu0 0.0
  %145 = vmatprep.subr.mxu0 0.0
  %146 = vmatpush2.msra.mxu0 0.0
  %147 = vmatprep.subr.mxu0 0.0
  %148 = vmatpush2.msra.mxu0 0.0
  %149 = vmatprep.subr.mxu0 0.0
  %150 = vmatpush2.msra.mxu0 0.0
  %151 = vmatprep.mubr.f32.mxu0 0.0
  %152 = vmatmul.mubr.f32.gmra.mxu0 %v17
  %v153 = vpop.f32.mrf.mxu0
  %v154 = vadd.f32 0.0, %v153
  %v155 = vpop.f32.mrf.mxu0
  %v156 = vadd.f32 0.0, %v155
  %157 = vdwg.mxu0
  %158 = vmatprep.subr.mxu0 %v86
  %159 = vmatpush1.msra.mxu0 %v85
  %160 = vmatprep.subr.mxu0 %v82
  %161 = vmatpush1.msra.mxu0 %v81
  %162 = vmatprep.subr.mxu0 %v78
  %163 = vmatpush1.msra.mxu0 %v77
  %164 = vmatprep.subr.mxu0 %v74
  %165 = vmatpush1.msra.mxu0 %v73
  %166 = vmatprep.subr.mxu0 %v70
  %167 = vmatpush1.msra.mxu0 %v69
  %168 = vmatprep.subr.mxu0 %v66
  %169 = vmatpush1.msra.mxu0 %v65
  %170 = vmatprep.subr.mxu0 %v62
  %171 = vmatpush1.msra.mxu0 %v61
  %172 = vmatprep.subr.mxu0 %v58
  %173 = vmatpush1.msra.mxu0 %v57
  %174 = vmatprep.subr.mxu0 %v54
  %175 = vmatpush1.msra.mxu0 %v53
  %176 = vmatprep.subr.mxu0 %v50
  %177 = vmatpush1.msra.mxu0 %v49
  %178 = vmatprep.subr.mxu0 %v46
  %179 = vmatpush1.msra.mxu0 %v45
  %180 = vmatprep.subr.mxu0 %v42
  %181 = vmatpush1.msra.mxu0 %v41
  %182 = vmatprep.subr.mxu0 %v38
  %183 = vmatpush1.msra.mxu0 %v37
  %184 = vmatprep.subr.mxu0 %v34
  %185 = vmatpush1.msra.mxu0 %v33
  %186 = vmatprep.subr.mxu0 %v30
  %187 = vmatpush1.msra.mxu0 %v29
  %188 = vmatprep.subr.mxu0 %v26
  %189 = vmatpush1.msra.mxu0 %v25
  %190 = vmatprep.subr.mxu0 0.0
  %191 = vmatpush2.msra.mxu0 0.0
  %192 = vmatprep.subr.mxu0 0.0
  %193 = vmatpush2.msra.mxu0 0.0
  %194 = vmatprep.subr.mxu0 0.0
  %195 = vmatpush2.msra.mxu0 0.0
  %196 = vmatprep.subr.mxu0 0.0
  %197 = vmatpush2.msra.mxu0 0.0
  %198 = vmatprep.subr.mxu0 0.0
  %199 = vmatpush2.msra.mxu0 0.0
  %200 = vmatprep.subr.mxu0 0.0
  %201 = vmatpush2.msra.mxu0 0.0
  %202 = vmatprep.subr.mxu0 0.0
  %203 = vmatpush2.msra.mxu0 0.0
  %204 = vmatprep.subr.mxu0 0.0
  %205 = vmatpush2.msra.mxu0 0.0
  %206 = vmatprep.subr.mxu0 0.0
  %207 = vmatpush2.msra.mxu0 0.0
  %208 = vmatprep.subr.mxu0 0.0
  %209 = vmatpush2.msra.mxu0 0.0
  %210 = vmatprep.subr.mxu0 0.0
  %211 = vmatpush2.msra.mxu0 0.0
  %212 = vmatprep.subr.mxu0 0.0
  %213 = vmatpush2.msra.mxu0 0.0
  %214 = vmatprep.subr.mxu0 0.0
  %215 = vmatpush2.msra.mxu0 0.0
  %216 = vmatprep.subr.mxu0 0.0
  %217 = vmatpush2.msra.mxu0 0.0
  %218 = vmatprep.subr.mxu0 0.0
  %219 = vmatpush2.msra.mxu0 0.0
  %220 = vmatprep.subr.mxu0 0.0
  %221 = vmatpush2.msra.mxu0 0.0
  %222 = vmatprep.mubr.f32.mxu0 0.0
  %223 = vmatmul.mubr.f32.gmra.mxu0 %v17
  %v224 = vpop.f32.mrf.mxu0
  %v225 = vadd.f32 0.0, %v224
  %v226 = vpop.f32.mrf.mxu0
  %v227 = vadd.f32 0.0, %v226
  %228 = vdwg.mxu0
  %v229 = vadd.f32 %v19, %v154
  %v230 = vadd.f32 %v20, %v156
  %v231 = vadd.f32 %v21, %v225
  %v232 = vadd.f32 %v22, %v227
  %v233 = vxor.u32 %v229, 2147483648
  %v234 = vmul.f32 %v233, 1.442695
  %v235 = vpow.pop %v234
  %v236 = vadd.f32 %v235, 1.0
  %v237 = vrcp.pop %v236
  %v238 = vmul.f32 1.0, %v237
  %v239 = vxor.u32 %v230, 2147483648
  %v240 = vmul.f32 %v239, 1.442695
  %v241 = vpow.pop %v240
  %v242 = vadd.f32 %v241, 1.0
  %v243 = vrcp.pop %v242
  %v244 = vmul.f32 1.0, %v243
  %v245 = vtanh.pop %v231
  %v246 = vxor.u32 %v232, 2147483648
  %v247 = vmul.f32 %v246, 1.442695
  %v248 = vpow.pop %v247
  %v249 = vadd.f32 %v248, 1.0
  %v250 = vrcp.pop %v249
  %v251 = vmul.f32 1.0, %v250
  %v252 = vmul.f32 %v244, %v18
  %v253 = vmul.f32 %v238, %v245
  %v254 = vadd.f32 %v252, %v253
  %v255 = vtanh.pop %v254
  %v256 = vmul.f32 %v251, %v255
  %v257 = vmax.f32 %v256, 0.0
  %258 = vst [vmem:[%s2] sm:$0xff] %v257
  %s259 = scalar_lea.vmem %s0, 32
  %v260 = vld [vmem:[%s259] sm:$0xff]
  %v261 = vld [vmem:[%s259 + $0x8] sm:$0xff]
  %v262 = vld [vmem:[%s259 + $0x10] sm:$0xff]
  %v263 = vld [vmem:[%s259 + $0x18] sm:$0xff]
  %v264 = vld [vmem:[%s1] sm:$0xff]
  %v265 = vld [vmem:[%s1 + $0x8] sm:$0xff]
  %v266 = vld [vmem:[%s1 + $0x10] sm:$0xff]
  %v267 = vld [vmem:[%s1 + $0x18] sm:$0xff]
  %v268 = vld [vmem:[%s1 + $0x20] sm:$0xff]
  %v269 = vld [vmem:[%s1 + $0x28] sm:$0xff]
  %v270 = vld [vmem:[%s1 + $0x30] sm:$0xff]
  %v271 = vld [vmem:[%s1 + $0x38] sm:$0xff]
  %v272 = vld [vmem:[%s1 + $0x40] sm:$0xff]
  %v273 = vld [vmem:[%s1 + $0x48] sm:$0xff]
  %v274 = vld [vmem:[%s1 + $0x50] sm:$0xff]
  %v275 = vld [vmem:[%s1 + $0x58] sm:$0xff]
  %v276 = vld [vmem:[%s1 + $0x60] sm:$0xff]
  %v277 = vld [vmem:[%s1 + $0x68] sm:$0xff]
  %v278 = vld [vmem:[%s1 + $0x70] sm:$0xff]
  %v279 = vld [vmem:[%s1 + $0x78] sm:$0xff]
  %v280 = vld [vmem:[%s1 + $0x80] sm:$0xff]
  %v281 = vld [vmem:[%s1 + $0x88] sm:$0xff]
  %v282 = vld [vmem:[%s1 + $0x90] sm:$0xff]
  %v283 = vld [vmem:[%s1 + $0x98] sm:$0xff]
  %v284 = vld [vmem:[%s1 + $0xa0] sm:$0xff]
  %v285 = vld [vmem:[%s1 + $0xa8] sm:$0xff]
  %v286 = vld [vmem:[%s1 + $0xb0] sm:$0xff]
  %v287 = vld [vmem:[%s1 + $0xb8] sm:$0xff]
  %v288 = vld [vmem:[%s1 + $0xc0] sm:$0xff]
  %v289 = vld [vmem:[%s1 + $0xc8] sm:$0xff]
  %v290 = vld [vmem:[%s1 + $0xd0] sm:$0xff]
  %v291 = vld [vmem:[%s1 + $0xd8] sm:$0xff]
  %v292 = vld [vmem:[%s1 + $0xe0] sm:$0xff]
  %v293 = vld [vmem:[%s1 + $0xe8] sm:$0xff]
  %v294 = vld [vmem:[%s1 + $0xf0] sm:$0xff]
  %v295 = vld [vmem:[%s1 + $0xf8] sm:$0xff]
  %v296 = vld [vmem:[%s1 + $0x100] sm:$0xff]
  %v297 = vld [vmem:[%s1 + $0x108] sm:$0xff]
  %v298 = vld [vmem:[%s1 + $0x110] sm:$0xff]
  %v299 = vld [vmem:[%s1 + $0x118] sm:$0xff]
  %v300 = vld [vmem:[%s1 + $0x120] sm:$0xff]
  %v301 = vld [vmem:[%s1 + $0x128] sm:$0xff]
  %v302 = vld [vmem:[%s1 + $0x130] sm:$0xff]
  %v303 = vld [vmem:[%s1 + $0x138] sm:$0xff]
  %v304 = vld [vmem:[%s1 + $0x140] sm:$0xff]
  %v305 = vld [vmem:[%s1 + $0x148] sm:$0xff]
  %v306 = vld [vmem:[%s1 + $0x150] sm:$0xff]
  %v307 = vld [vmem:[%s1 + $0x158] sm:$0xff]
  %v308 = vld [vmem:[%s1 + $0x160] sm:$0xff]
  %v309 = vld [vmem:[%s1 + $0x168] sm:$0xff]
  %v310 = vld [vmem:[%s1 + $0x170] sm:$0xff]
  %v311 = vld [vmem:[%s1 + $0x178] sm:$0xff]
  %v312 = vld [vmem:[%s1 + $0x180] sm:$0xff]
  %v313 = vld [vmem:[%s1 + $0x188] sm:$0xff]
  %v314 = vld [vmem:[%s1 + $0x190] sm:$0xff]
  %v315 = vld [vmem:[%s1 + $0x198] sm:$0xff]
  %v316 = vld [vmem:[%s1 + $0x1a0] sm:$0xff]
  %v317 = vld [vmem:[%s1 + $0x1a8] sm:$0xff]
  %v318 = vld [vmem:[%s1 + $0x1b0] sm:$0xff]
  %v319 = vld [vmem:[%s1 + $0x1b8] sm:$0xff]
  %v320 = vld [vmem:[%s1 + $0x1c0] sm:$0xff]
  %v321 = vld [vmem:[%s1 + $0x1c8] sm:$0xff]
  %v322 = vld [vmem:[%s1 + $0x1d0] sm:$0xff]
  %v323 = vld [vmem:[%s1 + $0x1d8] sm:$0xff]
  %v324 = vld [vmem:[%s1 + $0x1e0] sm:$0xff]
  %v325 = vld [vmem:[%s1 + $0x1e8] sm:$0xff]
  %v326 = vld [vmem:[%s1 + $0x1f0] sm:$0xff]
  %v327 = vld [vmem:[%s1 + $0x1f8] sm:$0xff]
  %328 = vmatprep.subr.mxu0 %v325
  %329 = vmatpush1.msra.mxu0 %v324
  %330 = vmatprep.subr.mxu0 %v321
  %331 = vmatpush1.msra.mxu0 %v320
  %332 = vmatprep.subr.mxu0 %v317
  %333 = vmatpush1.msra.mxu0 %v316
  %334 = vmatprep.subr.mxu0 %v313
  %335 = vmatpush1.msra.mxu0 %v312
  %336 = vmatprep.subr.mxu0 %v309
  %337 = vmatpush1.msra.mxu0 %v308
  %338 = vmatprep.subr.mxu0 %v305
  %339 = vmatpush1.msra.mxu0 %v304
  %340 = vmatprep.subr.mxu0 %v301
  %341 = vmatpush1.msra.mxu0 %v300
  %342 = vmatprep.subr.mxu0 %v297
  %343 = vmatpush1.msra.mxu0 %v296
  %344 = vmatprep.subr.mxu0 %v293
  %345 = vmatpush1.msra.mxu0 %v292
  %346 = vmatprep.subr.mxu0 %v289
  %347 = vmatpush1.msra.mxu0 %v288
  %348 = vmatprep.subr.mxu0 %v285
  %349 = vmatpush1.msra.mxu0 %v284
  %350 = vmatprep.subr.mxu0 %v281
  %351 = vmatpush1.msra.mxu0 %v280
  %352 = vmatprep.subr.mxu0 %v277
  %353 = vmatpush1.msra.mxu0 %v276
  %354 = vmatprep.subr.mxu0 %v273
  %355 = vmatpush1.msra.mxu0 %v272
  %356 = vmatprep.subr.mxu0 %v269
  %357 = vmatpush1.msra.mxu0 %v268
  %358 = vmatprep.subr.mxu0 %v265
  %359 = vmatpush1.msra.mxu0 %v264
  %360 = vmatprep.subr.mxu0 0.0
  %361 = vmatpush2.msra.mxu0 0.0
  %362 = vmatprep.subr.mxu0 0.0
  %363 = vmatpush2.msra.mxu0 0.0
  %364 = vmatprep.subr.mxu0 0.0
  %365 = vmatpush2.msra.mxu0 0.0
  %366 = vmatprep.subr.mxu0 0.0
  %367 = vmatpush2.msra.mxu0 0.0
  %368 = vmatprep.subr.mxu0 0.0
  %369 = vmatpush2.msra.mxu0 0.0
  %370 = vmatprep.subr.mxu0 0.0
  %371 = vmatpush2.msra.mxu0 0.0
  %372 = vmatprep.subr.mxu0 0.0
  %373 = vmatpush2.msra.mxu0 0.0
  %374 = vmatprep.subr.mxu0 0.0
  %375 = vmatpush2.msra.mxu0 0.0
  %376 = vmatprep.subr.mxu0 0.0
  %377 = vmatpush2.msra.mxu0 0.0
  %378 = vmatprep.subr.mxu0 0.0
  %379 = vmatpush2.msra.mxu0 0.0
  %380 = vmatprep.subr.mxu0 0.0
  %381 = vmatpush2.msra.mxu0 0.0
  %382 = vmatprep.subr.mxu0 0.0
  %383 = vmatpush2.msra.mxu0 0.0
  %384 = vmatprep.subr.mxu0 0.0
  %385 = vmatpush2.msra.mxu0 0.0
  %386 = vmatprep.subr.mxu0 0.0
  %387 = vmatpush2.msra.mxu0 0.0
  %388 = vmatprep.subr.mxu0 0.0
  %389 = vmatpush2.msra.mxu0 0.0
  %390 = vmatprep.subr.mxu0 0.0
  %391 = vmatpush2.msra.mxu0 0.0
  %392 = vmatprep.mubr.f32.mxu0 0.0
  %393 = vmatmul.mubr.f32.gmra.mxu0 %v256
  %v394 = vpop.f32.mrf.mxu0
  %v395 = vadd.f32 0.0, %v394
  %v396 = vpop.f32.mrf.mxu0
  %v397 = vadd.f32 0.0, %v396
  %398 = vdwg.mxu0
  %399 = vmatprep.subr.mxu0 %v327
  %400 = vmatpush1.msra.mxu0 %v326
  %401 = vmatprep.subr.mxu0 %v323
  %402 = vmatpush1.msra.mxu0 %v322
  %403 = vmatprep.subr.mxu0 %v319
  %404 = vmatpush1.msra.mxu0 %v318
  %405 = vmatprep.subr.mxu0 %v315
  %406 = vmatpush1.msra.mxu0 %v314
  %407 = vmatprep.subr.mxu0 %v311
  %408 = vmatpush1.msra.mxu0 %v310
  %409 = vmatprep.subr.mxu0 %v307
  %410 = vmatpush1.msra.mxu0 %v306
  %411 = vmatprep.subr.mxu0 %v303
  %412 = vmatpush1.msra.mxu0 %v302
  %413 = vmatprep.subr.mxu0 %v299
  %414 = vmatpush1.msra.mxu0 %v298
  %415 = vmatprep.subr.mxu0 %v295
  %416 = vmatpush1.msra.mxu0 %v294
  %417 = vmatprep.subr.mxu0 %v291
  %418 = vmatpush1.msra.mxu0 %v290
  %419 = vmatprep.subr.mxu0 %v287
  %420 = vmatpush1.msra.mxu0 %v286
  %421 = vmatprep.subr.mxu0 %v283
  %422 = vmatpush1.msra.mxu0 %v282
  %423 = vmatprep.subr.mxu0 %v279
  %424 = vmatpush1.msra.mxu0 %v278
  %425 = vmatprep.subr.mxu0 %v275
  %426 = vmatpush1.msra.mxu0 %v274
  %427 = vmatprep.subr.mxu0 %v271
  %428 = vmatpush1.msra.mxu0 %v270
  %429 = vmatprep.subr.mxu0 %v267
  %430 = vmatpush1.msra.mxu0 %v266
  %431 = vmatprep.subr.mxu0 0.0
  %432 = vmatpush2.msra.mxu0 0.0
  %433 = vmatprep.subr.mxu0 0.0
  %434 = vmatpush2.msra.mxu0 0.0
  %435 = vmatprep.subr.mxu0 0.0
  %436 = vmatpush2.msra.mxu0 0.0
  %437 = vmatprep.subr.mxu0 0.0
  %438 = vmatpush2.msra.mxu0 0.0
  %439 = vmatprep.subr.mxu0 0.0
  %440 = vmatpush2.msra.mxu0 0.0
  %441 = vmatprep.subr.mxu0 0.0
  %442 = vmatpush2.msra.mxu0 0.0
  %443 = vmatprep.subr.mxu0 0.0
  %444 = vmatpush2.msra.mxu0 0.0
  %445 = vmatprep.subr.mxu0 0.0
  %446 = vmatpush2.msra.mxu0 0.0
  %447 = vmatprep.subr.mxu0 0.0
  %448 = vmatpush2.msra.mxu0 0.0
  %449 = vmatprep.subr.mxu0 0.0
  %450 = vmatpush2.msra.mxu0 0.0
  %451 = vmatprep.subr.mxu0 0.0
  %452 = vmatpush2.msra.mxu0 0.0
  %453 = vmatprep.subr.mxu0 0.0
  %454 = vmatpush2.msra.mxu0 0.0
  %455 = vmatprep.subr.mxu0 0.0
  %456 = vmatpush2.msra.mxu0 0.0
  %457 = vmatprep.subr.mxu0 0.0
  %458 = vmatpush2.msra.mxu0 0.0
  %459 = vmatprep.subr.mxu0 0.0
  %460 = vmatpush2.msra.mxu0 0.0
  %461 = vmatprep.subr.mxu0 0.0
  %462 = vmatpush2.msra.mxu0 0.0
  %463 = vmatprep.mubr.f32.mxu0 0.0
  %464 = vmatmul.mubr.f32.gmra.mxu0 %v256
  %v465 = vpop.f32.mrf.mxu0
  %v466 = vadd.f32 0.0, %v465
  %v467 = vpop.f32.mrf.mxu0
  %v468 = vadd.f32 0.0, %v467
  %469 = vdwg.mxu0
  %v470 = vadd.f32 %v260, %v395
  %v471 = vadd.f32 %v261, %v397
  %v472 = vadd.f32 %v262, %v466
  %v473 = vadd.f32 %v263, %v468
  %v474 = vxor.u32 %v470, 2147483648
  %v475 = vmul.f32 %v474, 1.442695
  %v476 = vpow.pop %v475
  %v477 = vadd.f32 %v476, 1.0
  %v478 = vrcp.pop %v477
  %v479 = vmul.f32 1.0, %v478
  %v480 = vxor.u32 %v471, 2147483648
  %v481 = vmul.f32 %v480, 1.442695
  %v482 = vpow.pop %v481
  %v483 = vadd.f32 %v482, 1.0
  %v484 = vrcp.pop %v483
  %v485 = vmul.f32 1.0, %v484
  %v486 = vtanh.pop %v472
  %v487 = vxor.u32 %v473, 2147483648
  %v488 = vmul.f32 %v487, 1.442695
  %v489 = vpow.pop %v488
  %v490 = vadd.f32 %v489, 1.0
  %v491 = vrcp.pop %v490
  %v492 = vmul.f32 1.0, %v491
  %v493 = vmul.f32 %v485, %v254
  %v494 = vmul.f32 %v479, %v486
  %v495 = vadd.f32 %v493, %v494
  %v496 = vtanh.pop %v495
  %v497 = vmul.f32 %v492, %v496
  %v498 = vmax.f32 %v497, 0.0
  %s499 = scalar_lea.vmem %s2, 8
  %500 = vst [vmem:[%s499] sm:$0xff] %v498
  %s501 = scalar_lea.vmem %s0, 64
  %v502 = vld [vmem:[%s501] sm:$0xff]
  %v503 = vld [vmem:[%s501 + $0x8] sm:$0xff]
  %v504 = vld [vmem:[%s501 + $0x10] sm:$0xff]
  %v505 = vld [vmem:[%s501 + $0x18] sm:$0xff]
  %v506 = vld [vmem:[%s1] sm:$0xff]
  %v507 = vld [vmem:[%s1 + $0x8] sm:$0xff]
  %v508 = vld [vmem:[%s1 + $0x10] sm:$0xff]
  %v509 = vld [vmem:[%s1 + $0x18] sm:$0xff]
  %v510 = vld [vmem:[%s1 + $0x20] sm:$0xff]
  %v511 = vld [vmem:[%s1 + $0x28] sm:$0xff]
  %v512 = vld [vmem:[%s1 + $0x30] sm:$0xff]
  %v513 = vld [vmem:[%s1 + $0x38] sm:$0xff]
  %v514 = vld [vmem:[%s1 + $0x40] sm:$0xff]
  %v515 = vld [vmem:[%s1 + $0x48] sm:$0xff]
  %v516 = vld [vmem:[%s1 + $0x50] sm:$0xff]
  %v517 = vld [vmem:[%s1 + $0x58] sm:$0xff]
  %v518 = vld [vmem:[%s1 + $0x60] sm:$0xff]
  %v519 = vld [vmem:[%s1 + $0x68] sm:$0xff]
  %v520 = vld [vmem:[%s1 + $0x70] sm:$0xff]
  %v521 = vld [vmem:[%s1 + $0x78] sm:$0xff]
  %v522 = vld [vmem:[%s1 + $0x80] sm:$0xff]
  %v523 = vld [vmem:[%s1 + $0x88] sm:$0xff]
  %v524 = vld [vmem:[%s1 + $0x90] sm:$0xff]
  %v525 = vld [vmem:[%s1 + $0x98] sm:$0xff]
  %v526 = vld [vmem:[%s1 + $0xa0] sm:$0xff]
  %v527 = vld [vmem:[%s1 + $0xa8] sm:$0xff]
  %v528 = vld [vmem:[%s1 + $0xb0] sm:$0xff]
  %v529 = vld [vmem:[%s1 + $0xb8] sm:$0xff]
  %v530 = vld [vmem:[%s1 + $0xc0] sm:$0xff]
  %v531 = vld [vmem:[%s1 + $0xc8] sm:$0xff]
  %v532 = vld [vmem:[%s1 + $0xd0] sm:$0xff]
  %v533 = vld [vmem:[%s1 + $0xd8] sm:$0xff]
  %v534 = vld [vmem:[%s1 + $0xe0] sm:$0xff]
  %v535 = vld [vmem:[%s1 + $0xe8] sm:$0xff]
  %v536 = vld [vmem:[%s1 + $0xf0] sm:$0xff]
  %v537 = vld [vmem:[%s1 + $0xf8] sm:$0xff]
  %v538 = vld [vmem:[%s1 + $0x100] sm:$0xff]
  %v539 = vld [vmem:[%s1 + $0x108] sm:$0xff]
  %v540 = vld [vmem:[%s1 + $0x110] sm:$0xff]
  %v541 = vld [vmem:[%s1 + $0x118] sm:$0xff]
  %v542 = vld [vmem:[%s1 + $0x120] sm:$0xff]
  %v543 = vld [vmem:[%s1 + $0x128] sm:$0xff]
  %v544 = vld [vmem:[%s1 + $0x130] sm:$0xff]
  %v545 = vld [vmem:[%s1 + $0x138] sm:$0xff]
  %v546 = vld [vmem:[%s1 + $0x140] sm:$0xff]
  %v547 = vld [vmem:[%s1 + $0x148] sm:$0xff]
  %v548 = vld [vmem:[%s1 + $0x150] sm:$0xff]
  %v549 = vld [vmem:[%s1 + $0x158] sm:$0xff]
  %v550 = vld [vmem:[%s1 + $0x160] sm:$0xff]
  %v551 = vld [vmem:[%s1 + $0x168] sm:$0xff]
  %v552 = vld [vmem:[%s1 + $0x170] sm:$0xff]
  %v553 = vld [vmem:[%s1 + $0x178] sm:$0xff]
  %v554 = vld [vmem:[%s1 + $0x180] sm:$0xff]
  %v555 = vld [vmem:[%s1 + $0x188] sm:$0xff]
  %v556 = vld [vmem:[%s1 + $0x190] sm:$0xff]
  %v557 = vld [vmem:[%s1 + $0x198] sm:$0xff]
  %v558 = vld [vmem:[%s1 + $0x1a0] sm:$0xff]
  %v559 = vld [vmem:[%s1 + $0x1a8] sm:$0xff]
  %v560 = vld [vmem:[%s1 + $0x1b0] sm:$0xff]
  %v561 = vld [vmem:[%s1 + $0x1b8] sm:$0xff]
  %v562 = vld [vmem:[%s1 + $0x1c0] sm:$0xff]
  %v563 = vld [vmem:[%s1 + $0x1c8] sm:$0xff]
  %v564 = vld [vmem:[%s1 + $0x1d0] sm:$0xff]
  %v565 = vld [vmem:[%s1 + $0x1d8] sm:$0xff]
  %v566 = vld [vmem:[%s1 + $0x1e0] sm:$0xff]
  %v567 = vld [vmem:[%s1 + $0x1e8] sm:$0xff]
  %v568 = vld [vmem:[%s1 + $0x1f0] sm:$0xff]
  %v569 = vld [vmem:[%s1 + $0x1f8] sm:$0xff]
  %570 = vmatprep.subr.mxu0 %v567
  %571 = vmatpush1.msra.mxu0 %v566
  %572 = vmatprep.subr.mxu0 %v563
  %573 = vmatpush1.msra.mxu0 %v562
  %574 = vmatprep.subr.mxu0 %v559
  %575 = vmatpush1.msra.mxu0 %v558
  %576 = vmatprep.subr.mxu0 %v555
  %577 = vmatpush1.msra.mxu0 %v554
  %578 = vmatprep.subr.mxu0 %v551
  %579 = vmatpush1.msra.mxu0 %v550
  %580 = vmatprep.subr.mxu0 %v547
  %581 = vmatpush1.msra.mxu0 %v546
  %582 = vmatprep.subr.mxu0 %v543
  %583 = vmatpush1.msra.mxu0 %v542
  %584 = vmatprep.subr.mxu0 %v539
  %585 = vmatpush1.msra.mxu0 %v538
  %586 = vmatprep.subr.mxu0 %v535
  %587 = vmatpush1.msra.mxu0 %v534
  %588 = vmatprep.subr.mxu0 %v531
  %589 = vmatpush1.msra.mxu0 %v530
  %590 = vmatprep.subr.mxu0 %v527
  %591 = vmatpush1.msra.mxu0 %v526
  %592 = vmatprep.subr.mxu0 %v523
  %593 = vmatpush1.msra.mxu0 %v522
  %594 = vmatprep.subr.mxu0 %v519
  %595 = vmatpush1.msra.mxu0 %v518
  %596 = vmatprep.subr.mxu0 %v515
  %597 = vmatpush1.msra.mxu0 %v514
  %598 = vmatprep.subr.mxu0 %v511
  %599 = vmatpush1.msra.mxu0 %v510
  %600 = vmatprep.subr.mxu0 %v507
  %601 = vmatpush1.msra.mxu0 %v506
  %602 = vmatprep.subr.mxu0 0.0
  %603 = vmatpush2.msra.mxu0 0.0
  %604 = vmatprep.subr.mxu0 0.0
  %605 = vmatpush2.msra.mxu0 0.0
  %606 = vmatprep.subr.mxu0 0.0
  %607 = vmatpush2.msra.mxu0 0.0
  %608 = vmatprep.subr.mxu0 0.0
  %609 = vmatpush2.msra.mxu0 0.0
  %610 = vmatprep.subr.mxu0 0.0
  %611 = vmatpush2.msra.mxu0 0.0
  %612 = vmatprep.subr.mxu0 0.0
  %613 = vmatpush2.msra.mxu0 0.0
  %614 = vmatprep.subr.mxu0 0.0
  %615 = vmatpush2.msra.mxu0 0.0
  %616 = vmatprep.subr.mxu0 0.0
  %617 = vmatpush2.msra.mxu0 0.0
  %618 = vmatprep.subr.mxu0 0.0
  %619 = vmatpush2.msra.mxu0 0.0
  %620 = vmatprep.subr.mxu0 0.0
  %621 = vmatpush2.msra.mxu0 0.0
  %622 = vmatprep.subr.mxu0 0.0
  %623 = vmatpush2.msra.mxu0 0.0
  %624 = vmatprep.subr.mxu0 0.0
  %625 = vmatpush2.msra.mxu0 0.0
  %626 = vmatprep.subr.mxu0 0.0
  %627 = vmatpush2.msra.mxu0 0.0
  %628 = vmatprep.subr.mxu0 0.0
  %629 = vmatpush2.msra.mxu0 0.0
  %630 = vmatprep.subr.mxu0 0.0
  %631 = vmatpush2.msra.mxu0 0.0
  %632 = vmatprep.subr.mxu0 0.0
  %633 = vmatpush2.msra.mxu0 0.0
  %634 = vmatprep.mubr.f32.mxu0 0.0
  %635 = vmatmul.mubr.f32.gmra.mxu0 %v497
  %v636 = vpop.f32.mrf.mxu0
  %v637 = vadd.f32 0.0, %v636
  %v638 = vpop.f32.mrf.mxu0
  %v639 = vadd.f32 0.0, %v638
  %640 = vdwg.mxu0
  %641 = vmatprep.subr.mxu0 %v569
  %642 = vmatpush1.msra.mxu0 %v568
  %643 = vmatprep.subr.mxu0 %v565
  %644 = vmatpush1.msra.mxu0 %v564
  %645 = vmatprep.subr.mxu0 %v561
  %646 = vmatpush1.msra.mxu0 %v560
  %647 = vmatprep.subr.mxu0 %v557
  %648 = vmatpush1.msra.mxu0 %v556
  %649 = vmatprep.subr.mxu0 %v553
  %650 = vmatpush1.msra.mxu0 %v552
  %651 = vmatprep.subr.mxu0 %v549
  %652 = vmatpush1.msra.mxu0 %v548
  %653 = vmatprep.subr.mxu0 %v545
  %654 = vmatpush1.msra.mxu0 %v544
  %655 = vmatprep.subr.mxu0 %v541
  %656 = vmatpush1.msra.mxu0 %v540
  %657 = vmatprep.subr.mxu0 %v537
  %658 = vmatpush1.msra.mxu0 %v536
  %659 = vmatprep.subr.mxu0 %v533
  %660 = vmatpush1.msra.mxu0 %v532
  %661 = vmatprep.subr.mxu0 %v529
  %662 = vmatpush1.msra.mxu0 %v528
  %663 = vmatprep.subr.mxu0 %v525
  %664 = vmatpush1.msra.mxu0 %v524
  %665 = vmatprep.subr.mxu0 %v521
  %666 = vmatpush1.msra.mxu0 %v520
  %667 = vmatprep.subr.mxu0 %v517
  %668 = vmatpush1.msra.mxu0 %v516
  %669 = vmatprep.subr.mxu0 %v513
  %670 = vmatpush1.msra.mxu0 %v512
  %671 = vmatprep.subr.mxu0 %v509
  %672 = vmatpush1.msra.mxu0 %v508
  %673 = vmatprep.subr.mxu0 0.0
  %674 = vmatpush2.msra.mxu0 0.0
  %675 = vmatprep.subr.mxu0 0.0
  %676 = vmatpush2.msra.mxu0 0.0
  %677 = vmatprep.subr.mxu0 0.0
  %678 = vmatpush2.msra.mxu0 0.0
  %679 = vmatprep.subr.mxu0 0.0
  %680 = vmatpush2.msra.mxu0 0.0
  %681 = vmatprep.subr.mxu0 0.0
  %682 = vmatpush2.msra.mxu0 0.0
  %683 = vmatprep.subr.mxu0 0.0
  %684 = vmatpush2.msra.mxu0 0.0
  %685 = vmatprep.subr.mxu0 0.0
  %686 = vmatpush2.msra.mxu0 0.0
  %687 = vmatprep.subr.mxu0 0.0
  %688 = vmatpush2.msra.mxu0 0.0
  %689 = vmatprep.subr.mxu0 0.0
  %690 = vmatpush2.msra.mxu0 0.0
  %691 = vmatprep.subr.mxu0 0.0
  %692 = vmatpush2.msra.mxu0 0.0
  %693 = vmatprep.subr.mxu0 0.0
  %694 = vmatpush2.msra.mxu0 0.0
  %695 = vmatprep.subr.mxu0 0.0
  %696 = vmatpush2.msra.mxu0 0.0
  %697 = vmatprep.subr.mxu0 0.0
  %698 = vmatpush2.msra.mxu0 0.0
  %699 = vmatprep.subr.mxu0 0.0
  %700 = vmatpush2.msra.mxu0 0.0
  %701 = vmatprep.subr.mxu0 0.0
  %702 = vmatpush2.msra.mxu0 0.0
  %703 = vmatprep.subr.mxu0 0.0
  %704 = vmatpush2.msra.mxu0 0.0
  %705 = vmatprep.mubr.f32.mxu0 0.0
  %706 = vmatmul.mubr.f32.gmra.mxu0 %v497
  %v707 = vpop.f32.mrf.mxu0
  %v708 = vadd.f32 0.0, %v707
  %v709 = vpop.f32.mrf.mxu0
  %v710 = vadd.f32 0.0, %v709
  %711 = vdwg.mxu0
  %v712 = vadd.f32 %v502, %v637
  %v713 = vadd.f32 %v503, %v639
  %v714 = vadd.f32 %v504, %v708
  %v715 = vadd.f32 %v505, %v710
  %v716 = vxor.u32 %v712, 2147483648
  %v717 = vmul.f32 %v716, 1.442695
  %v718 = vpow.pop %v717
  %v719 = vadd.f32 %v718, 1.0
  %v720 = vrcp.pop %v719
  %v721 = vmul.f32 1.0, %v720
  %v722 = vxor.u32 %v713, 2147483648
  %v723 = vmul.f32 %v722, 1.442695
  %v724 = vpow.pop %v723
  %v725 = vadd.f32 %v724, 1.0
  %v726 = vrcp.pop %v725
  %v727 = vmul.f32 1.0, %v726
  %v728 = vtanh.pop %v714
  %v729 = vxor.u32 %v715, 2147483648
  %v730 = vmul.f32 %v729, 1.442695
  %v731 = vpow.pop %v730
  %v732 = vadd.f32 %v731, 1.0
  %v733 = vrcp.pop %v732
  %v734 = vmul.f32 1.0, %v733
  %v735 = vmul.f32 %v727, %v495
  %v736 = vmul.f32 %v721, %v728
  %v737 = vadd.f32 %v735, %v736
  %v738 = vtanh.pop %v737
  %v739 = vmul.f32 %v734, %v738
  %v740 = vmax.f32 %v739, 0.0
  %s741 = scalar_lea.vmem %s2, 16
  %742 = vst [vmem:[%s741] sm:$0xff] %v740
  %s743 = scalar_lea.vmem %s0, 96
  %v744 = vld [vmem:[%s743] sm:$0xff]
  %v745 = vld [vmem:[%s743 + $0x8] sm:$0xff]
  %v746 = vld [vmem:[%s743 + $0x10] sm:$0xff]
  %v747 = vld [vmem:[%s743 + $0x18] sm:$0xff]
  %v748 = vld [vmem:[%s1] sm:$0xff]
  %v749 = vld [vmem:[%s1 + $0x8] sm:$0xff]
  %v750 = vld [vmem:[%s1 + $0x10] sm:$0xff]
  %v751 = vld [vmem:[%s1 + $0x18] sm:$0xff]
  %v752 = vld [vmem:[%s1 + $0x20] sm:$0xff]
  %v753 = vld [vmem:[%s1 + $0x28] sm:$0xff]
  %v754 = vld [vmem:[%s1 + $0x30] sm:$0xff]
  %v755 = vld [vmem:[%s1 + $0x38] sm:$0xff]
  %v756 = vld [vmem:[%s1 + $0x40] sm:$0xff]
  %v757 = vld [vmem:[%s1 + $0x48] sm:$0xff]
  %v758 = vld [vmem:[%s1 + $0x50] sm:$0xff]
  %v759 = vld [vmem:[%s1 + $0x58] sm:$0xff]
  %v760 = vld [vmem:[%s1 + $0x60] sm:$0xff]
  %v761 = vld [vmem:[%s1 + $0x68] sm:$0xff]
  %v762 = vld [vmem:[%s1 + $0x70] sm:$0xff]
  %v763 = vld [vmem:[%s1 + $0x78] sm:$0xff]
  %v764 = vld [vmem:[%s1 + $0x80] sm:$0xff]
  %v765 = vld [vmem:[%s1 + $0x88] sm:$0xff]
  %v766 = vld [vmem:[%s1 + $0x90] sm:$0xff]
  %v767 = vld [vmem:[%s1 + $0x98] sm:$0xff]
  %v768 = vld [vmem:[%s1 + $0xa0] sm:$0xff]
  %v769 = vld [vmem:[%s1 + $0xa8] sm:$0xff]
  %v770 = vld [vmem:[%s1 + $0xb0] sm:$0xff]
  %v771 = vld [vmem:[%s1 + $0xb8] sm:$0xff]
  %v772 = vld [vmem:[%s1 + $0xc0] sm:$0xff]
  %v773 = vld [vmem:[%s1 + $0xc8] sm:$0xff]
  %v774 = vld [vmem:[%s1 + $0xd0] sm:$0xff]
  %v775 = vld [vmem:[%s1 + $0xd8] sm:$0xff]
  %v776 = vld [vmem:[%s1 + $0xe0] sm:$0xff]
  %v777 = vld [vmem:[%s1 + $0xe8] sm:$0xff]
  %v778 = vld [vmem:[%s1 + $0xf0] sm:$0xff]
  %v779 = vld [vmem:[%s1 + $0xf8] sm:$0xff]
  %v780 = vld [vmem:[%s1 + $0x100] sm:$0xff]
  %v781 = vld [vmem:[%s1 + $0x108] sm:$0xff]
  %v782 = vld [vmem:[%s1 + $0x110] sm:$0xff]
  %v783 = vld [vmem:[%s1 + $0x118] sm:$0xff]
  %v784 = vld [vmem:[%s1 + $0x120] sm:$0xff]
  %v785 = vld [vmem:[%s1 + $0x128] sm:$0xff]
  %v786 = vld [vmem:[%s1 + $0x130] sm:$0xff]
  %v787 = vld [vmem:[%s1 + $0x138] sm:$0xff]
  %v788 = vld [vmem:[%s1 + $0x140] sm:$0xff]
  %v789 = vld [vmem:[%s1 + $0x148] sm:$0xff]
  %v790 = vld [vmem:[%s1 + $0x150] sm:$0xff]
  %v791 = vld [vmem:[%s1 + $0x158] sm:$0xff]
  %v792 = vld [vmem:[%s1 + $0x160] sm:$0xff]
  %v793 = vld [vmem:[%s1 + $0x168] sm:$0xff]
  %v794 = vld [vmem:[%s1 + $0x170] sm:$0xff]
  %v795 = vld [vmem:[%s1 + $0x178] sm:$0xff]
  %v796 = vld [vmem:[%s1 + $0x180] sm:$0xff]
  %v797 = vld [vmem:[%s1 + $0x188] sm:$0xff]
  %v798 = vld [vmem:[%s1 + $0x190] sm:$0xff]
  %v799 = vld [vmem:[%s1 + $0x198] sm:$0xff]
  %v800 = vld [vmem:[%s1 + $0x1a0] sm:$0xff]
  %v801 = vld [vmem:[%s1 + $0x1a8] sm:$0xff]
  %v802 = vld [vmem:[%s1 + $0x1b0] sm:$0xff]
  %v803 = vld [vmem:[%s1 + $0x1b8] sm:$0xff]
  %v804 = vld [vmem:[%s1 + $0x1c0] sm:$0xff]
  %v805 = vld [vmem:[%s1 + $0x1c8] sm:$0xff]
  %v806 = vld [vmem:[%s1 + $0x1d0] sm:$0xff]
  %v807 = vld [vmem:[%s1 + $0x1d8] sm:$0xff]
  %v808 = vld [vmem:[%s1 + $0x1e0] sm:$0xff]
  %v809 = vld [vmem:[%s1 + $0x1e8] sm:$0xff]
  %v810 = vld [vmem:[%s1 + $0x1f0] sm:$0xff]
  %v811 = vld [vmem:[%s1 + $0x1f8] sm:$0xff]
  %812 = vmatprep.subr.mxu0 %v809
  %813 = vmatpush1.msra.mxu0 %v808
  %814 = vmatprep.subr.mxu0 %v805
  %815 = vmatpush1.msra.mxu0 %v804
  %816 = vmatprep.subr.mxu0 %v801
  %817 = vmatpush1.msra.mxu0 %v800
  %818 = vmatprep.subr.mxu0 %v797
  %819 = vmatpush1.msra.mxu0 %v796
  %820 = vmatprep.subr.mxu0 %v793
  %821 = vmatpush1.msra.mxu0 %v792
  %822 = vmatprep.subr.mxu0 %v789
  %823 = vmatpush1.msra.mxu0 %v788
  %824 = vmatprep.subr.mxu0 %v785
  %825 = vmatpush1.msra.mxu0 %v784
  %826 = vmatprep.subr.mxu0 %v781
  %827 = vmatpush1.msra.mxu0 %v780
  %828 = vmatprep.subr.mxu0 %v777
  %829 = vmatpush1.msra.mxu0 %v776
  %830 = vmatprep.subr.mxu0 %v773
  %831 = vmatpush1.msra.mxu0 %v772
  %832 = vmatprep.subr.mxu0 %v769
  %833 = vmatpush1.msra.mxu0 %v768
  %834 = vmatprep.subr.mxu0 %v765
  %835 = vmatpush1.msra.mxu0 %v764
  %836 = vmatprep.subr.mxu0 %v761
  %837 = vmatpush1.msra.mxu0 %v760
  %838 = vmatprep.subr.mxu0 %v757
  %839 = vmatpush1.msra.mxu0 %v756
  %840 = vmatprep.subr.mxu0 %v753
  %841 = vmatpush1.msra.mxu0 %v752
  %842 = vmatprep.subr.mxu0 %v749
  %843 = vmatpush1.msra.mxu0 %v748
  %844 = vmatprep.subr.mxu0 0.0
  %845 = vmatpush2.msra.mxu0 0.0
  %846 = vmatprep.subr.mxu0 0.0
  %847 = vmatpush2.msra.mxu0 0.0
  %848 = vmatprep.subr.mxu0 0.0
  %849 = vmatpush2.msra.mxu0 0.0
  %850 = vmatprep.subr.mxu0 0.0
  %851 = vmatpush2.msra.mxu0 0.0
  %852 = vmatprep.subr.mxu0 0.0
  %853 = vmatpush2.msra.mxu0 0.0
  %854 = vmatprep.subr.mxu0 0.0
  %855 = vmatpush2.msra.mxu0 0.0
  %856 = vmatprep.subr.mxu0 0.0
  %857 = vmatpush2.msra.mxu0 0.0
  %858 = vmatprep.subr.mxu0 0.0
  %859 = vmatpush2.msra.mxu0 0.0
  %860 = vmatprep.subr.mxu0 0.0
  %861 = vmatpush2.msra.mxu0 0.0
  %862 = vmatprep.subr.mxu0 0.0
  %863 = vmatpush2.msra.mxu0 0.0
  %864 = vmatprep.subr.mxu0 0.0
  %865 = vmatpush2.msra.mxu0 0.0
  %866 = vmatprep.subr.mxu0 0.0
  %867 = vmatpush2.msra.mxu0 0.0
  %868 = vmatprep.subr.mxu0 0.0
  %869 = vmatpush2.msra.mxu0 0.0
  %870 = vmatprep.subr.mxu0 0.0
  %871 = vmatpush2.msra.mxu0 0.0
  %872 = vmatprep.subr.mxu0 0.0
  %873 = vmatpush2.msra.mxu0 0.0
  %874 = vmatprep.subr.mxu0 0.0
  %875 = vmatpush2.msra.mxu0 0.0
  %876 = vmatprep.mubr.f32.mxu0 0.0
  %877 = vmatmul.mubr.f32.gmra.mxu0 %v739
  %v878 = vpop.f32.mrf.mxu0
  %v879 = vadd.f32 0.0, %v878
  %v880 = vpop.f32.mrf.mxu0
  %v881 = vadd.f32 0.0, %v880
  %882 = vdwg.mxu0
  %883 = vmatprep.subr.mxu0 %v811
  %884 = vmatpush1.msra.mxu0 %v810
  %885 = vmatprep.subr.mxu0 %v807
  %886 = vmatpush1.msra.mxu0 %v806
  %887 = vmatprep.subr.mxu0 %v803
  %888 = vmatpush1.msra.mxu0 %v802
  %889 = vmatprep.subr.mxu0 %v799
  %890 = vmatpush1.msra.mxu0 %v798
  %891 = vmatprep.subr.mxu0 %v795
  %892 = vmatpush1.msra.mxu0 %v794
  %893 = vmatprep.subr.mxu0 %v791
  %894 = vmatpush1.msra.mxu0 %v790
  %895 = vmatprep.subr.mxu0 %v787
  %896 = vmatpush1.msra.mxu0 %v786
  %897 = vmatprep.subr.mxu0 %v783
  %898 = vmatpush1.msra.mxu0 %v782
  %899 = vmatprep.subr.mxu0 %v779
  %900 = vmatpush1.msra.mxu0 %v778
  %901 = vmatprep.subr.mxu0 %v775
  %902 = vmatpush1.msra.mxu0 %v774
  %903 = vmatprep.subr.mxu0 %v771
  %904 = vmatpush1.msra.mxu0 %v770
  %905 = vmatprep.subr.mxu0 %v767
  %906 = vmatpush1.msra.mxu0 %v766
  %907 = vmatprep.subr.mxu0 %v763
  %908 = vmatpush1.msra.mxu0 %v762
  %909 = vmatprep.subr.mxu0 %v759
  %910 = vmatpush1.msra.mxu0 %v758
  %911 = vmatprep.subr.mxu0 %v755
  %912 = vmatpush1.msra.mxu0 %v754
  %913 = vmatprep.subr.mxu0 %v751
  %914 = vmatpush1.msra.mxu0 %v750
  %915 = vmatprep.subr.mxu0 0.0
  %916 = vmatpush2.msra.mxu0 0.0
  %917 = vmatprep.subr.mxu0 0.0
  %918 = vmatpush2.msra.mxu0 0.0
  %919 = vmatprep.subr.mxu0 0.0
  %920 = vmatpush2.msra.mxu0 0.0
  %921 = vmatprep.subr.mxu0 0.0
  %922 = vmatpush2.msra.mxu0 0.0
  %923 = vmatprep.subr.mxu0 0.0
  %924 = vmatpush2.msra.mxu0 0.0
  %925 = vmatprep.subr.mxu0 0.0
  %926 = vmatpush2.msra.mxu0 0.0
  %927 = vmatprep.subr.mxu0 0.0
  %928 = vmatpush2.msra.mxu0 0.0
  %929 = vmatprep.subr.mxu0 0.0
  %930 = vmatpush2.msra.mxu0 0.0
  %931 = vmatprep.subr.mxu0 0.0
  %932 = vmatpush2.msra.mxu0 0.0
  %933 = vmatprep.subr.mxu0 0.0
  %934 = vmatpush2.msra.mxu0 0.0
  %935 = vmatprep.subr.mxu0 0.0
  %936 = vmatpush2.msra.mxu0 0.0
  %937 = vmatprep.subr.mxu0 0.0
  %938 = vmatpush2.msra.mxu0 0.0
  %939 = vmatprep.subr.mxu0 0.0
  %940 = vmatpush2.msra.mxu0 0.0
  %941 = vmatprep.subr.mxu0 0.0
  %942 = vmatpush2.msra.mxu0 0.0
  %943 = vmatprep.subr.mxu0 0.0
  %944 = vmatpush2.msra.mxu0 0.0
  %945 = vmatprep.subr.mxu0 0.0
  %946 = vmatpush2.msra.mxu0 0.0
  %947 = vmatprep.mubr.f32.mxu0 0.0
  %948 = vmatmul.mubr.f32.gmra.mxu0 %v739
  %v949 = vpop.f32.mrf.mxu0
  %v950 = vadd.f32 0.0, %v949
  %v951 = vpop.f32.mrf.mxu0
  %v952 = vadd.f32 0.0, %v951
  %953 = vdwg.mxu0
  %v954 = vadd.f32 %v744, %v879
  %v955 = vadd.f32 %v745, %v881
  %v956 = vadd.f32 %v746, %v950
  %v957 = vadd.f32 %v747, %v952
  %v958 = vxor.u32 %v954, 2147483648
  %v959 = vmul.f32 %v958, 1.442695
  %v960 = vpow.pop %v959
  %v961 = vadd.f32 %v960, 1.0
  %v962 = vrcp.pop %v961
  %v963 = vmul.f32 1.0, %v962
  %v964 = vxor.u32 %v955, 2147483648
  %v965 = vmul.f32 %v964, 1.442695
  %v966 = vpow.pop %v965
  %v967 = vadd.f32 %v966, 1.0
  %v968 = vrcp.pop %v967
  %v969 = vmul.f32 1.0, %v968
  %v970 = vtanh.pop %v956
  %v971 = vxor.u32 %v957, 2147483648
  %v972 = vmul.f32 %v971, 1.442695
  %v973 = vpow.pop %v972
  %v974 = vadd.f32 %v973, 1.0
  %v975 = vrcp.pop %v974
  %v976 = vmul.f32 1.0, %v975
  %v977 = vmul.f32 %v969, %v737
  %v978 = vmul.f32 %v963, %v970
  %v979 = vadd.f32 %v977, %v978
  %v980 = vtanh.pop %v979
  %v981 = vmul.f32 %v976, %v980
  %v982 = vmax.f32 %v981, 0.0
  %s983 = scalar_lea.vmem %s2, 24
  %984 = vst [vmem:[%s983] sm:$0xff] %v982
  %s985 = scalar_lea.vmem %s0, 128
  %v986 = vld [vmem:[%s985] sm:$0xff]
  %v987 = vld [vmem:[%s985 + $0x8] sm:$0xff]
  %v988 = vld [vmem:[%s985 + $0x10] sm:$0xff]
  %v989 = vld [vmem:[%s985 + $0x18] sm:$0xff]
  %v990 = vld [vmem:[%s1] sm:$0xff]
  %v991 = vld [vmem:[%s1 + $0x8] sm:$0xff]
  %v992 = vld [vmem:[%s1 + $0x10] sm:$0xff]
  %v993 = vld [vmem:[%s1 + $0x18] sm:$0xff]
  %v994 = vld [vmem:[%s1 + $0x20] sm:$0xff]
  %v995 = vld [vmem:[%s1 + $0x28] sm:$0xff]
  %v996 = vld [vmem:[%s1 + $0x30] sm:$0xff]
  %v997 = vld [vmem:[%s1 + $0x38] sm:$0xff]
  %v998 = vld [vmem:[%s1 + $0x40] sm:$0xff]
  %v999 = vld [vmem:[%s1 + $0x48] sm:$0xff]
  %v1000 = vld [vmem:[%s1 + $0x50] sm:$0xff]
  %v1001 = vld [vmem:[%s1 + $0x58] sm:$0xff]
  %v1002 = vld [vmem:[%s1 + $0x60] sm:$0xff]
  %v1003 = vld [vmem:[%s1 + $0x68] sm:$0xff]
  %v1004 = vld [vmem:[%s1 + $0x70] sm:$0xff]
  %v1005 = vld [vmem:[%s1 + $0x78] sm:$0xff]
  %v1006 = vld [vmem:[%s1 + $0x80] sm:$0xff]
  %v1007 = vld [vmem:[%s1 + $0x88] sm:$0xff]
  %v1008 = vld [vmem:[%s1 + $0x90] sm:$0xff]
  %v1009 = vld [vmem:[%s1 + $0x98] sm:$0xff]
  %v1010 = vld [vmem:[%s1 + $0xa0] sm:$0xff]
  %v1011 = vld [vmem:[%s1 + $0xa8] sm:$0xff]
  %v1012 = vld [vmem:[%s1 + $0xb0] sm:$0xff]
  %v1013 = vld [vmem:[%s1 + $0xb8] sm:$0xff]
  %v1014 = vld [vmem:[%s1 + $0xc0] sm:$0xff]
  %v1015 = vld [vmem:[%s1 + $0xc8] sm:$0xff]
  %v1016 = vld [vmem:[%s1 + $0xd0] sm:$0xff]
  %v1017 = vld [vmem:[%s1 + $0xd8] sm:$0xff]
  %v1018 = vld [vmem:[%s1 + $0xe0] sm:$0xff]
  %v1019 = vld [vmem:[%s1 + $0xe8] sm:$0xff]
  %v1020 = vld [vmem:[%s1 + $0xf0] sm:$0xff]
  %v1021 = vld [vmem:[%s1 + $0xf8] sm:$0xff]
  %v1022 = vld [vmem:[%s1 + $0x100] sm:$0xff]
  %v1023 = vld [vmem:[%s1 + $0x108] sm:$0xff]
  %v1024 = vld [vmem:[%s1 + $0x110] sm:$0xff]
  %v1025 = vld [vmem:[%s1 + $0x118] sm:$0xff]
  %v1026 = vld [vmem:[%s1 + $0x120] sm:$0xff]
  %v1027 = vld [vmem:[%s1 + $0x128] sm:$0xff]
  %v1028 = vld [vmem:[%s1 + $0x130] sm:$0xff]
  %v1029 = vld [vmem:[%s1 + $0x138] sm:$0xff]
  %v1030 = vld [vmem:[%s1 + $0x140] sm:$0xff]
  %v1031 = vld [vmem:[%s1 + $0x148] sm:$0xff]
  %v1032 = vld [vmem:[%s1 + $0x150] sm:$0xff]
  %v1033 = vld [vmem:[%s1 + $0x158] sm:$0xff]
  %v1034 = vld [vmem:[%s1 + $0x160] sm:$0xff]
  %v1035 = vld [vmem:[%s1 + $0x168] sm:$0xff]
  %v1036 = vld [vmem:[%s1 + $0x170] sm:$0xff]
  %v1037 = vld [vmem:[%s1 + $0x178] sm:$0xff]
  %v1038 = vld [vmem:[%s1 + $0x180] sm:$0xff]
  %v1039 = vld [vmem:[%s1 + $0x188] sm:$0xff]
  %v1040 = vld [vmem:[%s1 + $0x190] sm:$0xff]
  %v1041 = vld [vmem:[%s1 + $0x198] sm:$0xff]
  %v1042 = vld [vmem:[%s1 + $0x1a0] sm:$0xff]
  %v1043 = vld [vmem:[%s1 + $0x1a8] sm:$0xff]
  %v1044 = vld [vmem:[%s1 + $0x1b0] sm:$0xff]
  %v1045 = vld [vmem:[%s1 + $0x1b8] sm:$0xff]
  %v1046 = vld [vmem:[%s1 + $0x1c0] sm:$0xff]
  %v1047 = vld [vmem:[%s1 + $0x1c8] sm:$0xff]
  %v1048 = vld [vmem:[%s1 + $0x1d0] sm:$0xff]
  %v1049 = vld [vmem:[%s1 + $0x1d8] sm:$0xff]
  %v1050 = vld [vmem:[%s1 + $0x1e0] sm:$0xff]
  %v1051 = vld [vmem:[%s1 + $0x1e8] sm:$0xff]
  %v1052 = vld [vmem:[%s1 + $0x1f0] sm:$0xff]
  %v1053 = vld [vmem:[%s1 + $0x1f8] sm:$0xff]
  %1054 = vmatprep.subr.mxu0 %v1051
  %1055 = vmatpush1.msra.mxu0 %v1050
  %1056 = vmatprep.subr.mxu0 %v1047
  %1057 = vmatpush1.msra.mxu0 %v1046
  %1058 = vmatprep.subr.mxu0 %v1043
  %1059 = vmatpush1.msra.mxu0 %v1042
  %1060 = vmatprep.subr.mxu0 %v1039
  %1061 = vmatpush1.msra.mxu0 %v1038
  %1062 = vmatprep.subr.mxu0 %v1035
  %1063 = vmatpush1.msra.mxu0 %v1034
  %1064 = vmatprep.subr.mxu0 %v1031
  %1065 = vmatpush1.msra.mxu0 %v1030
  %1066 = vmatprep.subr.mxu0 %v1027
  %1067 = vmatpush1.msra.mxu0 %v1026
  %1068 = vmatprep.subr.mxu0 %v1023
  %1069 = vmatpush1.msra.mxu0 %v1022
  %1070 = vmatprep.subr.mxu0 %v1019
  %1071 = vmatpush1.msra.mxu0 %v1018
  %1072 = vmatprep.subr.mxu0 %v1015
  %1073 = vmatpush1.msra.mxu0 %v1014
  %1074 = vmatprep.subr.mxu0 %v1011
  %1075 = vmatpush1.msra.mxu0 %v1010
  %1076 = vmatprep.subr.mxu0 %v1007
  %1077 = vmatpush1.msra.mxu0 %v1006
  %1078 = vmatprep.subr.mxu0 %v1003
  %1079 = vmatpush1.msra.mxu0 %v1002
  %1080 = vmatprep.subr.mxu0 %v999
  %1081 = vmatpush1.msra.mxu0 %v998
  %1082 = vmatprep.subr.mxu0 %v995
  %1083 = vmatpush1.msra.mxu0 %v994
  %1084 = vmatprep.subr.mxu0 %v991
  %1085 = vmatpush1.msra.mxu0 %v990
  %1086 = vmatprep.subr.mxu0 0.0
  %1087 = vmatpush2.msra.mxu0 0.0
  %1088 = vmatprep.subr.mxu0 0.0
  %1089 = vmatpush2.msra.mxu0 0.0
  %1090 = vmatprep.subr.mxu0 0.0
  %1091 = vmatpush2.msra.mxu0 0.0
  %1092 = vmatprep.subr.mxu0 0.0
  %1093 = vmatpush2.msra.mxu0 0.0
  %1094 = vmatprep.subr.mxu0 0.0
  %1095 = vmatpush2.msra.mxu0 0.0
  %1096 = vmatprep.subr.mxu0 0.0
  %1097 = vmatpush2.msra.mxu0 0.0
  %1098 = vmatprep.subr.mxu0 0.0
  %1099 = vmatpush2.msra.mxu0 0.0
  %1100 = vmatprep.subr.mxu0 0.0
  %1101 = vmatpush2.msra.mxu0 0.0
  %1102 = vmatprep.subr.mxu0 0.0
  %1103 = vmatpush2.msra.mxu0 0.0
  %1104 = vmatprep.subr.mxu0 0.0
  %1105 = vmatpush2.msra.mxu0 0.0
  %1106 = vmatprep.subr.mxu0 0.0
  %1107 = vmatpush2.msra.mxu0 0.0
  %1108 = vmatprep.subr.mxu0 0.0
  %1109 = vmatpush2.msra.mxu0 0.0
  %1110 = vmatprep.subr.mxu0 0.0
  %1111 = vmatpush2.msra.mxu0 0.0
  %1112 = vmatprep.subr.mxu0 0.0
  %1113 = vmatpush2.msra.mxu0 0.0
  %1114 = vmatprep.subr.mxu0 0.0
  %1115 = vmatpush2.msra.mxu0 0.0
  %1116 = vmatprep.subr.mxu0 0.0
  %1117 = vmatpush2.msra.mxu0 0.0
  %1118 = vmatprep.mubr.f32.mxu0 0.0
  %1119 = vmatmul.mubr.f32.gmra.mxu0 %v981
  %v1120 = vpop.f32.mrf.mxu0
  %v1121 = vadd.f32 0.0, %v1120
  %v1122 = vpop.f32.mrf.mxu0
  %v1123 = vadd.f32 0.0, %v1122
  %1124 = vdwg.mxu0
  %1125 = vmatprep.subr.mxu0 %v1053
  %1126 = vmatpush1.msra.mxu0 %v1052
  %1127 = vmatprep.subr.mxu0 %v1049
  %1128 = vmatpush1.msra.mxu0 %v1048
  %1129 = vmatprep.subr.mxu0 %v1045
  %1130 = vmatpush1.msra.mxu0 %v1044
  %1131 = vmatprep.subr.mxu0 %v1041
  %1132 = vmatpush1.msra.mxu0 %v1040
  %1133 = vmatprep.subr.mxu0 %v1037
  %1134 = vmatpush1.msra.mxu0 %v1036
  %1135 = vmatprep.subr.mxu0 %v1033
  %1136 = vmatpush1.msra.mxu0 %v1032
  %1137 = vmatprep.subr.mxu0 %v1029
  %1138 = vmatpush1.msra.mxu0 %v1028
  %1139 = vmatprep.subr.mxu0 %v1025
  %1140 = vmatpush1.msra.mxu0 %v1024
  %1141 = vmatprep.subr.mxu0 %v1021
  %1142 = vmatpush1.msra.mxu0 %v1020
  %1143 = vmatprep.subr.mxu0 %v1017
  %1144 = vmatpush1.msra.mxu0 %v1016
  %1145 = vmatprep.subr.mxu0 %v1013
  %1146 = vmatpush1.msra.mxu0 %v1012
  %1147 = vmatprep.subr.mxu0 %v1009
  %1148 = vmatpush1.msra.mxu0 %v1008
  %1149 = vmatprep.subr.mxu0 %v1005
  %1150 = vmatpush1.msra.mxu0 %v1004
  %1151 = vmatprep.subr.mxu0 %v1001
  %1152 = vmatpush1.msra.mxu0 %v1000
  %1153 = vmatprep.subr.mxu0 %v997
  %1154 = vmatpush1.msra.mxu0 %v996
  %1155 = vmatprep.subr.mxu0 %v993
  %1156 = vmatpush1.msra.mxu0 %v992
  %1157 = vmatprep.subr.mxu0 0.0
  %1158 = vmatpush2.msra.mxu0 0.0
  %1159 = vmatprep.subr.mxu0 0.0
  %1160 = vmatpush2.msra.mxu0 0.0
  %1161 = vmatprep.subr.mxu0 0.0
  %1162 = vmatpush2.msra.mxu0 0.0
  %1163 = vmatprep.subr.mxu0 0.0
  %1164 = vmatpush2.msra.mxu0 0.0
  %1165 = vmatprep.subr.mxu0 0.0
  %1166 = vmatpush2.msra.mxu0 0.0
  %1167 = vmatprep.subr.mxu0 0.0
  %1168 = vmatpush2.msra.mxu0 0.0
  %1169 = vmatprep.subr.mxu0 0.0
  %1170 = vmatpush2.msra.mxu0 0.0
  %1171 = vmatprep.subr.mxu0 0.0
  %1172 = vmatpush2.msra.mxu0 0.0
  %1173 = vmatprep.subr.mxu0 0.0
  %1174 = vmatpush2.msra.mxu0 0.0
  %1175 = vmatprep.subr.mxu0 0.0
  %1176 = vmatpush2.msra.mxu0 0.0
  %1177 = vmatprep.subr.mxu0 0.0
  %1178 = vmatpush2.msra.mxu0 0.0
  %1179 = vmatprep.subr.mxu0 0.0
  %1180 = vmatpush2.msra.mxu0 0.0
  %1181 = vmatprep.subr.mxu0 0.0
  %1182 = vmatpush2.msra.mxu0 0.0
  %1183 = vmatprep.subr.mxu0 0.0
  %1184 = vmatpush2.msra.mxu0 0.0
  %1185 = vmatprep.subr.mxu0 0.0
  %1186 = vmatpush2.msra.mxu0 0.0
  %1187 = vmatprep.subr.mxu0 0.0
  %1188 = vmatpush2.msra.mxu0 0.0
  %1189 = vmatprep.mubr.f32.mxu0 0.0
  %1190 = vmatmul.mubr.f32.gmra.mxu0 %v981
  %v1191 = vpop.f32.mrf.mxu0
  %v1192 = vadd.f32 0.0, %v1191
  %v1193 = vpop.f32.mrf.mxu0
  %v1194 = vadd.f32 0.0, %v1193
  %1195 = vdwg.mxu0
  %v1196 = vadd.f32 %v986, %v1121
  %v1197 = vadd.f32 %v987, %v1123
  %v1198 = vadd.f32 %v988, %v1192
  %v1199 = vadd.f32 %v989, %v1194
  %v1200 = vxor.u32 %v1196, 2147483648
  %v1201 = vmul.f32 %v1200, 1.442695
  %v1202 = vpow.pop %v1201
  %v1203 = vadd.f32 %v1202, 1.0
  %v1204 = vrcp.pop %v1203
  %v1205 = vmul.f32 1.0, %v1204
  %v1206 = vxor.u32 %v1197, 2147483648
  %v1207 = vmul.f32 %v1206, 1.442695
  %v1208 = vpow.pop %v1207
  %v1209 = vadd.f32 %v1208, 1.0
  %v1210 = vrcp.pop %v1209
  %v1211 = vmul.f32 1.0, %v1210
  %v1212 = vtanh.pop %v1198
  %v1213 = vxor.u32 %v1199, 2147483648
  %v1214 = vmul.f32 %v1213, 1.442695
  %v1215 = vpow.pop %v1214
  %v1216 = vadd.f32 %v1215, 1.0
  %v1217 = vrcp.pop %v1216
  %v1218 = vmul.f32 1.0, %v1217
  %v1219 = vmul.f32 %v1211, %v979
  %v1220 = vmul.f32 %v1205, %v1212
  %v1221 = vadd.f32 %v1219, %v1220
  %v1222 = vtanh.pop %v1221
  %v1223 = vmul.f32 %v1218, %v1222
  %v1224 = vmax.f32 %v1223, 0.0
  %s1225 = scalar_lea.vmem %s2, 32
  %1226 = vst [vmem:[%s1225] sm:$0xff] %v1224
  %s1227 = scalar_lea.vmem %s0, 160
  %v1228 = vld [vmem:[%s1227] sm:$0xff]
  %v1229 = vld [vmem:[%s1227 + $0x8] sm:$0xff]
  %v1230 = vld [vmem:[%s1227 + $0x10] sm:$0xff]
  %v1231 = vld [vmem:[%s1227 + $0x18] sm:$0xff]
  %v1232 = vld [vmem:[%s1] sm:$0xff]
  %v1233 = vld [vmem:[%s1 + $0x8] sm:$0xff]
  %v1234 = vld [vmem:[%s1 + $0x10] sm:$0xff]
  %v1235 = vld [vmem:[%s1 + $0x18] sm:$0xff]
  %v1236 = vld [vmem:[%s1 + $0x20] sm:$0xff]
  %v1237 = vld [vmem:[%s1 + $0x28] sm:$0xff]
  %v1238 = vld [vmem:[%s1 + $0x30] sm:$0xff]
  %v1239 = vld [vmem:[%s1 + $0x38] sm:$0xff]
  %v1240 = vld [vmem:[%s1 + $0x40] sm:$0xff]
  %v1241 = vld [vmem:[%s1 + $0x48] sm:$0xff]
  %v1242 = vld [vmem:[%s1 + $0x50] sm:$0xff]
  %v1243 = vld [vmem:[%s1 + $0x58] sm:$0xff]
  %v1244 = vld [vmem:[%s1 + $0x60] sm:$0xff]
  %v1245 = vld [vmem:[%s1 + $0x68] sm:$0xff]
  %v1246 = vld [vmem:[%s1 + $0x70] sm:$0xff]
  %v1247 = vld [vmem:[%s1 + $0x78] sm:$0xff]
  %v1248 = vld [vmem:[%s1 + $0x80] sm:$0xff]
  %v1249 = vld [vmem:[%s1 + $0x88] sm:$0xff]
  %v1250 = vld [vmem:[%s1 + $0x90] sm:$0xff]
  %v1251 = vld [vmem:[%s1 + $0x98] sm:$0xff]
  %v1252 = vld [vmem:[%s1 + $0xa0] sm:$0xff]
  %v1253 = vld [vmem:[%s1 + $0xa8] sm:$0xff]
  %v1254 = vld [vmem:[%s1 + $0xb0] sm:$0xff]
  %v1255 = vld [vmem:[%s1 + $0xb8] sm:$0xff]
  %v1256 = vld [vmem:[%s1 + $0xc0] sm:$0xff]
  %v1257 = vld [vmem:[%s1 + $0xc8] sm:$0xff]
  %v1258 = vld [vmem:[%s1 + $0xd0] sm:$0xff]
  %v1259 = vld [vmem:[%s1 + $0xd8] sm:$0xff]
  %v1260 = vld [vmem:[%s1 + $0xe0] sm:$0xff]
  %v1261 = vld [vmem:[%s1 + $0xe8] sm:$0xff]
  %v1262 = vld [vmem:[%s1 + $0xf0] sm:$0xff]
  %v1263 = vld [vmem:[%s1 + $0xf8] sm:$0xff]
  %v1264 = vld [vmem:[%s1 + $0x100] sm:$0xff]
  %v1265 = vld [vmem:[%s1 + $0x108] sm:$0xff]
  %v1266 = vld [vmem:[%s1 + $0x110] sm:$0xff]
  %v1267 = vld [vmem:[%s1 + $0x118] sm:$0xff]
  %v1268 = vld [vmem:[%s1 + $0x120] sm:$0xff]
  %v1269 = vld [vmem:[%s1 + $0x128] sm:$0xff]
  %v1270 = vld [vmem:[%s1 + $0x130] sm:$0xff]
  %v1271 = vld [vmem:[%s1 + $0x138] sm:$0xff]
  %v1272 = vld [vmem:[%s1 + $0x140] sm:$0xff]
  %v1273 = vld [vmem:[%s1 + $0x148] sm:$0xff]
  %v1274 = vld [vmem:[%s1 + $0x150] sm:$0xff]
  %v1275 = vld [vmem:[%s1 + $0x158] sm:$0xff]
  %v1276 = vld [vmem:[%s1 + $0x160] sm:$0xff]
  %v1277 = vld [vmem:[%s1 + $0x168] sm:$0xff]
  %v1278 = vld [vmem:[%s1 + $0x170] sm:$0xff]
  %v1279 = vld [vmem:[%s1 + $0x178] sm:$0xff]
  %v1280 = vld [vmem:[%s1 + $0x180] sm:$0xff]
  %v1281 = vld [vmem:[%s1 + $0x188] sm:$0xff]
  %v1282 = vld [vmem:[%s1 + $0x190] sm:$0xff]
  %v1283 = vld [vmem:[%s1 + $0x198] sm:$0xff]
  %v1284 = vld [vmem:[%s1 + $0x1a0] sm:$0xff]
  %v1285 = vld [vmem:[%s1 + $0x1a8] sm:$0xff]
  %v1286 = vld [vmem:[%s1 + $0x1b0] sm:$0xff]
  %v1287 = vld [vmem:[%s1 + $0x1b8] sm:$0xff]
  %v1288 = vld [vmem:[%s1 + $0x1c0] sm:$0xff]
  %v1289 = vld [vmem:[%s1 + $0x1c8] sm:$0xff]
  %v1290 = vld [vmem:[%s1 + $0x1d0] sm:$0xff]
  %v1291 = vld [vmem:[%s1 + $0x1d8] sm:$0xff]
  %v1292 = vld [vmem:[%s1 + $0x1e0] sm:$0xff]
  %v1293 = vld [vmem:[%s1 + $0x1e8] sm:$0xff]
  %v1294 = vld [vmem:[%s1 + $0x1f0] sm:$0xff]
  %v1295 = vld [vmem:[%s1 + $0x1f8] sm:$0xff]
  %1296 = vmatprep.subr.mxu0 %v1293
  %1297 = vmatpush1.msra.mxu0 %v1292
  %1298 = vmatprep.subr.mxu0 %v1289
  %1299 = vmatpush1.msra.mxu0 %v1288
  %1300 = vmatprep.subr.mxu0 %v1285
  %1301 = vmatpush1.msra.mxu0 %v1284
  %1302 = vmatprep.subr.mxu0 %v1281
  %1303 = vmatpush1.msra.mxu0 %v1280
  %1304 = vmatprep.subr.mxu0 %v1277
  %1305 = vmatpush1.msra.mxu0 %v1276
  %1306 = vmatprep.subr.mxu0 %v1273
  %1307 = vmatpush1.msra.mxu0 %v1272
  %1308 = vmatprep.subr.mxu0 %v1269
  %1309 = vmatpush1.msra.mxu0 %v1268
  %1310 = vmatprep.subr.mxu0 %v1265
  %1311 = vmatpush1.msra.mxu0 %v1264
  %1312 = vmatprep.subr.mxu0 %v1261
  %1313 = vmatpush1.msra.mxu0 %v1260
  %1314 = vmatprep.subr.mxu0 %v1257
  %1315 = vmatpush1.msra.mxu0 %v1256
  %1316 = vmatprep.subr.mxu0 %v1253
  %1317 = vmatpush1.msra.mxu0 %v1252
  %1318 = vmatprep.subr.mxu0 %v1249
  %1319 = vmatpush1.msra.mxu0 %v1248
  %1320 = vmatprep.subr.mxu0 %v1245
  %1321 = vmatpush1.msra.mxu0 %v1244
  %1322 = vmatprep.subr.mxu0 %v1241
  %1323 = vmatpush1.msra.mxu0 %v1240
  %1324 = vmatprep.subr.mxu0 %v1237
  %1325 = vmatpush1.msra.mxu0 %v1236
  %1326 = vmatprep.subr.mxu0 %v1233
  %1327 = vmatpush1.msra.mxu0 %v1232
  %1328 = vmatprep.subr.mxu0 0.0
  %1329 = vmatpush2.msra.mxu0 0.0
  %1330 = vmatprep.subr.mxu0 0.0
  %1331 = vmatpush2.msra.mxu0 0.0
  %1332 = vmatprep.subr.mxu0 0.0
  %1333 = vmatpush2.msra.mxu0 0.0
  %1334 = vmatprep.subr.mxu0 0.0
  %1335 = vmatpush2.msra.mxu0 0.0
  %1336 = vmatprep.subr.mxu0 0.0
  %1337 = vmatpush2.msra.mxu0 0.0
  %1338 = vmatprep.subr.mxu0 0.0
  %1339 = vmatpush2.msra.mxu0 0.0
  %1340 = vmatprep.subr.mxu0 0.0
  %1341 = vmatpush2.msra.mxu0 0.0
  %1342 = vmatprep.subr.mxu0 0.0
  %1343 = vmatpush2.msra.mxu0 0.0
  %1344 = vmatprep.subr.mxu0 0.0
  %1345 = vmatpush2.msra.mxu0 0.0
  %1346 = vmatprep.subr.mxu0 0.0
  %1347 = vmatpush2.msra.mxu0 0.0
  %1348 = vmatprep.subr.mxu0 0.0
  %1349 = vmatpush2.msra.mxu0 0.0
  %1350 = vmatprep.subr.mxu0 0.0
  %1351 = vmatpush2.msra.mxu0 0.0
  %1352 = vmatprep.subr.mxu0 0.0
  %1353 = vmatpush2.msra.mxu0 0.0
  %1354 = vmatprep.subr.mxu0 0.0
  %1355 = vmatpush2.msra.mxu0 0.0
  %1356 = vmatprep.subr.mxu0 0.0
  %1357 = vmatpush2.msra.mxu0 0.0
  %1358 = vmatprep.subr.mxu0 0.0
  %1359 = vmatpush2.msra.mxu0 0.0
  %1360 = vmatprep.mubr.f32.mxu0 0.0
  %1361 = vmatmul.mubr.f32.gmra.mxu0 %v1223
  %v1362 = vpop.f32.mrf.mxu0
  %v1363 = vadd.f32 0.0, %v1362
  %v1364 = vpop.f32.mrf.mxu0
  %v1365 = vadd.f32 0.0, %v1364
  %1366 = vdwg.mxu0
  %1367 = vmatprep.subr.mxu0 %v1295
  %1368 = vmatpush1.msra.mxu0 %v1294
  %1369 = vmatprep.subr.mxu0 %v1291
  %1370 = vmatpush1.msra.mxu0 %v1290
  %1371 = vmatprep.subr.mxu0 %v1287
  %1372 = vmatpush1.msra.mxu0 %v1286
  %1373 = vmatprep.subr.mxu0 %v1283
  %1374 = vmatpush1.msra.mxu0 %v1282
  %1375 = vmatprep.subr.mxu0 %v1279
  %1376 = vmatpush1.msra.mxu0 %v1278
  %1377 = vmatprep.subr.mxu0 %v1275
  %1378 = vmatpush1.msra.mxu0 %v1274
  %1379 = vmatprep.subr.mxu0 %v1271
  %1380 = vmatpush1.msra.mxu0 %v1270
  %1381 = vmatprep.subr.mxu0 %v1267
  %1382 = vmatpush1.msra.mxu0 %v1266
  %1383 = vmatprep.subr.mxu0 %v1263
  %1384 = vmatpush1.msra.mxu0 %v1262
  %1385 = vmatprep.subr.mxu0 %v1259
  %1386 = vmatpush1.msra.mxu0 %v1258
  %1387 = vmatprep.subr.mxu0 %v1255
  %1388 = vmatpush1.msra.mxu0 %v1254
  %1389 = vmatprep.subr.mxu0 %v1251
  %1390 = vmatpush1.msra.mxu0 %v1250
  %1391 = vmatprep.subr.mxu0 %v1247
  %1392 = vmatpush1.msra.mxu0 %v1246
  %1393 = vmatprep.subr.mxu0 %v1243
  %1394 = vmatpush1.msra.mxu0 %v1242
  %1395 = vmatprep.subr.mxu0 %v1239
  %1396 = vmatpush1.msra.mxu0 %v1238
  %1397 = vmatprep.subr.mxu0 %v1235
  %1398 = vmatpush1.msra.mxu0 %v1234
  %1399 = vmatprep.subr.mxu0 0.0
  %1400 = vmatpush2.msra.mxu0 0.0
  %1401 = vmatprep.subr.mxu0 0.0
  %1402 = vmatpush2.msra.mxu0 0.0
  %1403 = vmatprep.subr.mxu0 0.0
  %1404 = vmatpush2.msra.mxu0 0.0
  %1405 = vmatprep.subr.mxu0 0.0
  %1406 = vmatpush2.msra.mxu0 0.0
  %1407 = vmatprep.subr.mxu0 0.0
  %1408 = vmatpush2.msra.mxu0 0.0
  %1409 = vmatprep.subr.mxu0 0.0
  %1410 = vmatpush2.msra.mxu0 0.0
  %1411 = vmatprep.subr.mxu0 0.0
  %1412 = vmatpush2.msra.mxu0 0.0
  %1413 = vmatprep.subr.mxu0 0.0
  %1414 = vmatpush2.msra.mxu0 0.0
  %1415 = vmatprep.subr.mxu0 0.0
  %1416 = vmatpush2.msra.mxu0 0.0
  %1417 = vmatprep.subr.mxu0 0.0
  %1418 = vmatpush2.msra.mxu0 0.0
  %1419 = vmatprep.subr.mxu0 0.0
  %1420 = vmatpush2.msra.mxu0 0.0
  %1421 = vmatprep.subr.mxu0 0.0
  %1422 = vmatpush2.msra.mxu0 0.0
  %1423 = vmatprep.subr.mxu0 0.0
  %1424 = vmatpush2.msra.mxu0 0.0
  %1425 = vmatprep.subr.mxu0 0.0
  %1426 = vmatpush2.msra.mxu0 0.0
  %1427 = vmatprep.subr.mxu0 0.0
  %1428 = vmatpush2.msra.mxu0 0.0
  %1429 = vmatprep.subr.mxu0 0.0
  %1430 = vmatpush2.msra.mxu0 0.0
  %1431 = vmatprep.mubr.f32.mxu0 0.0
  %1432 = vmatmul.mubr.f32.gmra.mxu0 %v1223
  %v1433 = vpop.f32.mrf.mxu0
  %v1434 = vadd.f32 0.0, %v1433
  %v1435 = vpop.f32.mrf.mxu0
  %v1436 = vadd.f32 0.0, %v1435
  %1437 = vdwg.mxu0
  %v1438 = vadd.f32 %v1228, %v1363
  %v1439 = vadd.f32 %v1229, %v1365
  %v1440 = vadd.f32 %v1230, %v1434
  %v1441 = vadd.f32 %v1231, %v1436
  %v1442 = vxor.u32 %v1438, 2147483648
  %v1443 = vmul.f32 %v1442, 1.442695
  %v1444 = vpow.pop %v1443
  %v1445 = vadd.f32 %v1444, 1.0
  %v1446 = vrcp.pop %v1445
  %v1447 = vmul.f32 1.0, %v1446
  %v1448 = vxor.u32 %v1439, 2147483648
  %v1449 = vmul.f32 %v1448, 1.442695
  %v1450 = vpow.pop %v1449
  %v1451 = vadd.f32 %v1450, 1.0
  %v1452 = vrcp.pop %v1451
  %v1453 = vmul.f32 1.0, %v1452
  %v1454 = vtanh.pop %v1440
  %v1455 = vxor.u32 %v1441, 2147483648
  %v1456 = vmul.f32 %v1455, 1.442695
  %v1457 = vpow.pop %v1456
  %v1458 = vadd.f32 %v1457, 1.0
  %v1459 = vrcp.pop %v1458
  %v1460 = vmul.f32 1.0, %v1459
  %v1461 = vmul.f32 %v1453, %v1221
  %v1462 = vmul.f32 %v1447, %v1454
  %v1463 = vadd.f32 %v1461, %v1462
  %v1464 = vtanh.pop %v1463
  %v1465 = vmul.f32 %v1460, %v1464
  %v1466 = vmax.f32 %v1465, 0.0
  %s1467 = scalar_lea.vmem %s2, 40
  %1468 = vst [vmem:[%s1467] sm:$0xff] %v1466
  %s1469 = scalar_lea.vmem %s0, 192
  %v1470 = vld [vmem:[%s1469] sm:$0xff]
  %v1471 = vld [vmem:[%s1469 + $0x8] sm:$0xff]
  %v1472 = vld [vmem:[%s1469 + $0x10] sm:$0xff]
  %v1473 = vld [vmem:[%s1469 + $0x18] sm:$0xff]
  %v1474 = vld [vmem:[%s1] sm:$0xff]
  %v1475 = vld [vmem:[%s1 + $0x8] sm:$0xff]
  %v1476 = vld [vmem:[%s1 + $0x10] sm:$0xff]
  %v1477 = vld [vmem:[%s1 + $0x18] sm:$0xff]
  %v1478 = vld [vmem:[%s1 + $0x20] sm:$0xff]
  %v1479 = vld [vmem:[%s1 + $0x28] sm:$0xff]
  %v1480 = vld [vmem:[%s1 + $0x30] sm:$0xff]
  %v1481 = vld [vmem:[%s1 + $0x38] sm:$0xff]
  %v1482 = vld [vmem:[%s1 + $0x40] sm:$0xff]
  %v1483 = vld [vmem:[%s1 + $0x48] sm:$0xff]
  %v1484 = vld [vmem:[%s1 + $0x50] sm:$0xff]
  %v1485 = vld [vmem:[%s1 + $0x58] sm:$0xff]
  %v1486 = vld [vmem:[%s1 + $0x60] sm:$0xff]
  %v1487 = vld [vmem:[%s1 + $0x68] sm:$0xff]
  %v1488 = vld [vmem:[%s1 + $0x70] sm:$0xff]
  %v1489 = vld [vmem:[%s1 + $0x78] sm:$0xff]
  %v1490 = vld [vmem:[%s1 + $0x80] sm:$0xff]
  %v1491 = vld [vmem:[%s1 + $0x88] sm:$0xff]
  %v1492 = vld [vmem:[%s1 + $0x90] sm:$0xff]
  %v1493 = vld [vmem:[%s1 + $0x98] sm:$0xff]
  %v1494 = vld [vmem:[%s1 + $0xa0] sm:$0xff]
  %v1495 = vld [vmem:[%s1 + $0xa8] sm:$0xff]
  %v1496 = vld [vmem:[%s1 + $0xb0] sm:$0xff]
  %v1497 = vld [vmem:[%s1 + $0xb8] sm:$0xff]
  %v1498 = vld [vmem:[%s1 + $0xc0] sm:$0xff]
  %v1499 = vld [vmem:[%s1 + $0xc8] sm:$0xff]
  %v1500 = vld [vmem:[%s1 + $0xd0] sm:$0xff]
  %v1501 = vld [vmem:[%s1 + $0xd8] sm:$0xff]
  %v1502 = vld [vmem:[%s1 + $0xe0] sm:$0xff]
  %v1503 = vld [vmem:[%s1 + $0xe8] sm:$0xff]
  %v1504 = vld [vmem:[%s1 + $0xf0] sm:$0xff]
  %v1505 = vld [vmem:[%s1 + $0xf8] sm:$0xff]
  %v1506 = vld [vmem:[%s1 + $0x100] sm:$0xff]
  %v1507 = vld [vmem:[%s1 + $0x108] sm:$0xff]
  %v1508 = vld [vmem:[%s1 + $0x110] sm:$0xff]
  %v1509 = vld [vmem:[%s1 + $0x118] sm:$0xff]
  %v1510 = vld [vmem:[%s1 + $0x120] sm:$0xff]
  %v1511 = vld [vmem:[%s1 + $0x128] sm:$0xff]
  %v1512 = vld [vmem:[%s1 + $0x130] sm:$0xff]
  %v1513 = vld [vmem:[%s1 + $0x138] sm:$0xff]
  %v1514 = vld [vmem:[%s1 + $0x140] sm:$0xff]
  %v1515 = vld [vmem:[%s1 + $0x148] sm:$0xff]
  %v1516 = vld [vmem:[%s1 + $0x150] sm:$0xff]
  %v1517 = vld [vmem:[%s1 + $0x158] sm:$0xff]
  %v1518 = vld [vmem:[%s1 + $0x160] sm:$0xff]
  %v1519 = vld [vmem:[%s1 + $0x168] sm:$0xff]
  %v1520 = vld [vmem:[%s1 + $0x170] sm:$0xff]
  %v1521 = vld [vmem:[%s1 + $0x178] sm:$0xff]
  %v1522 = vld [vmem:[%s1 + $0x180] sm:$0xff]
  %v1523 = vld [vmem:[%s1 + $0x188] sm:$0xff]
  %v1524 = vld [vmem:[%s1 + $0x190] sm:$0xff]
  %v1525 = vld [vmem:[%s1 + $0x198] sm:$0xff]
  %v1526 = vld [vmem:[%s1 + $0x1a0] sm:$0xff]
  %v1527 = vld [vmem:[%s1 + $0x1a8] sm:$0xff]
  %v1528 = vld [vmem:[%s1 + $0x1b0] sm:$0xff]
  %v1529 = vld [vmem:[%s1 + $0x1b8] sm:$0xff]
  %v1530 = vld [vmem:[%s1 + $0x1c0] sm:$0xff]
  %v1531 = vld [vmem:[%s1 + $0x1c8] sm:$0xff]
  %v1532 = vld [vmem:[%s1 + $0x1d0] sm:$0xff]
  %v1533 = vld [vmem:[%s1 + $0x1d8] sm:$0xff]
  %v1534 = vld [vmem:[%s1 + $0x1e0] sm:$0xff]
  %v1535 = vld [vmem:[%s1 + $0x1e8] sm:$0xff]
  %v1536 = vld [vmem:[%s1 + $0x1f0] sm:$0xff]
  %v1537 = vld [vmem:[%s1 + $0x1f8] sm:$0xff]
  %1538 = vmatprep.subr.mxu0 %v1535
  %1539 = vmatpush1.msra.mxu0 %v1534
  %1540 = vmatprep.subr.mxu0 %v1531
  %1541 = vmatpush1.msra.mxu0 %v1530
  %1542 = vmatprep.subr.mxu0 %v1527
  %1543 = vmatpush1.msra.mxu0 %v1526
  %1544 = vmatprep.subr.mxu0 %v1523
  %1545 = vmatpush1.msra.mxu0 %v1522
  %1546 = vmatprep.subr.mxu0 %v1519
  %1547 = vmatpush1.msra.mxu0 %v1518
  %1548 = vmatprep.subr.mxu0 %v1515
  %1549 = vmatpush1.msra.mxu0 %v1514
  %1550 = vmatprep.subr.mxu0 %v1511
  %1551 = vmatpush1.msra.mxu0 %v1510
  %1552 = vmatprep.subr.mxu0 %v1507
  %1553 = vmatpush1.msra.mxu0 %v1506
  %1554 = vmatprep.subr.mxu0 %v1503
  %1555 = vmatpush1.msra.mxu0 %v1502
  %1556 = vmatprep.subr.mxu0 %v1499
  %1557 = vmatpush1.msra.mxu0 %v1498
  %1558 = vmatprep.subr.mxu0 %v1495
  %1559 = vmatpush1.msra.mxu0 %v1494
  %1560 = vmatprep.subr.mxu0 %v1491
  %1561 = vmatpush1.msra.mxu0 %v1490
  %1562 = vmatprep.subr.mxu0 %v1487
  %1563 = vmatpush1.msra.mxu0 %v1486
  %1564 = vmatprep.subr.mxu0 %v1483
  %1565 = vmatpush1.msra.mxu0 %v1482
  %1566 = vmatprep.subr.mxu0 %v1479
  %1567 = vmatpush1.msra.mxu0 %v1478
  %1568 = vmatprep.subr.mxu0 %v1475
  %1569 = vmatpush1.msra.mxu0 %v1474
  %1570 = vmatprep.subr.mxu0 0.0
  %1571 = vmatpush2.msra.mxu0 0.0
  %1572 = vmatprep.subr.mxu0 0.0
  %1573 = vmatpush2.msra.mxu0 0.0
  %1574 = vmatprep.subr.mxu0 0.0
  %1575 = vmatpush2.msra.mxu0 0.0
  %1576 = vmatprep.subr.mxu0 0.0
  %1577 = vmatpush2.msra.mxu0 0.0
  %1578 = vmatprep.subr.mxu0 0.0
  %1579 = vmatpush2.msra.mxu0 0.0
  %1580 = vmatprep.subr.mxu0 0.0
  %1581 = vmatpush2.msra.mxu0 0.0
  %1582 = vmatprep.subr.mxu0 0.0
  %1583 = vmatpush2.msra.mxu0 0.0
  %1584 = vmatprep.subr.mxu0 0.0
  %1585 = vmatpush2.msra.mxu0 0.0
  %1586 = vmatprep.subr.mxu0 0.0
  %1587 = vmatpush2.msra.mxu0 0.0
  %1588 = vmatprep.subr.mxu0 0.0
  %1589 = vmatpush2.msra.mxu0 0.0
  %1590 = vmatprep.subr.mxu0 0.0
  %1591 = vmatpush2.msra.mxu0 0.0
  %1592 = vmatprep.subr.mxu0 0.0
  %1593 = vmatpush2.msra.mxu0 0.0
  %1594 = vmatprep.subr.mxu0 0.0
  %1595 = vmatpush2.msra.mxu0 0.0
  %1596 = vmatprep.subr.mxu0 0.0
  %1597 = vmatpush2.msra.mxu0 0.0
  %1598 = vmatprep.subr.mxu0 0.0
  %1599 = vmatpush2.msra.mxu0 0.0
  %1600 = vmatprep.subr.mxu0 0.0
  %1601 = vmatpush2.msra.mxu0 0.0
  %1602 = vmatprep.mubr.f32.mxu0 0.0
  %1603 = vmatmul.mubr.f32.gmra.mxu0 %v1465
  %v1604 = vpop.f32.mrf.mxu0
  %v1605 = vadd.f32 0.0, %v1604
  %v1606 = vpop.f32.mrf.mxu0
  %v1607 = vadd.f32 0.0, %v1606
  %1608 = vdwg.mxu0
  %1609 = vmatprep.subr.mxu0 %v1537
  %1610 = vmatpush1.msra.mxu0 %v1536
  %1611 = vmatprep.subr.mxu0 %v1533
  %1612 = vmatpush1.msra.mxu0 %v1532
  %1613 = vmatprep.subr.mxu0 %v1529
  %1614 = vmatpush1.msra.mxu0 %v1528
  %1615 = vmatprep.subr.mxu0 %v1525
  %1616 = vmatpush1.msra.mxu0 %v1524
  %1617 = vmatprep.subr.mxu0 %v1521
  %1618 = vmatpush1.msra.mxu0 %v1520
  %1619 = vmatprep.subr.mxu0 %v1517
  %1620 = vmatpush1.msra.mxu0 %v1516
  %1621 = vmatprep.subr.mxu0 %v1513
  %1622 = vmatpush1.msra.mxu0 %v1512
  %1623 = vmatprep.subr.mxu0 %v1509
  %1624 = vmatpush1.msra.mxu0 %v1508
  %1625 = vmatprep.subr.mxu0 %v1505
  %1626 = vmatpush1.msra.mxu0 %v1504
  %1627 = vmatprep.subr.mxu0 %v1501
  %1628 = vmatpush1.msra.mxu0 %v1500
  %1629 = vmatprep.subr.mxu0 %v1497
  %1630 = vmatpush1.msra.mxu0 %v1496
  %1631 = vmatprep.subr.mxu0 %v1493
  %1632 = vmatpush1.msra.mxu0 %v1492
  %1633 = vmatprep.subr.mxu0 %v1489
  %1634 = vmatpush1.msra.mxu0 %v1488
  %1635 = vmatprep.subr.mxu0 %v1485
  %1636 = vmatpush1.msra.mxu0 %v1484
  %1637 = vmatprep.subr.mxu0 %v1481
  %1638 = vmatpush1.msra.mxu0 %v1480
  %1639 = vmatprep.subr.mxu0 %v1477
  %1640 = vmatpush1.msra.mxu0 %v1476
  %1641 = vmatprep.subr.mxu0 0.0
  %1642 = vmatpush2.msra.mxu0 0.0
  %1643 = vmatprep.subr.mxu0 0.0
  %1644 = vmatpush2.msra.mxu0 0.0
  %1645 = vmatprep.subr.mxu0 0.0
  %1646 = vmatpush2.msra.mxu0 0.0
  %1647 = vmatprep.subr.mxu0 0.0
  %1648 = vmatpush2.msra.mxu0 0.0
  %1649 = vmatprep.subr.mxu0 0.0
  %1650 = vmatpush2.msra.mxu0 0.0
  %1651 = vmatprep.subr.mxu0 0.0
  %1652 = vmatpush2.msra.mxu0 0.0
  %1653 = vmatprep.subr.mxu0 0.0
  %1654 = vmatpush2.msra.mxu0 0.0
  %1655 = vmatprep.subr.mxu0 0.0
  %1656 = vmatpush2.msra.mxu0 0.0
  %1657 = vmatprep.subr.mxu0 0.0
  %1658 = vmatpush2.msra.mxu0 0.0
  %1659 = vmatprep.subr.mxu0 0.0
  %1660 = vmatpush2.msra.mxu0 0.0
  %1661 = vmatprep.subr.mxu0 0.0
  %1662 = vmatpush2.msra.mxu0 0.0
  %1663 = vmatprep.subr.mxu0 0.0
  %1664 = vmatpush2.msra.mxu0 0.0
  %1665 = vmatprep.subr.mxu0 0.0
  %1666 = vmatpush2.msra.mxu0 0.0
  %1667 = vmatprep.subr.mxu0 0.0
  %1668 = vmatpush2.msra.mxu0 0.0
  %1669 = vmatprep.subr.mxu0 0.0
  %1670 = vmatpush2.msra.mxu0 0.0
  %1671 = vmatprep.subr.mxu0 0.0
  %1672 = vmatpush2.msra.mxu0 0.0
  %1673 = vmatprep.mubr.f32.mxu0 0.0
  %1674 = vmatmul.mubr.f32.gmra.mxu0 %v1465
  %v1675 = vpop.f32.mrf.mxu0
  %v1676 = vadd.f32 0.0, %v1675
  %v1677 = vpop.f32.mrf.mxu0
  %v1678 = vadd.f32 0.0, %v1677
  %1679 = vdwg.mxu0
  %v1680 = vadd.f32 %v1470, %v1605
  %v1681 = vadd.f32 %v1471, %v1607
  %v1682 = vadd.f32 %v1472, %v1676
  %v1683 = vadd.f32 %v1473, %v1678
  %v1684 = vxor.u32 %v1680, 2147483648
  %v1685 = vmul.f32 %v1684, 1.442695
  %v1686 = vpow.pop %v1685
  %v1687 = vadd.f32 %v1686, 1.0
  %v1688 = vrcp.pop %v1687
  %v1689 = vmul.f32 1.0, %v1688
  %v1690 = vxor.u32 %v1681, 2147483648
  %v1691 = vmul.f32 %v1690, 1.442695
  %v1692 = vpow.pop %v1691
  %v1693 = vadd.f32 %v1692, 1.0
  %v1694 = vrcp.pop %v1693
  %v1695 = vmul.f32 1.0, %v1694
  %v1696 = vtanh.pop %v1682
  %v1697 = vxor.u32 %v1683, 2147483648
  %v1698 = vmul.f32 %v1697, 1.442695
  %v1699 = vpow.pop %v1698
  %v1700 = vadd.f32 %v1699, 1.0
  %v1701 = vrcp.pop %v1700
  %v1702 = vmul.f32 1.0, %v1701
  %v1703 = vmul.f32 %v1695, %v1463
  %v1704 = vmul.f32 %v1689, %v1696
  %v1705 = vadd.f32 %v1703, %v1704
  %v1706 = vtanh.pop %v1705
  %v1707 = vmul.f32 %v1702, %v1706
  %v1708 = vmax.f32 %v1707, 0.0
  %s1709 = scalar_lea.vmem %s2, 48
  %1710 = vst [vmem:[%s1709] sm:$0xff] %v1708
  %s1711 = scalar_lea.vmem %s0, 224
  %v1712 = vld [vmem:[%s1711] sm:$0xff]
  %v1713 = vld [vmem:[%s1711 + $0x8] sm:$0xff]
  %v1714 = vld [vmem:[%s1711 + $0x10] sm:$0xff]
  %v1715 = vld [vmem:[%s1711 + $0x18] sm:$0xff]
  %v1716 = vld [vmem:[%s1] sm:$0xff]
  %v1717 = vld [vmem:[%s1 + $0x8] sm:$0xff]
  %v1718 = vld [vmem:[%s1 + $0x10] sm:$0xff]
  %v1719 = vld [vmem:[%s1 + $0x18] sm:$0xff]
  %v1720 = vld [vmem:[%s1 + $0x20] sm:$0xff]
  %v1721 = vld [vmem:[%s1 + $0x28] sm:$0xff]
  %v1722 = vld [vmem:[%s1 + $0x30] sm:$0xff]
  %v1723 = vld [vmem:[%s1 + $0x38] sm:$0xff]
  %v1724 = vld [vmem:[%s1 + $0x40] sm:$0xff]
  %v1725 = vld [vmem:[%s1 + $0x48] sm:$0xff]
  %v1726 = vld [vmem:[%s1 + $0x50] sm:$0xff]
  %v1727 = vld [vmem:[%s1 + $0x58] sm:$0xff]
  %v1728 = vld [vmem:[%s1 + $0x60] sm:$0xff]
  %v1729 = vld [vmem:[%s1 + $0x68] sm:$0xff]
  %v1730 = vld [vmem:[%s1 + $0x70] sm:$0xff]
  %v1731 = vld [vmem:[%s1 + $0x78] sm:$0xff]
  %v1732 = vld [vmem:[%s1 + $0x80] sm:$0xff]
  %v1733 = vld [vmem:[%s1 + $0x88] sm:$0xff]
  %v1734 = vld [vmem:[%s1 + $0x90] sm:$0xff]
  %v1735 = vld [vmem:[%s1 + $0x98] sm:$0xff]
  %v1736 = vld [vmem:[%s1 + $0xa0] sm:$0xff]
  %v1737 = vld [vmem:[%s1 + $0xa8] sm:$0xff]
  %v1738 = vld [vmem:[%s1 + $0xb0] sm:$0xff]
  %v1739 = vld [vmem:[%s1 + $0xb8] sm:$0xff]
  %v1740 = vld [vmem:[%s1 + $0xc0] sm:$0xff]
  %v1741 = vld [vmem:[%s1 + $0xc8] sm:$0xff]
  %v1742 = vld [vmem:[%s1 + $0xd0] sm:$0xff]
  %v1743 = vld [vmem:[%s1 + $0xd8] sm:$0xff]
  %v1744 = vld [vmem:[%s1 + $0xe0] sm:$0xff]
  %v1745 = vld [vmem:[%s1 + $0xe8] sm:$0xff]
  %v1746 = vld [vmem:[%s1 + $0xf0] sm:$0xff]
  %v1747 = vld [vmem:[%s1 + $0xf8] sm:$0xff]
  %v1748 = vld [vmem:[%s1 + $0x100] sm:$0xff]
  %v1749 = vld [vmem:[%s1 + $0x108] sm:$0xff]
  %v1750 = vld [vmem:[%s1 + $0x110] sm:$0xff]
  %v1751 = vld [vmem:[%s1 + $0x118] sm:$0xff]
  %v1752 = vld [vmem:[%s1 + $0x120] sm:$0xff]
  %v1753 = vld [vmem:[%s1 + $0x128] sm:$0xff]
  %v1754 = vld [vmem:[%s1 + $0x130] sm:$0xff]
  %v1755 = vld [vmem:[%s1 + $0x138] sm:$0xff]
  %v1756 = vld [vmem:[%s1 + $0x140] sm:$0xff]
  %v1757 = vld [vmem:[%s1 + $0x148] sm:$0xff]
  %v1758 = vld [vmem:[%s1 + $0x150] sm:$0xff]
  %v1759 = vld [vmem:[%s1 + $0x158] sm:$0xff]
  %v1760 = vld [vmem:[%s1 + $0x160] sm:$0xff]
  %v1761 = vld [vmem:[%s1 + $0x168] sm:$0xff]
  %v1762 = vld [vmem:[%s1 + $0x170] sm:$0xff]
  %v1763 = vld [vmem:[%s1 + $0x178] sm:$0xff]
  %v1764 = vld [vmem:[%s1 + $0x180] sm:$0xff]
  %v1765 = vld [vmem:[%s1 + $0x188] sm:$0xff]
  %v1766 = vld [vmem:[%s1 + $0x190] sm:$0xff]
  %v1767 = vld [vmem:[%s1 + $0x198] sm:$0xff]
  %v1768 = vld [vmem:[%s1 + $0x1a0] sm:$0xff]
  %v1769 = vld [vmem:[%s1 + $0x1a8] sm:$0xff]
  %v1770 = vld [vmem:[%s1 + $0x1b0] sm:$0xff]
  %v1771 = vld [vmem:[%s1 + $0x1b8] sm:$0xff]
  %v1772 = vld [vmem:[%s1 + $0x1c0] sm:$0xff]
  %v1773 = vld [vmem:[%s1 + $0x1c8] sm:$0xff]
  %v1774 = vld [vmem:[%s1 + $0x1d0] sm:$0xff]
  %v1775 = vld [vmem:[%s1 + $0x1d8] sm:$0xff]
  %v1776 = vld [vmem:[%s1 + $0x1e0] sm:$0xff]
  %v1777 = vld [vmem:[%s1 + $0x1e8] sm:$0xff]
  %v1778 = vld [vmem:[%s1 + $0x1f0] sm:$0xff]
  %v1779 = vld [vmem:[%s1 + $0x1f8] sm:$0xff]
  %1780 = vmatprep.subr.mxu0 %v1777
  %1781 = vmatpush1.msra.mxu0 %v1776
  %1782 = vmatprep.subr.mxu0 %v1773
  %1783 = vmatpush1.msra.mxu0 %v1772
  %1784 = vmatprep.subr.mxu0 %v1769
  %1785 = vmatpush1.msra.mxu0 %v1768
  %1786 = vmatprep.subr.mxu0 %v1765
  %1787 = vmatpush1.msra.mxu0 %v1764
  %1788 = vmatprep.subr.mxu0 %v1761
  %1789 = vmatpush1.msra.mxu0 %v1760
  %1790 = vmatprep.subr.mxu0 %v1757
  %1791 = vmatpush1.msra.mxu0 %v1756
  %1792 = vmatprep.subr.mxu0 %v1753
  %1793 = vmatpush1.msra.mxu0 %v1752
  %1794 = vmatprep.subr.mxu0 %v1749
  %1795 = vmatpush1.msra.mxu0 %v1748
  %1796 = vmatprep.subr.mxu0 %v1745
  %1797 = vmatpush1.msra.mxu0 %v1744
  %1798 = vmatprep.subr.mxu0 %v1741
  %1799 = vmatpush1.msra.mxu0 %v1740
  %1800 = vmatprep.subr.mxu0 %v1737
  %1801 = vmatpush1.msra.mxu0 %v1736
  %1802 = vmatprep.subr.mxu0 %v1733
  %1803 = vmatpush1.msra.mxu0 %v1732
  %1804 = vmatprep.subr.mxu0 %v1729
  %1805 = vmatpush1.msra.mxu0 %v1728
  %1806 = vmatprep.subr.mxu0 %v1725
  %1807 = vmatpush1.msra.mxu0 %v1724
  %1808 = vmatprep.subr.mxu0 %v1721
  %1809 = vmatpush1.msra.mxu0 %v1720
  %1810 = vmatprep.subr.mxu0 %v1717
  %1811 = vmatpush1.msra.mxu0 %v1716
  %1812 = vmatprep.subr.mxu0 0.0
  %1813 = vmatpush2.msra.mxu0 0.0
  %1814 = vmatprep.subr.mxu0 0.0
  %1815 = vmatpush2.msra.mxu0 0.0
  %1816 = vmatprep.subr.mxu0 0.0
  %1817 = vmatpush2.msra.mxu0 0.0
  %1818 = vmatprep.subr.mxu0 0.0
  %1819 = vmatpush2.msra.mxu0 0.0
  %1820 = vmatprep.subr.mxu0 0.0
  %1821 = vmatpush2.msra.mxu0 0.0
  %1822 = vmatprep.subr.mxu0 0.0
  %1823 = vmatpush2.msra.mxu0 0.0
  %1824 = vmatprep.subr.mxu0 0.0
  %1825 = vmatpush2.msra.mxu0 0.0
  %1826 = vmatprep.subr.mxu0 0.0
  %1827 = vmatpush2.msra.mxu0 0.0
  %1828 = vmatprep.subr.mxu0 0.0
  %1829 = vmatpush2.msra.mxu0 0.0
  %1830 = vmatprep.subr.mxu0 0.0
  %1831 = vmatpush2.msra.mxu0 0.0
  %1832 = vmatprep.subr.mxu0 0.0
  %1833 = vmatpush2.msra.mxu0 0.0
  %1834 = vmatprep.subr.mxu0 0.0
  %1835 = vmatpush2.msra.mxu0 0.0
  %1836 = vmatprep.subr.mxu0 0.0
  %1837 = vmatpush2.msra.mxu0 0.0
  %1838 = vmatprep.subr.mxu0 0.0
  %1839 = vmatpush2.msra.mxu0 0.0
  %1840 = vmatprep.subr.mxu0 0.0
  %1841 = vmatpush2.msra.mxu0 0.0
  %1842 = vmatprep.subr.mxu0 0.0
  %1843 = vmatpush2.msra.mxu0 0.0
  %1844 = vmatprep.mubr.f32.mxu0 0.0
  %1845 = vmatmul.mubr.f32.gmra.mxu0 %v1707
  %v1846 = vpop.f32.mrf.mxu0
  %v1847 = vadd.f32 0.0, %v1846
  %v1848 = vpop.f32.mrf.mxu0
  %v1849 = vadd.f32 0.0, %v1848
  %1850 = vdwg.mxu0
  %1851 = vmatprep.subr.mxu0 %v1779
  %1852 = vmatpush1.msra.mxu0 %v1778
  %1853 = vmatprep.subr.mxu0 %v1775
  %1854 = vmatpush1.msra.mxu0 %v1774
  %1855 = vmatprep.subr.mxu0 %v1771
  %1856 = vmatpush1.msra.mxu0 %v1770
  %1857 = vmatprep.subr.mxu0 %v1767
  %1858 = vmatpush1.msra.mxu0 %v1766
  %1859 = vmatprep.subr.mxu0 %v1763
  %1860 = vmatpush1.msra.mxu0 %v1762
  %1861 = vmatprep.subr.mxu0 %v1759
  %1862 = vmatpush1.msra.mxu0 %v1758
  %1863 = vmatprep.subr.mxu0 %v1755
  %1864 = vmatpush1.msra.mxu0 %v1754
  %1865 = vmatprep.subr.mxu0 %v1751
  %1866 = vmatpush1.msra.mxu0 %v1750
  %1867 = vmatprep.subr.mxu0 %v1747
  %1868 = vmatpush1.msra.mxu0 %v1746
  %1869 = vmatprep.subr.mxu0 %v1743
  %1870 = vmatpush1.msra.mxu0 %v1742
  %1871 = vmatprep.subr.mxu0 %v1739
  %1872 = vmatpush1.msra.mxu0 %v1738
  %1873 = vmatprep.subr.mxu0 %v1735
  %1874 = vmatpush1.msra.mxu0 %v1734
  %1875 = vmatprep.subr.mxu0 %v1731
  %1876 = vmatpush1.msra.mxu0 %v1730
  %1877 = vmatprep.subr.mxu0 %v1727
  %1878 = vmatpush1.msra.mxu0 %v1726
  %1879 = vmatprep.subr.mxu0 %v1723
  %1880 = vmatpush1.msra.mxu0 %v1722
  %1881 = vmatprep.subr.mxu0 %v1719
  %1882 = vmatpush1.msra.mxu0 %v1718
  %1883 = vmatprep.subr.mxu0 0.0
  %1884 = vmatpush2.msra.mxu0 0.0
  %1885 = vmatprep.subr.mxu0 0.0
  %1886 = vmatpush2.msra.mxu0 0.0
  %1887 = vmatprep.subr.mxu0 0.0
  %1888 = vmatpush2.msra.mxu0 0.0
  %1889 = vmatprep.subr.mxu0 0.0
  %1890 = vmatpush2.msra.mxu0 0.0
  %1891 = vmatprep.subr.mxu0 0.0
  %1892 = vmatpush2.msra.mxu0 0.0
  %1893 = vmatprep.subr.mxu0 0.0
  %1894 = vmatpush2.msra.mxu0 0.0
  %1895 = vmatprep.subr.mxu0 0.0
  %1896 = vmatpush2.msra.mxu0 0.0
  %1897 = vmatprep.subr.mxu0 0.0
  %1898 = vmatpush2.msra.mxu0 0.0
  %1899 = vmatprep.subr.mxu0 0.0
  %1900 = vmatpush2.msra.mxu0 0.0
  %1901 = vmatprep.subr.mxu0 0.0
  %1902 = vmatpush2.msra.mxu0 0.0
  %1903 = vmatprep.subr.mxu0 0.0
  %1904 = vmatpush2.msra.mxu0 0.0
  %1905 = vmatprep.subr.mxu0 0.0
  %1906 = vmatpush2.msra.mxu0 0.0
  %1907 = vmatprep.subr.mxu0 0.0
  %1908 = vmatpush2.msra.mxu0 0.0
  %1909 = vmatprep.subr.mxu0 0.0
  %1910 = vmatpush2.msra.mxu0 0.0
  %1911 = vmatprep.subr.mxu0 0.0
  %1912 = vmatpush2.msra.mxu0 0.0
  %1913 = vmatprep.subr.mxu0 0.0
  %1914 = vmatpush2.msra.mxu0 0.0
  %1915 = vmatprep.mubr.f32.mxu0 0.0
  %1916 = vmatmul.mubr.f32.gmra.mxu0 %v1707
  %v1917 = vpop.f32.mrf.mxu0
  %v1918 = vadd.f32 0.0, %v1917
  %v1919 = vpop.f32.mrf.mxu0
  %v1920 = vadd.f32 0.0, %v1919
  %1921 = vdwg.mxu0
  %v1922 = vadd.f32 %v1712, %v1847
  %v1923 = vadd.f32 %v1713, %v1849
  %v1924 = vadd.f32 %v1714, %v1918
  %v1925 = vadd.f32 %v1715, %v1920
  %v1926 = vxor.u32 %v1922, 2147483648
  %v1927 = vmul.f32 %v1926, 1.442695
  %v1928 = vpow.pop %v1927
  %v1929 = vadd.f32 %v1928, 1.0
  %v1930 = vrcp.pop %v1929
  %v1931 = vmul.f32 1.0, %v1930
  %v1932 = vxor.u32 %v1923, 2147483648
  %v1933 = vmul.f32 %v1932, 1.442695
  %v1934 = vpow.pop %v1933
  %v1935 = vadd.f32 %v1934, 1.0
  %v1936 = vrcp.pop %v1935
  %v1937 = vmul.f32 1.0, %v1936
  %v1938 = vtanh.pop %v1924
  %v1939 = vxor.u32 %v1925, 2147483648
  %v1940 = vmul.f32 %v1939, 1.442695
  %v1941 = vpow.pop %v1940
  %v1942 = vadd.f32 %v1941, 1.0
  %v1943 = vrcp.pop %v1942
  %v1944 = vmul.f32 1.0, %v1943
  %v1945 = vmul.f32 %v1937, %v1705
  %v1946 = vmul.f32 %v1931, %v1938
  %v1947 = vadd.f32 %v1945, %v1946
  %v1948 = vtanh.pop %v1947
  %v1949 = vmul.f32 %v1944, %v1948
  %v1950 = vmax.f32 %v1949, 0.0
  %s1951 = scalar_lea.vmem %s2, 56
  %1952 = vst [vmem:[%s1951] sm:$0xff] %v1950
  %1953 = vst [vmem:[#allocation2] sm:$0xff] %v1949
  %1954 = vst [vmem:[#allocation3] sm:$0xff] %v1947
  // Predicated region
  $region14: #{net_forward.3} parent=0 // pred_check
    _
  $region15: #{net_forward.3} parent=0 // pred_check_branch
    %1956 = sbr.rel (0) target = $region17
  $region16: #{net_forward.3} parent=0 // pred_region
    _
  $region17: #{net_forward.3} parent=0 // pred_fallthru
    _
  // Predicated region
  $region18: #{net_forward.3} parent=0 // pred_check
    _
  $region19: #{net_forward.3} parent=0 // pred_check_branch
    %1958 = sbr.rel (0) target = $region21
  $region20: #{net_forward.3} parent=0 // pred_region
    _
  $region21: #{net_forward.3} parent=0 // pred_fallthru
    _

</llo_original>
